<compile_context>
chip_gen: v5e
topology: v5e:2x2
jax: 0.10.0
libtpu: 0.0.40
codegen_flags: <defaults>
</compile_context>

<pallas_src>
import functools

import jax
import jax.numpy as jnp
from jax.experimental import pallas as pl
from jax.experimental.pallas import tpu as pltpu  # noqa: F401  (kept for parity with prod variants)

_INV_SQRT2 = 0.7071067811865476  # 1/sqrt(2) for exact (erf) GELU
_NEG_BIG = -1e30                 # additive mask value (underflows to exp()==0)


def _layernorm(x, g, b):
    # LayerNorm over last dim, eps=1e-5, biased variance (matches PyTorch).
    mu = jnp.mean(x, axis=-1, keepdims=True)
    var = jnp.mean((x - mu) ** 2, axis=-1, keepdims=True)
    return (x - mu) * jax.lax.rsqrt(var + 1e-5) * g + b


# ----------------------------- fused ViT kernel -----------------------------


def _vit_fused_kernel(
    patches_ref, mask_ref, sel_ref, proj_w_ref, emb_ref,
    wqkv_ref, wout_ref, ln1_g_ref, ln1_b_ref,
    fc1_w_ref, fc1_b_ref, fc2_w_ref, fc2_b_ref,
    ln2_g_ref, ln2_b_ref, head_w_ref, head_b_ref,
    out_ref, *, block_num, head_num, embedding_dim, classification,
):
    f32 = jnp.float32
    E = embedding_dim
    D = E // head_num

    # Patch projection over all M = B*T rows at once (better sublane fill than
    # per-batch GEMMs).  Row 0 of each batch is a zero "cls slot"; emb_ref
    # already carries cls_token + positional table + projection bias.
    h = jnp.dot(patches_ref[...].astype(f32), proj_w_ref[...],
                preferred_element_type=f32) + emb_ref[...]            # (M, E)
    # TODO(synk): nn.Dropout(0.1) after the embedding add is identity (eval).

    mask = mask_ref[...]                                              # (M, M)

    for l in range(block_num):                                        # static unroll
        # ---------------- multi-head attention ----------------
        # One lane-dense fused QKV GEMM (N = 3E) instead of 3*H D=8 matmuls.
        qkv = jnp.dot(h, wqkv_ref[l], preferred_element_type=f32)     # (M, 3E)
        ctx_heads = []
        for hh in range(head_num):                                    # static unroll
            q = qkv[:, hh * D:(hh + 1) * D]            # attention scale pre-folded
            k = qkv[:, E + hh * D:E + (hh + 1) * D]
            v = qkv[:, 2 * E + hh * D:2 * E + (hh + 1) * D]
            # q @ k^T via dot_general contracting D — no explicit XLU transpose.
            s = jax.lax.dot_general(q, k, (((1,), (1,)), ((), ())),
                                    preferred_element_type=f32)       # (M, M)
            s = s + mask                                # block-diag batch mask
            s = s - jnp.max(s, axis=-1, keepdims=True)
            p = jnp.exp(s)
            p = p / jnp.sum(p, axis=-1, keepdims=True)  # exact softmax
            ctx_heads.append(jnp.dot(p, v, preferred_element_type=f32))  # (M, D)
        # 'b h t d -> b t (h d)' == lane-concat of per-head contexts, followed
        # by a SINGLE (M,E)@(E,E) output projection (full K fill, one push).
        ctx = jnp.concatenate(ctx_heads, axis=-1)                      # (M, E)
        attn = jnp.dot(ctx, wout_ref[l], preferred_element_type=f32)
        h = _layernorm(h + attn, ln1_g_ref[l], ln1_b_ref[l])           # dropout=id

        # ---------------- MLP (fc1 + exact GELU + fc2) ----------------
        m1 = jnp.dot(h, fc1_w_ref[l], preferred_element_type=f32) + fc1_b_ref[l]
        g = 0.5 * m1 * (1.0 + jax.lax.erf(m1 * _INV_SQRT2))
        m2 = jnp.dot(g, fc2_w_ref[l], preferred_element_type=f32) + fc2_b_ref[l]
        h = _layernorm(h + m2, ln2_g_ref[l], ln2_b_ref[l])             # dropout=id

    if classification:
        # Pick each batch's cls row with a tiny (B, M) selector matmul and run
        # the classification head — all still in-kernel.
        cls_rows = jnp.dot(sel_ref[...], h, preferred_element_type=f32)  # (B, E)
        logits = jnp.dot(cls_rows, head_w_ref[...],
                         preferred_element_type=f32) + head_b_ref[...]
        out_ref[...] = logits.astype(out_ref.dtype)
    else:
        out_ref[...] = h.astype(out_ref.dtype)


# ------------------------------- ViT forward --------------------------------


def vit_forward(x, kparams, cfg):
    B, C, Himg, Wimg = x.shape
    P = cfg["patch_dim"]
    E = cfg["embedding_dim"]
    X, Y = Himg // P, Wimg // P
    T0 = X * Y
    T = T0 + 1
    M = B * T
    tok = C * P * P

    # einops 'b c (px x) (py y) -> b (x y) (px py c)' — pure layout, stays in XLA.
    patches = (x.reshape(B, C, P, X, P, Y)
                 .transpose(0, 3, 5, 2, 4, 1)
                 .reshape(B, T0, tok))
    # prepend a zero row per batch (cls slot) and fold batch into the GEMM M dim.
    patches = jnp.pad(patches, ((0, 0), (1, 0), (0, 0))).reshape(M, tok)

    # Tiny compile-time constants (B, T are static under jit):
    emb = jnp.tile(kparams["emb_eff"][:T, :], (B, 1))                   # (M, E)
    bid = jnp.arange(M, dtype=jnp.int32) // T
    mask = jnp.where(bid[:, None] == bid[None, :], 0.0, _NEG_BIG).astype(jnp.float32)
    sel = (jnp.arange(M)[None, :] == (jnp.arange(B) * T)[:, None]).astype(jnp.float32)

    classification = cfg["classification"]
    if classification:
        out_shape = jax.ShapeDtypeStruct((B, cfg["num_classes"]), jnp.float32)
    else:
        out_shape = jax.ShapeDtypeStruct((M, E), jnp.float32)

    kern = functools.partial(
        _vit_fused_kernel,
        block_num=cfg["block_num"], head_num=cfg["head_num"],
        embedding_dim=E, classification=classification)

    out = pl.pallas_call(kern, out_shape=out_shape)(
        patches, mask, sel,
        kparams["proj_w"], emb,
        kparams["wqkv"], kparams["wout"],
        kparams["ln1_g"], kparams["ln1_b"],
        kparams["fc1_w"], kparams["fc1_b"],
        kparams["fc2_w"], kparams["fc2_b"],
        kparams["ln2_g"], kparams["ln2_b"],
        kparams["head_w"], kparams["head_b"],
    )
    if classification:
        return out
    return out.reshape(B, T, E)[:, 1:, :]


# ------------------------------- param init ---------------------------------


def init_params(key, cfg):
    img_dim = cfg["img_dim"]
    in_ch = cfg["in_channels"]
    E = cfg["embedding_dim"]
    mlp_dim = cfg["mlp_dim"]
    P = cfg["patch_dim"]
    num_tokens = (img_dim // P) ** 2
    token_dim = in_ch * P * P

    def dense(key, fan_in, fan_out):
        kw, kb = jax.random.split(key)
        w = jax.random.normal(kw, (fan_in, fan_out), jnp.float32) * 0.02
        b = jax.random.normal(kb, (fan_out,), jnp.float32) * 0.02
        return w, b

    keys = jax.random.split(key, 5 + cfg["block_num"])
    proj_w, proj_b = dense(keys[0], token_dim, E)
    embedding = jax.random.uniform(keys[1], (num_tokens + 1, E), jnp.float32)
    cls_token = jax.random.normal(keys[2], (1, 1, E), jnp.float32)
    head_w, head_b = dense(keys[3], E, cfg["num_classes"])

    blocks = []
    for i in range(cfg["block_num"]):
        bk = jax.random.split(keys[5 + i], 4)
        qkv_w = jax.random.normal(bk[0], (E, 3 * E), jnp.float32) * 0.02  # no bias
        out_w = jax.random.normal(bk[1], (E, E), jnp.float32) * 0.02      # no bias
        fc1_w, fc1_b = dense(bk[2], E, mlp_dim)
        fc2_w, fc2_b = dense(bk[3], mlp_dim, E)
        blocks.append(dict(
            qkv_w=qkv_w, out_w=out_w,
            fc1_w=fc1_w, fc1_b=fc1_b, fc2_w=fc2_w, fc2_b=fc2_b,
            ln1_g=jnp.ones((E,), jnp.float32), ln1_b=jnp.zeros((E,), jnp.float32),
            ln2_g=jnp.ones((E,), jnp.float32), ln2_b=jnp.zeros((E,), jnp.float32),
        ))
    return dict(proj_w=proj_w, proj_b=proj_b, embedding=embedding,
                cls_token=cls_token, head_w=head_w, head_b=head_b, blocks=blocks)


def prepare_params(params, cfg):
    """One-time weight re-layout (outside jit):
      * qkv columns re-ordered (d,k,h)->(k,h,d) so the fused (E,3E) GEMM output
        is head-sliceable with contiguous lane windows,
      * the attention scale ((E//H)**1/2 == head_dim/2, the module's precedence
        quirk) folded into the q columns,
      * cls token + projection bias folded into the positional table so the
        kernel never concatenates along the token axis,
      * per-block weights stacked along a leading block axis."""
    E = cfg["embedding_dim"]
    Hn = cfg["head_num"]
    D = E // Hn
    # reproduce the reference precedence quirk exactly:
    scale = (E // Hn) ** 1 / 2
    col_scale = jnp.concatenate(
        [jnp.full((E,), scale, jnp.float32), jnp.ones((2 * E,), jnp.float32)])

    def relay_qkv(w):
        # einops 'b t (d k h) -> k b h t d': qkv feature f = d*3H + k*H + h.
        w = w.reshape(E, D, 3, Hn)                              # [in, d, k, h]
        w = jnp.transpose(w, (0, 2, 3, 1)).reshape(E, 3 * E)    # [in, (k h d)]
        return w * col_scale[None, :]

    def stk(key, fn=lambda a: a):
        return jnp.stack([fn(p[key]) for p in params["blocks"]])

    emb_eff = params["embedding"] + params["proj_b"][None, :]
    emb_eff = emb_eff.at[0].set(params["embedding"][0]
                                + params["cls_token"].reshape(E))

    return dict(
        proj_w=params["proj_w"],
        emb_eff=emb_eff,
        wqkv=stk("qkv_w", relay_qkv),
        wout=stk("out_w"),
        ln1_g=stk("ln1_g", lambda a: a.reshape(1, E)),
        ln1_b=stk("ln1_b", lambda a: a.reshape(1, E)),
        fc1_w=stk("fc1_w"),
        fc1_b=stk("fc1_b", lambda a: a.reshape(1, -1)),
        fc2_w=stk("fc2_w"),
        fc2_b=stk("fc2_b", lambda a: a.reshape(1, E)),
        ln2_g=stk("ln2_g", lambda a: a.reshape(1, E)),
        ln2_b=stk("ln2_b", lambda a: a.reshape(1, E)),
        head_w=params["head_w"],
        head_b=params["head_b"].reshape(1, -1),
    )


# ---------------------------------- main -------------------------------------


if __name__ == "__main__":
    cfg = dict(
        img_dim=16,
        in_channels=4,
        embedding_dim=32,
        head_num=4,
        mlp_dim=64,
        block_num=2,
        patch_dim=4,
        classification=True,
        num_classes=10,
    )
    key = jax.random.PRNGKey(0)
    kx, kp = jax.random.split(key)
    # layout: NCHW, matching the PyTorch module's expected input
    x = jax.random.normal(
        kx, (2, cfg["in_channels"], cfg["img_dim"], cfg["img_dim"]), jnp.float32
    )
    params = init_params(kp, cfg)
    kparams = prepare_params(params, cfg)   # one-time weight re-layout, pre-jit

    fwd = jax.jit(lambda a: vit_forward(a, kparams, cfg))
    out = jax.block_until_ready(fwd(x))
    assert out.shape == (2, cfg["num_classes"]), out.shape
    assert jnp.all(jnp.isfinite(out))
    print("KERNEL_OK")
</pallas_src>

<mosaic_0001>
module attributes {stable_mosaic.version = 11 : i64} {
  func.func @_vit_fused_kernel(%arg0: memref<34x64xf32, #tpu.memory_space<vmem>>, %arg1: memref<34x34xf32, #tpu.memory_space<vmem>>, %arg2: memref<2x34xf32, #tpu.memory_space<vmem>>, %arg3: memref<64x32xf32, #tpu.memory_space<vmem>>, %arg4: memref<34x32xf32, #tpu.memory_space<vmem>>, %arg5: memref<2x32x96xf32, #tpu.memory_space<vmem>>, %arg6: memref<2x32x32xf32, #tpu.memory_space<vmem>>, %arg7: memref<2x1x32xf32, #tpu.memory_space<vmem>>, %arg8: memref<2x1x32xf32, #tpu.memory_space<vmem>>, %arg9: memref<2x32x64xf32, #tpu.memory_space<vmem>>, %arg10: memref<2x1x64xf32, #tpu.memory_space<vmem>>, %arg11: memref<2x64x32xf32, #tpu.memory_space<vmem>>, %arg12: memref<2x1x32xf32, #tpu.memory_space<vmem>>, %arg13: memref<2x1x32xf32, #tpu.memory_space<vmem>>, %arg14: memref<2x1x32xf32, #tpu.memory_space<vmem>>, %arg15: memref<32x10xf32, #tpu.memory_space<vmem>>, %arg16: memref<1x10xf32, #tpu.memory_space<vmem>>, %arg17: memref<2x10xf32, #tpu.memory_space<vmem>>) attributes {dimension_semantics = [], scalar_prefetch = 0 : i64, scratch_operands = 0 : i64, tpu.core_type = #tpu.core_type<tc>} {
    %c0 = arith.constant 0 : index
    %c0_0 = arith.constant 0 : index
    %0 = vector.load %arg0[%c0, %c0_0] : memref<34x64xf32, #tpu.memory_space<vmem>>, vector<34x64xf32>
    %c0_1 = arith.constant 0 : index
    %c0_2 = arith.constant 0 : index
    %1 = vector.load %arg3[%c0_1, %c0_2] : memref<64x32xf32, #tpu.memory_space<vmem>>, vector<64x32xf32>
    %cst = arith.constant dense<0.000000e+00> : vector<34x32xf32>
    %2 = tpu.matmul %0, %1, %cst {dimension_numbers = #tpu.dot_dimension_numbers<[1], [0], [0], [1], [0, 0, 1, 1], [], []>} : vector<34x64xf32>, vector<64x32xf32>, vector<34x32xf32> -> vector<34x32xf32>
    %c0_3 = arith.constant 0 : index
    %c0_4 = arith.constant 0 : index
    %3 = vector.load %arg4[%c0_3, %c0_4] : memref<34x32xf32, #tpu.memory_space<vmem>>, vector<34x32xf32>
    %4 = arith.addf %2, %3 : vector<34x32xf32>
    %c0_5 = arith.constant 0 : index
    %c0_6 = arith.constant 0 : index
    %5 = vector.load %arg1[%c0_5, %c0_6] : memref<34x34xf32, #tpu.memory_space<vmem>>, vector<34x34xf32>
    %c0_7 = arith.constant 0 : index
    %c0_8 = arith.constant 0 : index
    %c0_9 = arith.constant 0 : index
    %6 = vector.load %arg5[%c0_7, %c0_8, %c0_9] : memref<2x32x96xf32, #tpu.memory_space<vmem>>, vector<1x32x96xf32>
    %7 = vector.shape_cast %6 : vector<1x32x96xf32> to vector<32x96xf32>
    %cst_10 = arith.constant dense<0.000000e+00> : vector<34x96xf32>
    %8 = tpu.matmul %4, %7, %cst_10 {dimension_numbers = #tpu.dot_dimension_numbers<[1], [0], [0], [1], [0, 0, 1, 1], [], []>} : vector<34x32xf32>, vector<32x96xf32>, vector<34x96xf32> -> vector<34x96xf32>
    %9 = vector.extract_strided_slice %8 {offsets = [0, 0], sizes = [34, 8], strides = [1, 1]} : vector<34x96xf32> to vector<34x8xf32>
    %10 = vector.extract_strided_slice %8 {offsets = [0, 32], sizes = [34, 8], strides = [1, 1]} : vector<34x96xf32> to vector<34x8xf32>
    %11 = vector.extract_strided_slice %8 {offsets = [0, 64], sizes = [34, 8], strides = [1, 1]} : vector<34x96xf32> to vector<34x8xf32>
    %cst_11 = arith.constant dense<0.000000e+00> : vector<34x34xf32>
    %12 = tpu.matmul %9, %10, %cst_11 {dimension_numbers = #tpu.dot_dimension_numbers<[1], [1], [0], [0], [0, 0, 1, 0], [], []>} : vector<34x8xf32>, vector<34x8xf32>, vector<34x34xf32> -> vector<34x34xf32>
    %13 = arith.addf %12, %5 : vector<34x34xf32>
    %cst_12 = arith.constant dense<0xFF800000> : vector<34xf32>
    %14 = vector.multi_reduction <maximumf>, %13, %cst_12 [1] : vector<34x34xf32> to vector<34xf32>
    %15 = vector.shape_cast %14 : vector<34xf32> to vector<34x1xf32>
    %16 = vector.broadcast %15 : vector<34x1xf32> to vector<34x34xf32>
    %17 = arith.subf %13, %16 : vector<34x34xf32>
    %18 = math.exp %17 : vector<34x34xf32>
    %cst_13 = arith.constant dense<0.000000e+00> : vector<34xf32>
    %19 = vector.multi_reduction <add>, %18, %cst_13 [1] : vector<34x34xf32> to vector<34xf32>
    %20 = vector.shape_cast %19 : vector<34xf32> to vector<34x1xf32>
    %21 = vector.broadcast %20 : vector<34x1xf32> to vector<34x34xf32>
    %22 = arith.divf %18, %21 : vector<34x34xf32>
    %cst_14 = arith.constant dense<0.000000e+00> : vector<34x8xf32>
    %23 = tpu.matmul %22, %11, %cst_14 {dimension_numbers = #tpu.dot_dimension_numbers<[1], [0], [0], [1], [0, 0, 1, 1], [], []>} : vector<34x34xf32>, vector<34x8xf32>, vector<34x8xf32> -> vector<34x8xf32>
    %24 = vector.extract_strided_slice %8 {offsets = [0, 8], sizes = [34, 8], strides = [1, 1]} : vector<34x96xf32> to vector<34x8xf32>
    %25 = vector.extract_strided_slice %8 {offsets = [0, 40], sizes = [34, 8], strides = [1, 1]} : vector<34x96xf32> to vector<34x8xf32>
    %26 = vector.extract_strided_slice %8 {offsets = [0, 72], sizes = [34, 8], strides = [1, 1]} : vector<34x96xf32> to vector<34x8xf32>
    %cst_15 = arith.constant dense<0.000000e+00> : vector<34x34xf32>
    %27 = tpu.matmul %24, %25, %cst_15 {dimension_numbers = #tpu.dot_dimension_numbers<[1], [1], [0], [0], [0, 0, 1, 0], [], []>} : vector<34x8xf32>, vector<34x8xf32>, vector<34x34xf32> -> vector<34x34xf32>
    %28 = arith.addf %27, %5 : vector<34x34xf32>
    %cst_16 = arith.constant dense<0xFF800000> : vector<34xf32>
    %29 = vector.multi_reduction <maximumf>, %28, %cst_16 [1] : vector<34x34xf32> to vector<34xf32>
    %30 = vector.shape_cast %29 : vector<34xf32> to vector<34x1xf32>
    %31 = vector.broadcast %30 : vector<34x1xf32> to vector<34x34xf32>
    %32 = arith.subf %28, %31 : vector<34x34xf32>
    %33 = math.exp %32 : vector<34x34xf32>
    %cst_17 = arith.constant dense<0.000000e+00> : vector<34xf32>
    %34 = vector.multi_reduction <add>, %33, %cst_17 [1] : vector<34x34xf32> to vector<34xf32>
    %35 = vector.shape_cast %34 : vector<34xf32> to vector<34x1xf32>
    %36 = vector.broadcast %35 : vector<34x1xf32> to vector<34x34xf32>
    %37 = arith.divf %33, %36 : vector<34x34xf32>
    %cst_18 = arith.constant dense<0.000000e+00> : vector<34x8xf32>
    %38 = tpu.matmul %37, %26, %cst_18 {dimension_numbers = #tpu.dot_dimension_numbers<[1], [0], [0], [1], [0, 0, 1, 1], [], []>} : vector<34x34xf32>, vector<34x8xf32>, vector<34x8xf32> -> vector<34x8xf32>
    %39 = vector.extract_strided_slice %8 {offsets = [0, 16], sizes = [34, 8], strides = [1, 1]} : vector<34x96xf32> to vector<34x8xf32>
    %40 = vector.extract_strided_slice %8 {offsets = [0, 48], sizes = [34, 8], strides = [1, 1]} : vector<34x96xf32> to vector<34x8xf32>
    %41 = vector.extract_strided_slice %8 {offsets = [0, 80], sizes = [34, 8], strides = [1, 1]} : vector<34x96xf32> to vector<34x8xf32>
    %cst_19 = arith.constant dense<0.000000e+00> : vector<34x34xf32>
    %42 = tpu.matmul %39, %40, %cst_19 {dimension_numbers = #tpu.dot_dimension_numbers<[1], [1], [0], [0], [0, 0, 1, 0], [], []>} : vector<34x8xf32>, vector<34x8xf32>, vector<34x34xf32> -> vector<34x34xf32>
    %43 = arith.addf %42, %5 : vector<34x34xf32>
    %cst_20 = arith.constant dense<0xFF800000> : vector<34xf32>
    %44 = vector.multi_reduction <maximumf>, %43, %cst_20 [1] : vector<34x34xf32> to vector<34xf32>
    %45 = vector.shape_cast %44 : vector<34xf32> to vector<34x1xf32>
    %46 = vector.broadcast %45 : vector<34x1xf32> to vector<34x34xf32>
    %47 = arith.subf %43, %46 : vector<34x34xf32>
    %48 = math.exp %47 : vector<34x34xf32>
    %cst_21 = arith.constant dense<0.000000e+00> : vector<34xf32>
    %49 = vector.multi_reduction <add>, %48, %cst_21 [1] : vector<34x34xf32> to vector<34xf32>
    %50 = vector.shape_cast %49 : vector<34xf32> to vector<34x1xf32>
    %51 = vector.broadcast %50 : vector<34x1xf32> to vector<34x34xf32>
    %52 = arith.divf %48, %51 : vector<34x34xf32>
    %cst_22 = arith.constant dense<0.000000e+00> : vector<34x8xf32>
    %53 = tpu.matmul %52, %41, %cst_22 {dimension_numbers = #tpu.dot_dimension_numbers<[1], [0], [0], [1], [0, 0, 1, 1], [], []>} : vector<34x34xf32>, vector<34x8xf32>, vector<34x8xf32> -> vector<34x8xf32>
    %54 = vector.extract_strided_slice %8 {offsets = [0, 24], sizes = [34, 8], strides = [1, 1]} : vector<34x96xf32> to vector<34x8xf32>
    %55 = vector.extract_strided_slice %8 {offsets = [0, 56], sizes = [34, 8], strides = [1, 1]} : vector<34x96xf32> to vector<34x8xf32>
    %56 = vector.extract_strided_slice %8 {offsets = [0, 88], sizes = [34, 8], strides = [1, 1]} : vector<34x96xf32> to vector<34x8xf32>
    %cst_23 = arith.constant dense<0.000000e+00> : vector<34x34xf32>
    %57 = tpu.matmul %54, %55, %cst_23 {dimension_numbers = #tpu.dot_dimension_numbers<[1], [1], [0], [0], [0, 0, 1, 0], [], []>} : vector<34x8xf32>, vector<34x8xf32>, vector<34x34xf32> -> vector<34x34xf32>
    %58 = arith.addf %57, %5 : vector<34x34xf32>
    %cst_24 = arith.constant dense<0xFF800000> : vector<34xf32>
    %59 = vector.multi_reduction <maximumf>, %58, %cst_24 [1] : vector<34x34xf32> to vector<34xf32>
    %60 = vector.shape_cast %59 : vector<34xf32> to vector<34x1xf32>
    %61 = vector.broadcast %60 : vector<34x1xf32> to vector<34x34xf32>
    %62 = arith.subf %58, %61 : vector<34x34xf32>
    %63 = math.exp %62 : vector<34x34xf32>
    %cst_25 = arith.constant dense<0.000000e+00> : vector<34xf32>
    %64 = vector.multi_reduction <add>, %63, %cst_25 [1] : vector<34x34xf32> to vector<34xf32>
    %65 = vector.shape_cast %64 : vector<34xf32> to vector<34x1xf32>
    %66 = vector.broadcast %65 : vector<34x1xf32> to vector<34x34xf32>
    %67 = arith.divf %63, %66 : vector<34x34xf32>
    %cst_26 = arith.constant dense<0.000000e+00> : vector<34x8xf32>
    %68 = tpu.matmul %67, %56, %cst_26 {dimension_numbers = #tpu.dot_dimension_numbers<[1], [0], [0], [1], [0, 0, 1, 1], [], []>} : vector<34x34xf32>, vector<34x8xf32>, vector<34x8xf32> -> vector<34x8xf32>
    %69 = tpu.concatenate %23, %38, %53, %68 in 1 : vector<34x8xf32>, vector<34x8xf32>, vector<34x8xf32>, vector<34x8xf32> -> vector<34x32xf32>
    %c0_27 = arith.constant 0 : index
    %c0_28 = arith.constant 0 : index
    %c0_29 = arith.constant 0 : index
    %70 = vector.load %arg6[%c0_27, %c0_28, %c0_29] : memref<2x32x32xf32, #tpu.memory_space<vmem>>, vector<1x32x32xf32>
    %71 = vector.shape_cast %70 : vector<1x32x32xf32> to vector<32x32xf32>
    %cst_30 = arith.constant dense<0.000000e+00> : vector<34x32xf32>
    %72 = tpu.matmul %69, %71, %cst_30 {dimension_numbers = #tpu.dot_dimension_numbers<[1], [0], [0], [1], [0, 0, 1, 1], [], []>} : vector<34x32xf32>, vector<32x32xf32>, vector<34x32xf32> -> vector<34x32xf32>
    %73 = arith.addf %4, %72 : vector<34x32xf32>
    %c0_31 = arith.constant 0 : index
    %c0_32 = arith.constant 0 : index
    %c0_33 = arith.constant 0 : index
    %74 = vector.load %arg7[%c0_31, %c0_32, %c0_33] : memref<2x1x32xf32, #tpu.memory_space<vmem>>, vector<1x1x32xf32>
    %75 = vector.shape_cast %74 : vector<1x1x32xf32> to vector<1x32xf32>
    %c0_34 = arith.constant 0 : index
    %c0_35 = arith.constant 0 : index
    %c0_36 = arith.constant 0 : index
    %76 = vector.load %arg8[%c0_34, %c0_35, %c0_36] : memref<2x1x32xf32, #tpu.memory_space<vmem>>, vector<1x1x32xf32>
    %77 = vector.shape_cast %76 : vector<1x1x32xf32> to vector<1x32xf32>
    %cst_37 = arith.constant dense<0.000000e+00> : vector<34xf32>
    %78 = vector.multi_reduction <add>, %73, %cst_37 [1] : vector<34x32xf32> to vector<34xf32>
    %79 = vector.shape_cast %78 : vector<34xf32> to vector<34x1xf32>
    %cst_38 = arith.constant 3.200000e+01 : f32
    %80 = vector.broadcast %cst_38 : f32 to vector<34x1xf32>
    %81 = arith.divf %79, %80 : vector<34x1xf32>
    %82 = vector.broadcast %81 : vector<34x1xf32> to vector<34x32xf32>
    %83 = arith.subf %73, %82 : vector<34x32xf32>
    %84 = arith.mulf %83, %83 : vector<34x32xf32>
    %cst_39 = arith.constant dense<0.000000e+00> : vector<34xf32>
    %85 = vector.multi_reduction <add>, %84, %cst_39 [1] : vector<34x32xf32> to vector<34xf32>
    %86 = vector.shape_cast %85 : vector<34xf32> to vector<34x1xf32>
    %cst_40 = arith.constant 3.200000e+01 : f32
    %87 = vector.broadcast %cst_40 : f32 to vector<34x1xf32>
    %88 = arith.divf %86, %87 : vector<34x1xf32>
    %89 = vector.broadcast %81 : vector<34x1xf32> to vector<34x32xf32>
    %90 = arith.subf %73, %89 : vector<34x32xf32>
    %cst_41 = arith.constant 9.99999974E-6 : f32
    %91 = vector.broadcast %cst_41 : f32 to vector<34x1xf32>
    %92 = arith.addf %88, %91 : vector<34x1xf32>
    %93 = math.rsqrt %92 : vector<34x1xf32>
    %94 = vector.broadcast %93 : vector<34x1xf32> to vector<34x32xf32>
    %95 = arith.mulf %90, %94 : vector<34x32xf32>
    %96 = vector.broadcast %75 : vector<1x32xf32> to vector<34x32xf32>
    %97 = arith.mulf %95, %96 : vector<34x32xf32>
    %98 = vector.broadcast %77 : vector<1x32xf32> to vector<34x32xf32>
    %99 = arith.addf %97, %98 : vector<34x32xf32>
    %c0_42 = arith.constant 0 : index
    %c0_43 = arith.constant 0 : index
    %c0_44 = arith.constant 0 : index
    %100 = vector.load %arg9[%c0_42, %c0_43, %c0_44] : memref<2x32x64xf32, #tpu.memory_space<vmem>>, vector<1x32x64xf32>
    %101 = vector.shape_cast %100 : vector<1x32x64xf32> to vector<32x64xf32>
    %cst_45 = arith.constant dense<0.000000e+00> : vector<34x64xf32>
    %102 = tpu.matmul %99, %101, %cst_45 {dimension_numbers = #tpu.dot_dimension_numbers<[1], [0], [0], [1], [0, 0, 1, 1], [], []>} : vector<34x32xf32>, vector<32x64xf32>, vector<34x64xf32> -> vector<34x64xf32>
    %c0_46 = arith.constant 0 : index
    %c0_47 = arith.constant 0 : index
    %c0_48 = arith.constant 0 : index
    %103 = vector.load %arg10[%c0_46, %c0_47, %c0_48] : memref<2x1x64xf32, #tpu.memory_space<vmem>>, vector<1x1x64xf32>
    %104 = vector.shape_cast %103 : vector<1x1x64xf32> to vector<1x64xf32>
    %105 = vector.broadcast %104 : vector<1x64xf32> to vector<34x64xf32>
    %106 = arith.addf %102, %105 : vector<34x64xf32>
    %cst_49 = arith.constant 5.000000e-01 : f32
    %107 = vector.broadcast %cst_49 : f32 to vector<34x64xf32>
    %108 = arith.mulf %107, %106 : vector<34x64xf32>
    %cst_50 = arith.constant 0.707106769 : f32
    %109 = vector.broadcast %cst_50 : f32 to vector<34x64xf32>
    %110 = arith.mulf %106, %109 : vector<34x64xf32>
    %111 = math.erf %110 : vector<34x64xf32>
    %cst_51 = arith.constant 1.000000e+00 : f32
    %112 = vector.broadcast %cst_51 : f32 to vector<34x64xf32>
    %113 = arith.addf %112, %111 : vector<34x64xf32>
    %114 = arith.mulf %108, %113 : vector<34x64xf32>
    %c0_52 = arith.constant 0 : index
    %c0_53 = arith.constant 0 : index
    %c0_54 = arith.constant 0 : index
    %115 = vector.load %arg11[%c0_52, %c0_53, %c0_54] : memref<2x64x32xf32, #tpu.memory_space<vmem>>, vector<1x64x32xf32>
    %116 = vector.shape_cast %115 : vector<1x64x32xf32> to vector<64x32xf32>
    %cst_55 = arith.constant dense<0.000000e+00> : vector<34x32xf32>
    %117 = tpu.matmul %114, %116, %cst_55 {dimension_numbers = #tpu.dot_dimension_numbers<[1], [0], [0], [1], [0, 0, 1, 1], [], []>} : vector<34x64xf32>, vector<64x32xf32>, vector<34x32xf32> -> vector<34x32xf32>
    %c0_56 = arith.constant 0 : index
    %c0_57 = arith.constant 0 : index
    %c0_58 = arith.constant 0 : index
    %118 = vector.load %arg12[%c0_56, %c0_57, %c0_58] : memref<2x1x32xf32, #tpu.memory_space<vmem>>, vector<1x1x32xf32>
    %119 = vector.shape_cast %118 : vector<1x1x32xf32> to vector<1x32xf32>
    %120 = vector.broadcast %119 : vector<1x32xf32> to vector<34x32xf32>
    %121 = arith.addf %117, %120 : vector<34x32xf32>
    %122 = arith.addf %99, %121 : vector<34x32xf32>
    %c0_59 = arith.constant 0 : index
    %c0_60 = arith.constant 0 : index
    %c0_61 = arith.constant 0 : index
    %123 = vector.load %arg13[%c0_59, %c0_60, %c0_61] : memref<2x1x32xf32, #tpu.memory_space<vmem>>, vector<1x1x32xf32>
    %124 = vector.shape_cast %123 : vector<1x1x32xf32> to vector<1x32xf32>
    %c0_62 = arith.constant 0 : index
    %c0_63 = arith.constant 0 : index
    %c0_64 = arith.constant 0 : index
    %125 = vector.load %arg14[%c0_62, %c0_63, %c0_64] : memref<2x1x32xf32, #tpu.memory_space<vmem>>, vector<1x1x32xf32>
    %126 = vector.shape_cast %125 : vector<1x1x32xf32> to vector<1x32xf32>
    %cst_65 = arith.constant dense<0.000000e+00> : vector<34xf32>
    %127 = vector.multi_reduction <add>, %122, %cst_65 [1] : vector<34x32xf32> to vector<34xf32>
    %128 = vector.shape_cast %127 : vector<34xf32> to vector<34x1xf32>
    %cst_66 = arith.constant 3.200000e+01 : f32
    %129 = vector.broadcast %cst_66 : f32 to vector<34x1xf32>
    %130 = arith.divf %128, %129 : vector<34x1xf32>
    %131 = vector.broadcast %130 : vector<34x1xf32> to vector<34x32xf32>
    %132 = arith.subf %122, %131 : vector<34x32xf32>
    %133 = arith.mulf %132, %132 : vector<34x32xf32>
    %cst_67 = arith.constant dense<0.000000e+00> : vector<34xf32>
    %134 = vector.multi_reduction <add>, %133, %cst_67 [1] : vector<34x32xf32> to vector<34xf32>
    %135 = vector.shape_cast %134 : vector<34xf32> to vector<34x1xf32>
    %cst_68 = arith.constant 3.200000e+01 : f32
    %136 = vector.broadcast %cst_68 : f32 to vector<34x1xf32>
    %137 = arith.divf %135, %136 : vector<34x1xf32>
    %138 = vector.broadcast %130 : vector<34x1xf32> to vector<34x32xf32>
    %139 = arith.subf %122, %138 : vector<34x32xf32>
    %cst_69 = arith.constant 9.99999974E-6 : f32
    %140 = vector.broadcast %cst_69 : f32 to vector<34x1xf32>
    %141 = arith.addf %137, %140 : vector<34x1xf32>
    %142 = math.rsqrt %141 : vector<34x1xf32>
    %143 = vector.broadcast %142 : vector<34x1xf32> to vector<34x32xf32>
    %144 = arith.mulf %139, %143 : vector<34x32xf32>
    %145 = vector.broadcast %124 : vector<1x32xf32> to vector<34x32xf32>
    %146 = arith.mulf %144, %145 : vector<34x32xf32>
    %147 = vector.broadcast %126 : vector<1x32xf32> to vector<34x32xf32>
    %148 = arith.addf %146, %147 : vector<34x32xf32>
    %c1 = arith.constant 1 : index
    %c0_70 = arith.constant 0 : index
    %c0_71 = arith.constant 0 : index
    %149 = vector.load %arg5[%c1, %c0_70, %c0_71] : memref<2x32x96xf32, #tpu.memory_space<vmem>>, vector<1x32x96xf32>
    %150 = vector.shape_cast %149 : vector<1x32x96xf32> to vector<32x96xf32>
    %cst_72 = arith.constant dense<0.000000e+00> : vector<34x96xf32>
    %151 = tpu.matmul %148, %150, %cst_72 {dimension_numbers = #tpu.dot_dimension_numbers<[1], [0], [0], [1], [0, 0, 1, 1], [], []>} : vector<34x32xf32>, vector<32x96xf32>, vector<34x96xf32> -> vector<34x96xf32>
    %152 = vector.extract_strided_slice %151 {offsets = [0, 0], sizes = [34, 8], strides = [1, 1]} : vector<34x96xf32> to vector<34x8xf32>
    %153 = vector.extract_strided_slice %151 {offsets = [0, 32], sizes = [34, 8], strides = [1, 1]} : vector<34x96xf32> to vector<34x8xf32>
    %154 = vector.extract_strided_slice %151 {offsets = [0, 64], sizes = [34, 8], strides = [1, 1]} : vector<34x96xf32> to vector<34x8xf32>
    %cst_73 = arith.constant dense<0.000000e+00> : vector<34x34xf32>
    %155 = tpu.matmul %152, %153, %cst_73 {dimension_numbers = #tpu.dot_dimension_numbers<[1], [1], [0], [0], [0, 0, 1, 0], [], []>} : vector<34x8xf32>, vector<34x8xf32>, vector<34x34xf32> -> vector<34x34xf32>
    %156 = arith.addf %155, %5 : vector<34x34xf32>
    %cst_74 = arith.constant dense<0xFF800000> : vector<34xf32>
    %157 = vector.multi_reduction <maximumf>, %156, %cst_74 [1] : vector<34x34xf32> to vector<34xf32>
    %158 = vector.shape_cast %157 : vector<34xf32> to vector<34x1xf32>
    %159 = vector.broadcast %158 : vector<34x1xf32> to vector<34x34xf32>
    %160 = arith.subf %156, %159 : vector<34x34xf32>
    %161 = math.exp %160 : vector<34x34xf32>
    %cst_75 = arith.constant dense<0.000000e+00> : vector<34xf32>
    %162 = vector.multi_reduction <add>, %161, %cst_75 [1] : vector<34x34xf32> to vector<34xf32>
    %163 = vector.shape_cast %162 : vector<34xf32> to vector<34x1xf32>
    %164 = vector.broadcast %163 : vector<34x1xf32> to vector<34x34xf32>
    %165 = arith.divf %161, %164 : vector<34x34xf32>
    %cst_76 = arith.constant dense<0.000000e+00> : vector<34x8xf32>
    %166 = tpu.matmul %165, %154, %cst_76 {dimension_numbers = #tpu.dot_dimension_numbers<[1], [0], [0], [1], [0, 0, 1, 1], [], []>} : vector<34x34xf32>, vector<34x8xf32>, vector<34x8xf32> -> vector<34x8xf32>
    %167 = vector.extract_strided_slice %151 {offsets = [0, 8], sizes = [34, 8], strides = [1, 1]} : vector<34x96xf32> to vector<34x8xf32>
    %168 = vector.extract_strided_slice %151 {offsets = [0, 40], sizes = [34, 8], strides = [1, 1]} : vector<34x96xf32> to vector<34x8xf32>
    %169 = vector.extract_strided_slice %151 {offsets = [0, 72], sizes = [34, 8], strides = [1, 1]} : vector<34x96xf32> to vector<34x8xf32>
    %cst_77 = arith.constant dense<0.000000e+00> : vector<34x34xf32>
    %170 = tpu.matmul %167, %168, %cst_77 {dimension_numbers = #tpu.dot_dimension_numbers<[1], [1], [0], [0], [0, 0, 1, 0], [], []>} : vector<34x8xf32>, vector<34x8xf32>, vector<34x34xf32> -> vector<34x34xf32>
    %171 = arith.addf %170, %5 : vector<34x34xf32>
    %cst_78 = arith.constant dense<0xFF800000> : vector<34xf32>
    %172 = vector.multi_reduction <maximumf>, %171, %cst_78 [1] : vector<34x34xf32> to vector<34xf32>
    %173 = vector.shape_cast %172 : vector<34xf32> to vector<34x1xf32>
    %174 = vector.broadcast %173 : vector<34x1xf32> to vector<34x34xf32>
    %175 = arith.subf %171, %174 : vector<34x34xf32>
    %176 = math.exp %175 : vector<34x34xf32>
    %cst_79 = arith.constant dense<0.000000e+00> : vector<34xf32>
    %177 = vector.multi_reduction <add>, %176, %cst_79 [1] : vector<34x34xf32> to vector<34xf32>
    %178 = vector.shape_cast %177 : vector<34xf32> to vector<34x1xf32>
    %179 = vector.broadcast %178 : vector<34x1xf32> to vector<34x34xf32>
    %180 = arith.divf %176, %179 : vector<34x34xf32>
    %cst_80 = arith.constant dense<0.000000e+00> : vector<34x8xf32>
    %181 = tpu.matmul %180, %169, %cst_80 {dimension_numbers = #tpu.dot_dimension_numbers<[1], [0], [0], [1], [0, 0, 1, 1], [], []>} : vector<34x34xf32>, vector<34x8xf32>, vector<34x8xf32> -> vector<34x8xf32>
    %182 = vector.extract_strided_slice %151 {offsets = [0, 16], sizes = [34, 8], strides = [1, 1]} : vector<34x96xf32> to vector<34x8xf32>
    %183 = vector.extract_strided_slice %151 {offsets = [0, 48], sizes = [34, 8], strides = [1, 1]} : vector<34x96xf32> to vector<34x8xf32>
    %184 = vector.extract_strided_slice %151 {offsets = [0, 80], sizes = [34, 8], strides = [1, 1]} : vector<34x96xf32> to vector<34x8xf32>
    %cst_81 = arith.constant dense<0.000000e+00> : vector<34x34xf32>
    %185 = tpu.matmul %182, %183, %cst_81 {dimension_numbers = #tpu.dot_dimension_numbers<[1], [1], [0], [0], [0, 0, 1, 0], [], []>} : vector<34x8xf32>, vector<34x8xf32>, vector<34x34xf32> -> vector<34x34xf32>
    %186 = arith.addf %185, %5 : vector<34x34xf32>
    %cst_82 = arith.constant dense<0xFF800000> : vector<34xf32>
    %187 = vector.multi_reduction <maximumf>, %186, %cst_82 [1] : vector<34x34xf32> to vector<34xf32>
    %188 = vector.shape_cast %187 : vector<34xf32> to vector<34x1xf32>
    %189 = vector.broadcast %188 : vector<34x1xf32> to vector<34x34xf32>
    %190 = arith.subf %186, %189 : vector<34x34xf32>
    %191 = math.exp %190 : vector<34x34xf32>
    %cst_83 = arith.constant dense<0.000000e+00> : vector<34xf32>
    %192 = vector.multi_reduction <add>, %191, %cst_83 [1] : vector<34x34xf32> to vector<34xf32>
    %193 = vector.shape_cast %192 : vector<34xf32> to vector<34x1xf32>
    %194 = vector.broadcast %193 : vector<34x1xf32> to vector<34x34xf32>
    %195 = arith.divf %191, %194 : vector<34x34xf32>
    %cst_84 = arith.constant dense<0.000000e+00> : vector<34x8xf32>
    %196 = tpu.matmul %195, %184, %cst_84 {dimension_numbers = #tpu.dot_dimension_numbers<[1], [0], [0], [1], [0, 0, 1, 1], [], []>} : vector<34x34xf32>, vector<34x8xf32>, vector<34x8xf32> -> vector<34x8xf32>
    %197 = vector.extract_strided_slice %151 {offsets = [0, 24], sizes = [34, 8], strides = [1, 1]} : vector<34x96xf32> to vector<34x8xf32>
    %198 = vector.extract_strided_slice %151 {offsets = [0, 56], sizes = [34, 8], strides = [1, 1]} : vector<34x96xf32> to vector<34x8xf32>
    %199 = vector.extract_strided_slice %151 {offsets = [0, 88], sizes = [34, 8], strides = [1, 1]} : vector<34x96xf32> to vector<34x8xf32>
    %cst_85 = arith.constant dense<0.000000e+00> : vector<34x34xf32>
    %200 = tpu.matmul %197, %198, %cst_85 {dimension_numbers = #tpu.dot_dimension_numbers<[1], [1], [0], [0], [0, 0, 1, 0], [], []>} : vector<34x8xf32>, vector<34x8xf32>, vector<34x34xf32> -> vector<34x34xf32>
    %201 = arith.addf %200, %5 : vector<34x34xf32>
    %cst_86 = arith.constant dense<0xFF800000> : vector<34xf32>
    %202 = vector.multi_reduction <maximumf>, %201, %cst_86 [1] : vector<34x34xf32> to vector<34xf32>
    %203 = vector.shape_cast %202 : vector<34xf32> to vector<34x1xf32>
    %204 = vector.broadcast %203 : vector<34x1xf32> to vector<34x34xf32>
    %205 = arith.subf %201, %204 : vector<34x34xf32>
    %206 = math.exp %205 : vector<34x34xf32>
    %cst_87 = arith.constant dense<0.000000e+00> : vector<34xf32>
    %207 = vector.multi_reduction <add>, %206, %cst_87 [1] : vector<34x34xf32> to vector<34xf32>
    %208 = vector.shape_cast %207 : vector<34xf32> to vector<34x1xf32>
    %209 = vector.broadcast %208 : vector<34x1xf32> to vector<34x34xf32>
    %210 = arith.divf %206, %209 : vector<34x34xf32>
    %cst_88 = arith.constant dense<0.000000e+00> : vector<34x8xf32>
    %211 = tpu.matmul %210, %199, %cst_88 {dimension_numbers = #tpu.dot_dimension_numbers<[1], [0], [0], [1], [0, 0, 1, 1], [], []>} : vector<34x34xf32>, vector<34x8xf32>, vector<34x8xf32> -> vector<34x8xf32>
    %212 = tpu.concatenate %166, %181, %196, %211 in 1 : vector<34x8xf32>, vector<34x8xf32>, vector<34x8xf32>, vector<34x8xf32> -> vector<34x32xf32>
    %c1_89 = arith.constant 1 : index
    %c0_90 = arith.constant 0 : index
    %c0_91 = arith.constant 0 : index
    %213 = vector.load %arg6[%c1_89, %c0_90, %c0_91] : memref<2x32x32xf32, #tpu.memory_space<vmem>>, vector<1x32x32xf32>
    %214 = vector.shape_cast %213 : vector<1x32x32xf32> to vector<32x32xf32>
    %cst_92 = arith.constant dense<0.000000e+00> : vector<34x32xf32>
    %215 = tpu.matmul %212, %214, %cst_92 {dimension_numbers = #tpu.dot_dimension_numbers<[1], [0], [0], [1], [0, 0, 1, 1], [], []>} : vector<34x32xf32>, vector<32x32xf32>, vector<34x32xf32> -> vector<34x32xf32>
    %216 = arith.addf %148, %215 : vector<34x32xf32>
    %c1_93 = arith.constant 1 : index
    %c0_94 = arith.constant 0 : index
    %c0_95 = arith.constant 0 : index
    %217 = vector.load %arg7[%c1_93, %c0_94, %c0_95] : memref<2x1x32xf32, #tpu.memory_space<vmem>>, vector<1x1x32xf32>
    %218 = vector.shape_cast %217 : vector<1x1x32xf32> to vector<1x32xf32>
    %c1_96 = arith.constant 1 : index
    %c0_97 = arith.constant 0 : index
    %c0_98 = arith.constant 0 : index
    %219 = vector.load %arg8[%c1_96, %c0_97, %c0_98] : memref<2x1x32xf32, #tpu.memory_space<vmem>>, vector<1x1x32xf32>
    %220 = vector.shape_cast %219 : vector<1x1x32xf32> to vector<1x32xf32>
    %cst_99 = arith.constant dense<0.000000e+00> : vector<34xf32>
    %221 = vector.multi_reduction <add>, %216, %cst_99 [1] : vector<34x32xf32> to vector<34xf32>
    %222 = vector.shape_cast %221 : vector<34xf32> to vector<34x1xf32>
    %cst_100 = arith.constant 3.200000e+01 : f32
    %223 = vector.broadcast %cst_100 : f32 to vector<34x1xf32>
    %224 = arith.divf %222, %223 : vector<34x1xf32>
    %225 = vector.broadcast %224 : vector<34x1xf32> to vector<34x32xf32>
    %226 = arith.subf %216, %225 : vector<34x32xf32>
    %227 = arith.mulf %226, %226 : vector<34x32xf32>
    %cst_101 = arith.constant dense<0.000000e+00> : vector<34xf32>
    %228 = vector.multi_reduction <add>, %227, %cst_101 [1] : vector<34x32xf32> to vector<34xf32>
    %229 = vector.shape_cast %228 : vector<34xf32> to vector<34x1xf32>
    %cst_102 = arith.constant 3.200000e+01 : f32
    %230 = vector.broadcast %cst_102 : f32 to vector<34x1xf32>
    %231 = arith.divf %229, %230 : vector<34x1xf32>
    %232 = vector.broadcast %224 : vector<34x1xf32> to vector<34x32xf32>
    %233 = arith.subf %216, %232 : vector<34x32xf32>
    %cst_103 = arith.constant 9.99999974E-6 : f32
    %234 = vector.broadcast %cst_103 : f32 to vector<34x1xf32>
    %235 = arith.addf %231, %234 : vector<34x1xf32>
    %236 = math.rsqrt %235 : vector<34x1xf32>
    %237 = vector.broadcast %236 : vector<34x1xf32> to vector<34x32xf32>
    %238 = arith.mulf %233, %237 : vector<34x32xf32>
    %239 = vector.broadcast %218 : vector<1x32xf32> to vector<34x32xf32>
    %240 = arith.mulf %238, %239 : vector<34x32xf32>
    %241 = vector.broadcast %220 : vector<1x32xf32> to vector<34x32xf32>
    %242 = arith.addf %240, %241 : vector<34x32xf32>
    %c1_104 = arith.constant 1 : index
    %c0_105 = arith.constant 0 : index
    %c0_106 = arith.constant 0 : index
    %243 = vector.load %arg9[%c1_104, %c0_105, %c0_106] : memref<2x32x64xf32, #tpu.memory_space<vmem>>, vector<1x32x64xf32>
    %244 = vector.shape_cast %243 : vector<1x32x64xf32> to vector<32x64xf32>
    %cst_107 = arith.constant dense<0.000000e+00> : vector<34x64xf32>
    %245 = tpu.matmul %242, %244, %cst_107 {dimension_numbers = #tpu.dot_dimension_numbers<[1], [0], [0], [1], [0, 0, 1, 1], [], []>} : vector<34x32xf32>, vector<32x64xf32>, vector<34x64xf32> -> vector<34x64xf32>
    %c1_108 = arith.constant 1 : index
    %c0_109 = arith.constant 0 : index
    %c0_110 = arith.constant 0 : index
    %246 = vector.load %arg10[%c1_108, %c0_109, %c0_110] : memref<2x1x64xf32, #tpu.memory_space<vmem>>, vector<1x1x64xf32>
    %247 = vector.shape_cast %246 : vector<1x1x64xf32> to vector<1x64xf32>
    %248 = vector.broadcast %247 : vector<1x64xf32> to vector<34x64xf32>
    %249 = arith.addf %245, %248 : vector<34x64xf32>
    %cst_111 = arith.constant 5.000000e-01 : f32
    %250 = vector.broadcast %cst_111 : f32 to vector<34x64xf32>
    %251 = arith.mulf %250, %249 : vector<34x64xf32>
    %cst_112 = arith.constant 0.707106769 : f32
    %252 = vector.broadcast %cst_112 : f32 to vector<34x64xf32>
    %253 = arith.mulf %249, %252 : vector<34x64xf32>
    %254 = math.erf %253 : vector<34x64xf32>
    %cst_113 = arith.constant 1.000000e+00 : f32
    %255 = vector.broadcast %cst_113 : f32 to vector<34x64xf32>
    %256 = arith.addf %255, %254 : vector<34x64xf32>
    %257 = arith.mulf %251, %256 : vector<34x64xf32>
    %c1_114 = arith.constant 1 : index
    %c0_115 = arith.constant 0 : index
    %c0_116 = arith.constant 0 : index
    %258 = vector.load %arg11[%c1_114, %c0_115, %c0_116] : memref<2x64x32xf32, #tpu.memory_space<vmem>>, vector<1x64x32xf32>
    %259 = vector.shape_cast %258 : vector<1x64x32xf32> to vector<64x32xf32>
    %cst_117 = arith.constant dense<0.000000e+00> : vector<34x32xf32>
    %260 = tpu.matmul %257, %259, %cst_117 {dimension_numbers = #tpu.dot_dimension_numbers<[1], [0], [0], [1], [0, 0, 1, 1], [], []>} : vector<34x64xf32>, vector<64x32xf32>, vector<34x32xf32> -> vector<34x32xf32>
    %c1_118 = arith.constant 1 : index
    %c0_119 = arith.constant 0 : index
    %c0_120 = arith.constant 0 : index
    %261 = vector.load %arg12[%c1_118, %c0_119, %c0_120] : memref<2x1x32xf32, #tpu.memory_space<vmem>>, vector<1x1x32xf32>
    %262 = vector.shape_cast %261 : vector<1x1x32xf32> to vector<1x32xf32>
    %263 = vector.broadcast %262 : vector<1x32xf32> to vector<34x32xf32>
    %264 = arith.addf %260, %263 : vector<34x32xf32>
    %265 = arith.addf %242, %264 : vector<34x32xf32>
    %c1_121 = arith.constant 1 : index
    %c0_122 = arith.constant 0 : index
    %c0_123 = arith.constant 0 : index
    %266 = vector.load %arg13[%c1_121, %c0_122, %c0_123] : memref<2x1x32xf32, #tpu.memory_space<vmem>>, vector<1x1x32xf32>
    %267 = vector.shape_cast %266 : vector<1x1x32xf32> to vector<1x32xf32>
    %c1_124 = arith.constant 1 : index
    %c0_125 = arith.constant 0 : index
    %c0_126 = arith.constant 0 : index
    %268 = vector.load %arg14[%c1_124, %c0_125, %c0_126] : memref<2x1x32xf32, #tpu.memory_space<vmem>>, vector<1x1x32xf32>
    %269 = vector.shape_cast %268 : vector<1x1x32xf32> to vector<1x32xf32>
    %cst_127 = arith.constant dense<0.000000e+00> : vector<34xf32>
    %270 = vector.multi_reduction <add>, %265, %cst_127 [1] : vector<34x32xf32> to vector<34xf32>
    %271 = vector.shape_cast %270 : vector<34xf32> to vector<34x1xf32>
    %cst_128 = arith.constant 3.200000e+01 : f32
    %272 = vector.broadcast %cst_128 : f32 to vector<34x1xf32>
    %273 = arith.divf %271, %272 : vector<34x1xf32>
    %274 = vector.broadcast %273 : vector<34x1xf32> to vector<34x32xf32>
    %275 = arith.subf %265, %274 : vector<34x32xf32>
    %276 = arith.mulf %275, %275 : vector<34x32xf32>
    %cst_129 = arith.constant dense<0.000000e+00> : vector<34xf32>
    %277 = vector.multi_reduction <add>, %276, %cst_129 [1] : vector<34x32xf32> to vector<34xf32>
    %278 = vector.shape_cast %277 : vector<34xf32> to vector<34x1xf32>
    %cst_130 = arith.constant 3.200000e+01 : f32
    %279 = vector.broadcast %cst_130 : f32 to vector<34x1xf32>
    %280 = arith.divf %278, %279 : vector<34x1xf32>
    %281 = vector.broadcast %273 : vector<34x1xf32> to vector<34x32xf32>
    %282 = arith.subf %265, %281 : vector<34x32xf32>
    %cst_131 = arith.constant 9.99999974E-6 : f32
    %283 = vector.broadcast %cst_131 : f32 to vector<34x1xf32>
    %284 = arith.addf %280, %283 : vector<34x1xf32>
    %285 = math.rsqrt %284 : vector<34x1xf32>
    %286 = vector.broadcast %285 : vector<34x1xf32> to vector<34x32xf32>
    %287 = arith.mulf %282, %286 : vector<34x32xf32>
    %288 = vector.broadcast %267 : vector<1x32xf32> to vector<34x32xf32>
    %289 = arith.mulf %287, %288 : vector<34x32xf32>
    %290 = vector.broadcast %269 : vector<1x32xf32> to vector<34x32xf32>
    %291 = arith.addf %289, %290 : vector<34x32xf32>
    %c0_132 = arith.constant 0 : index
    %c0_133 = arith.constant 0 : index
    %292 = vector.load %arg2[%c0_132, %c0_133] : memref<2x34xf32, #tpu.memory_space<vmem>>, vector<2x34xf32>
    %cst_134 = arith.constant dense<0.000000e+00> : vector<2x32xf32>
    %293 = tpu.matmul %292, %291, %cst_134 {dimension_numbers = #tpu.dot_dimension_numbers<[1], [0], [0], [1], [0, 0, 1, 1], [], []>} : vector<2x34xf32>, vector<34x32xf32>, vector<2x32xf32> -> vector<2x32xf32>
    %c0_135 = arith.constant 0 : index
    %c0_136 = arith.constant 0 : index
    %294 = vector.load %arg15[%c0_135, %c0_136] : memref<32x10xf32, #tpu.memory_space<vmem>>, vector<32x10xf32>
    %cst_137 = arith.constant dense<0.000000e+00> : vector<2x10xf32>
    %295 = tpu.matmul %293, %294, %cst_137 {dimension_numbers = #tpu.dot_dimension_numbers<[1], [0], [0], [1], [0, 0, 1, 1], [], []>} : vector<2x32xf32>, vector<32x10xf32>, vector<2x10xf32> -> vector<2x10xf32>
    %c0_138 = arith.constant 0 : index
    %c0_139 = arith.constant 0 : index
    %296 = vector.load %arg16[%c0_138, %c0_139] : memref<1x10xf32, #tpu.memory_space<vmem>>, vector<1x10xf32>
    %297 = vector.broadcast %296 : vector<1x10xf32> to vector<2x10xf32>
    %298 = arith.addf %295, %297 : vector<2x10xf32>
    %c0_140 = arith.constant 0 : index
    %c0_141 = arith.constant 0 : index
    %299 = vector.load %arg17[%c0_140, %c0_141] : memref<2x10xf32, #tpu.memory_space<vmem>>, vector<2x10xf32>
    tpu.vector_store %arg17[%c0_140, %c0_141], %298 {strides = array<i32>} : memref<2x10xf32, #tpu.memory_space<vmem>>, vector<2x10xf32>,
    return
  }
}

</mosaic_0001>

<llo_original>
// kernel: tile.7
$region0: #{tile.7}
  %s0 = inlined_call_operand.vmem [shape: f32[2,17,32], index: 0, kind: input, shape index: {}]
  %s1 = inlined_call_operand.vmem [shape: f32[34,32], index: 1, kind: output, shape index: {}]
  %v2 = vld [vmem:[%s0] sm:$0xff]
  %vm3 = vcmask 261120
  %4 = vst.msk [vmem:[%s1] sm:$0xff] %vm3, %v2
  %s5 = scalar_lea.vmem %s0, 8
  %v6 = vld [vmem:[%s5] sm:$0xff]
  %vm7 = vcmask 261120
  %s8 = scalar_lea.vmem %s1, 8
  %9 = vst.msk [vmem:[%s8] sm:$0xff] %vm7, %v6
  %s10 = scalar_lea.vmem %s0, 16
  %s11 = smov 3
  %v12 = vld [vmem:[%s10] ss:$8 sm:%s11]
  %vm13 = vcmask 261120
  %s14 = scalar_lea.vmem %s1, 16
  %15 = vst.msk [vmem:[%s14] sm:$0x3] %vm13, %v12
  %s16 = scalar_lea.vmem %s0, 25
  %v17 = vld [vmem:[%s16] sm:$0xff]
  %vm18 = vcmask 261120
  %s19 = scalar_lea.vmem %s1, 18
  %20 = vst.msk [vmem:[%s19] sm:$0xff] %vm18, %v17
  %s21 = scalar_lea.vmem %s0, 33
  %v22 = vld [vmem:[%s21] sm:$0xff]
  %vm23 = vcmask 261120
  %s24 = scalar_lea.vmem %s1, 26
  %25 = vst.msk [vmem:[%s24] sm:$0xff] %vm23, %v22

// kernel: _lambda_.1
$region0: #{_lambda_.1}
  #allocation0 [shape = 'u32[]', space=smem, size = 0x4, offset = 0x4, fixed_abs, tag = 'smem constant byte address 0x4 - core index']
  #allocation1 [shape = 'u32[72,128]{1,0:T(1,128)}', space=vmem, size = 0x9000, scoped, tag = 'internal scratch']
  %s0 = inlined_call_operand.vmem [shape: f32[34,64], index: 0, kind: input, shape index: {}]
  %s1 = inlined_call_operand.vmem [shape: f32[34,34], index: 1, kind: input, shape index: {}]
  %s2 = inlined_call_operand.vmem [shape: f32[2,34], index: 2, kind: input, shape index: {}]
  %s3 = inlined_call_operand.vmem [shape: f32[64,32], index: 3, kind: input, shape index: {}]
  %s4 = inlined_call_operand.vmem [shape: f32[34,32], index: 4, kind: input, shape index: {}]
  %s5 = inlined_call_operand.vmem [shape: f32[2,32,96], index: 5, kind: input, shape index: {}]
  %s6 = inlined_call_operand.vmem [shape: f32[2,32,32], index: 6, kind: input, shape index: {}]
  %s7 = inlined_call_operand.vmem [shape: f32[2,1,32], index: 7, kind: input, shape index: {}, may-alias: {7,13}]
  %s8 = inlined_call_operand.vmem [shape: f32[2,1,32], index: 8, kind: input, shape index: {}, may-alias: {8,14}]
  %s9 = inlined_call_operand.vmem [shape: f32[2,32,64], index: 9, kind: input, shape index: {}]
  %s10 = inlined_call_operand.vmem [shape: f32[2,1,64], index: 10, kind: input, shape index: {}]
  %s11 = inlined_call_operand.vmem [shape: f32[2,64,32], index: 11, kind: input, shape index: {}]
  %s12 = inlined_call_operand.vmem [shape: f32[2,1,32], index: 12, kind: input, shape index: {}]
  %s13 = inlined_call_operand.vmem [shape: f32[2,1,32], index: 13, kind: input, shape index: {}, may-alias: {7,13}]
  %s14 = inlined_call_operand.vmem [shape: f32[2,1,32], index: 14, kind: input, shape index: {}, may-alias: {8,14}]
  %s15 = inlined_call_operand.vmem [shape: f32[32,10], index: 15, kind: input, shape index: {}]
  %s16 = inlined_call_operand.vmem [shape: f32[1,10], index: 16, kind: input, shape index: {}]
  %s17 = inlined_call_operand.hbm [shape: f32[2,10], index: 17, kind: output, shape index: {}]
  %s18 = sld [smem:[#allocation0]]
  $region78: #{_lambda_.1} parent=0
    _
  %s20 = ssub.s32 1, %s18
  %s21 = scalar_select 0, %s20, %s18
  $region1: #{_lambda_.1} parent=0
    #allocation2 [shape = 'u8[1024]{0}', space=vmem, size = 0x400, scoped, tag = 'output window, operand 0, single buffered']
    #allocation3 [shape = 's32[1]{0}', space=sflag, size = 0x4, scoped, tag = 'scoped memory for _lambda_.1']
    %22 = vsyncpa [#allocation3], 0
    // Predicated region
    $region2: #{_lambda_.1} parent=1 // pred_check
      _
    $region3: #{_lambda_.1} parent=1 // pred_check_branch
      %24 = sbr.rel (0) target = $region5
    $region4: #{_lambda_.1} parent=1 // pred_region
      _
    $region5: #{_lambda_.1} parent=1 // pred_fallthru
      _
    // Predicated region
    $region6: #{_lambda_.1} parent=1 // pred_check
      _
    $region7: #{_lambda_.1} parent=1 // pred_check_branch
      %26 = sbr.rel (0) target = $region9
    $region8: #{_lambda_.1} parent=1 // pred_region
      _
    $region9: #{_lambda_.1} parent=1 // pred_fallthru
      _
    // Predicated region
    $region10: #{_lambda_.1} parent=1 // pred_check
      _
    $region11: #{_lambda_.1} parent=1 // pred_check_branch
      %28 = sbr.rel (0) target = $region13
    $region12: #{_lambda_.1} parent=1 // pred_region
      _
    $region13: #{_lambda_.1} parent=1 // pred_fallthru
      _
    // Predicated region
    $region14: #{_lambda_.1} parent=1 // pred_check
      _
    $region15: #{_lambda_.1} parent=1 // pred_check_branch
      %30 = sbr.rel (0) target = $region17
    $region16: #{_lambda_.1} parent=1 // pred_region
      _
    $region17: #{_lambda_.1} parent=1 // pred_fallthru
      _
    // Predicated region
    $region18: #{_lambda_.1} parent=1 // pred_check
      _
    $region19: #{_lambda_.1} parent=1 // pred_check_branch
      %32 = sbr.rel (0) target = $region21
    $region20: #{_lambda_.1} parent=1 // pred_region
      _
    $region21: #{_lambda_.1} parent=1 // pred_fallthru
      _
    // Predicated region
    $region22: #{_lambda_.1} parent=1 // pred_check
      _
    $region23: #{_lambda_.1} parent=1 // pred_check_branch
      %34 = sbr.rel (0) target = $region25
    $region24: #{_lambda_.1} parent=1 // pred_region
      _
    $region25: #{_lambda_.1} parent=1 // pred_fallthru
      _
    // Predicated region
    $region26: #{_lambda_.1} parent=1 // pred_check
      _
    $region27: #{_lambda_.1} parent=1 // pred_check_branch
      %36 = sbr.rel (0) target = $region29
    $region28: #{_lambda_.1} parent=1 // pred_region
      _
    $region29: #{_lambda_.1} parent=1 // pred_fallthru
      _
    // Predicated region
    $region30: #{_lambda_.1} parent=1 // pred_check
      _
    $region31: #{_lambda_.1} parent=1 // pred_check_branch
      %38 = sbr.rel (0) target = $region33
    $region32: #{_lambda_.1} parent=1 // pred_region
      _
    $region33: #{_lambda_.1} parent=1 // pred_fallthru
      _
    // Predicated region
    $region34: #{_lambda_.1} parent=1 // pred_check
      _
    $region35: #{_lambda_.1} parent=1 // pred_check_branch
      %40 = sbr.rel (0) target = $region37
    $region36: #{_lambda_.1} parent=1 // pred_region
      _
    $region37: #{_lambda_.1} parent=1 // pred_fallthru
      _
    // Predicated region
    $region38: #{_lambda_.1} parent=1 // pred_check
      _
    $region39: #{_lambda_.1} parent=1 // pred_check_branch
      %42 = sbr.rel (0) target = $region41
    $region40: #{_lambda_.1} parent=1 // pred_region
      _
    $region41: #{_lambda_.1} parent=1 // pred_fallthru
      _
    // Predicated region
    $region42: #{_lambda_.1} parent=1 // pred_check
      _
    $region43: #{_lambda_.1} parent=1 // pred_check_branch
      %44 = sbr.rel (0) target = $region45
    $region44: #{_lambda_.1} parent=1 // pred_region
      _
    $region45: #{_lambda_.1} parent=1 // pred_fallthru
      _
    // Predicated region
    $region46: #{_lambda_.1} parent=1 // pred_check
      _
    $region47: #{_lambda_.1} parent=1 // pred_check_branch
      %46 = sbr.rel (0) target = $region49
    $region48: #{_lambda_.1} parent=1 // pred_region
      _
    $region49: #{_lambda_.1} parent=1 // pred_fallthru
      _
    // Predicated region
    $region50: #{_lambda_.1} parent=1 // pred_check
      _
    $region51: #{_lambda_.1} parent=1 // pred_check_branch
      %48 = sbr.rel (0) target = $region53
    $region52: #{_lambda_.1} parent=1 // pred_region
      _
    $region53: #{_lambda_.1} parent=1 // pred_fallthru
      _
    // Predicated region
    $region54: #{_lambda_.1} parent=1 // pred_check
      _
    $region55: #{_lambda_.1} parent=1 // pred_check_branch
      %50 = sbr.rel (0) target = $region57
    $region56: #{_lambda_.1} parent=1 // pred_region
      _
    $region57: #{_lambda_.1} parent=1 // pred_fallthru
      _
    // Predicated region
    $region58: #{_lambda_.1} parent=1 // pred_check
      _
    $region59: #{_lambda_.1} parent=1 // pred_check_branch
      %52 = sbr.rel (0) target = $region61
    $region60: #{_lambda_.1} parent=1 // pred_region
      _
    $region61: #{_lambda_.1} parent=1 // pred_fallthru
      _
    // Predicated region
    $region62: #{_lambda_.1} parent=1 // pred_check
      _
    $region63: #{_lambda_.1} parent=1 // pred_check_branch
      %54 = sbr.rel (0) target = $region65
    $region64: #{_lambda_.1} parent=1 // pred_region
      _
    $region65: #{_lambda_.1} parent=1 // pred_fallthru
      _
    // Predicated region
    $region66: #{_lambda_.1} parent=1 // pred_check
      _
    $region67: #{_lambda_.1} parent=1 // pred_check_branch
      %56 = sbr.rel (0) target = $region69
    $region68: #{_lambda_.1} parent=1 // pred_region
      _
    $region69: #{_lambda_.1} parent=1 // pred_fallthru
      _
    %v57 = vld [vmem:[%s0] sm:$0xff]
    %v58 = vld [vmem:[%s0 + $0x8] sm:$0xff]
    %v59 = vld [vmem:[%s0 + $0x10] sm:$0xff]
    %v60 = vld [vmem:[%s0 + $0x18] sm:$0xff]
    %v61 = vld [vmem:[%s0 + $0x20] sm:$0x3]
    %v62 = vld [vmem:[%s3] sm:$0xff]
    %v63 = vld [vmem:[%s3 + $0x8] sm:$0xff]
    %v64 = vld [vmem:[%s3 + $0x10] sm:$0xff]
    %v65 = vld [vmem:[%s3 + $0x18] sm:$0xff]
    %v66 = vld [vmem:[%s3 + $0x20] sm:$0xff]
    %v67 = vld [vmem:[%s3 + $0x28] sm:$0xff]
    %v68 = vld [vmem:[%s3 + $0x30] sm:$0xff]
    %v69 = vld [vmem:[%s3 + $0x38] sm:$0xff]
    %v70 = vld [vmem:[%s4] sm:$0xff]
    %v71 = vld [vmem:[%s4 + $0x8] sm:$0xff]
    %v72 = vld [vmem:[%s4 + $0x10] sm:$0xff]
    %v73 = vld [vmem:[%s4 + $0x18] sm:$0xff]
    %v74 = vld [vmem:[%s4 + $0x20] sm:$0x3]
    %vm75 = vcmask 523264
    %v77 = vsel %vm75, %v57, 0
    %v80 = vsel %vm75, %v58, 0
    %v83 = vsel %vm75, %v59, 0
    %v86 = vsel %vm75, %v60, 0
    %v89 = vsel %vm75, %v61, 0
    %91 = vmatpush.msra.mxu0 0.0
    %92 = vmatpush.msra.mxu0 0.0
    %93 = vmatpush.msra.mxu0 0.0
    %94 = vmatpush.msra.mxu0 0.0
    %95 = vmatpush.msra.mxu0 0.0
    %96 = vmatpush.msra.mxu0 0.0
    %97 = vmatpush.msra.mxu0 0.0
    %98 = vmatpush.msra.mxu0 0.0
    %99 = vmatpush.msra.mxu0 %v69
    %100 = vmatpush.msra.mxu0 %v68
    %101 = vmatpush.msra.mxu0 %v67
    %102 = vmatpush.msra.mxu0 %v66
    %103 = vmatpush.msra.mxu0 %v65
    %104 = vmatpush.msra.mxu0 %v64
    %105 = vmatpush.msra.mxu0 %v63
    %106 = vmatpush.msra.mxu0 %v62
    %107 = vmatmul.f32.gmra.mxu0 %v77
    %v108 = vpop.f32.mrf.mxu0
    %v109 = vadd.f32 %v70, %v108
    %110 = vmatmul.f32.gmra.mxu0 %v80
    %v111 = vpop.f32.mrf.mxu0
    %v112 = vadd.f32 %v71, %v111
    %113 = vmatmul.f32.gmra.mxu0 %v83
    %v114 = vpop.f32.mrf.mxu0
    %v115 = vadd.f32 %v72, %v114
    %116 = vmatmul.f32.gmra.mxu0 %v86
    %v117 = vpop.f32.mrf.mxu0
    %v118 = vadd.f32 %v73, %v117
    %119 = vmatmul.f32.gmra.mxu0 %v89
    %v120 = vpop.f32.mrf.mxu0
    %v121 = vadd.f32 %v74, %v120
    %122 = vdwg.mxu0
    %v123 = vld [vmem:[%s1] sm:$0xff]
    %v124 = vld [vmem:[%s1 + $0x8] sm:$0xff]
    %v125 = vld [vmem:[%s1 + $0x10] sm:$0xff]
    %v126 = vld [vmem:[%s1 + $0x18] sm:$0xff]
    %v127 = vld [vmem:[%s1 + $0x20] sm:$0x3]
    %v128 = vld [vmem:[%s5] sm:$0xff]
    %v129 = vld [vmem:[%s5 + $0x8] sm:$0xff]
    %v130 = vld [vmem:[%s5 + $0x10] sm:$0xff]
    %v131 = vld [vmem:[%s5 + $0x18] sm:$0xff]
    %vm132 = vcmask 261120
    %v134 = vsel %vm132, %v109, 0
    %v137 = vsel %vm132, %v112, 0
    %v140 = vsel %vm132, %v115, 0
    %v143 = vsel %vm132, %v118, 0
    %v146 = vsel %vm132, %v121, 0
    %148 = vmatpush.msra.mxu0 0.0
    %149 = vmatpush.msra.mxu0 0.0
    %150 = vmatpush.msra.mxu0 0.0
    %151 = vmatpush.msra.mxu0 0.0
    %152 = vmatpush.msra.mxu0 0.0
    %153 = vmatpush.msra.mxu0 0.0
    %154 = vmatpush.msra.mxu0 0.0
    %155 = vmatpush.msra.mxu0 0.0
    %156 = vmatpush.msra.mxu0 0.0
    %157 = vmatpush.msra.mxu0 0.0
    %158 = vmatpush.msra.mxu0 0.0
    %159 = vmatpush.msra.mxu0 0.0
    %160 = vmatpush.msra.mxu0 %v131
    %161 = vmatpush.msra.mxu0 %v130
    %162 = vmatpush.msra.mxu0 %v129
    %163 = vmatpush.msra.mxu0 %v128
    %164 = vmatmul.f32.gmra.mxu0 %v134
    %v165 = vpop.f32.mrf.mxu0
    %v166 = vadd.f32 0.0, %v165
    %167 = vmatmul.f32.gmra.mxu0 %v137
    %v168 = vpop.f32.mrf.mxu0
    %v169 = vadd.f32 0.0, %v168
    %170 = vmatmul.f32.gmra.mxu0 %v140
    %v171 = vpop.f32.mrf.mxu0
    %v172 = vadd.f32 0.0, %v171
    %173 = vmatmul.f32.gmra.mxu0 %v143
    %v174 = vpop.f32.mrf.mxu0
    %v175 = vadd.f32 0.0, %v174
    %176 = vmatmul.f32.gmra.mxu0 %v146
    %v177 = vpop.f32.mrf.mxu0
    %v178 = vadd.f32 0.0, %v177
    %179 = vdwg.mxu0
    %185 = vrot.lane.b32.xlu0 %v166, 96
    %v186 = vpop.permute.xlu0 %185
    %187 = vrot.lane.b32.xlu0 %v169, 96
    %v188 = vpop.permute.xlu0 %187
    %189 = vrot.lane.b32.xlu0 %v172, 96
    %v190 = vpop.permute.xlu0 %189
    %191 = vrot.lane.b32.xlu0 %v175, 96
    %v192 = vpop.permute.xlu0 %191
    %193 = vrot.lane.b32.xlu0 %v178, 96
    %v194 = vpop.permute.xlu0 %193
    %vm195 = vcmask 64512
    %v196 = vsel %vm195, %v166, 0
    %v198 = vsel %vm195, %v169, 0
    %v200 = vsel %vm195, %v172, 0
    %v202 = vsel %vm195, %v175, 0
    %v204 = vsel %vm195, %v178, 0
    %v206 = vsel %vm195, %v186, 0
    %v208 = vsel %vm195, %v188, 0
    %v210 = vsel %vm195, %v190, 0
    %v212 = vsel %vm195, %v192, 0
    %v214 = vsel %vm195, %v194, 0
    %216 = vmatpush.xpose.msra.mxu0 0.0
    %217 = vmatpush.xpose.msra.mxu0 0.0
    %218 = vmatpush.xpose.msra.mxu0 0.0
    %219 = vmatpush.xpose.msra.mxu0 0.0
    %220 = vmatpush.xpose.msra.mxu0 0.0
    %221 = vmatpush.xpose.msra.mxu0 0.0
    %222 = vmatpush.xpose.msra.mxu0 0.0
    %223 = vmatpush.xpose.msra.mxu0 0.0
    %224 = vmatpush.xpose.msra.mxu0 0.0
    %225 = vmatpush.xpose.msra.mxu0 0.0
    %226 = vmatpush.xpose.msra.mxu0 0.0
    %227 = vmatpush.xpose.msra.mxu0 %v214
    %228 = vmatpush.xpose.msra.mxu0 %v212
    %229 = vmatpush.xpose.msra.mxu0 %v210
    %230 = vmatpush.xpose.msra.mxu0 %v208
    %231 = vmatpush.xpose.msra.mxu0 %v206
    %232 = vmatmul.f32.gmra.mxu0 %v196
    %v233 = vpop.f32.mrf.mxu0
    %v234 = vadd.f32 %v123, %v233
    %235 = vmatmul.f32.gmra.mxu0 %v198
    %v236 = vpop.f32.mrf.mxu0
    %v237 = vadd.f32 %v124, %v236
    %238 = vmatmul.f32.gmra.mxu0 %v200
    %v239 = vpop.f32.mrf.mxu0
    %v240 = vadd.f32 %v125, %v239
    %241 = vmatmul.f32.gmra.mxu0 %v202
    %v242 = vpop.f32.mrf.mxu0
    %v243 = vadd.f32 %v126, %v242
    %244 = vmatmul.f32.gmra.mxu0 %v204
    %v245 = vpop.f32.mrf.mxu0
    %v246 = vadd.f32 %v127, %v245
    %247 = vdwg.mxu0
    %vm248 = vcmask 277504
    %v249 = vsel %vm248, %v234, -inf
    %250 = vmax.xlane.f32.xlu0 %v249
    %v251 = vpop.xlane.xlu0 %250
    %v252 = vsel %vm248, %v237, -inf
    %253 = vmax.xlane.f32.xlu0 %v252
    %v254 = vpop.xlane.xlu0 %253
    %v255 = vsel %vm248, %v240, -inf
    %256 = vmax.xlane.f32.xlu0 %v255
    %v257 = vpop.xlane.xlu0 %256
    %v258 = vsel %vm248, %v243, -inf
    %259 = vmax.xlane.f32.xlu0 %v258
    %v260 = vpop.xlane.xlu0 %259
    %vm261 = vcmask 271360
    %v262 = vsel %vm261, %v246, -inf
    %263 = vmax.xlane.f32.xlu0 %v262
    %v264 = vpop.xlane.xlu0 %263
    %v265 = vsub.f32 %v234, %v251
    %v266 = vsub.f32 %v237, %v254
    %v267 = vsub.f32 %v240, %v257
    %v268 = vsub.f32 %v243, %v260
    %v269 = vsub.f32 %v246, %v264
    %v270 = vmul.f32 %v265, 1.442695
    %v271 = vpow.pop %v270
    %v272 = vmul.f32 %v266, 1.442695
    %v273 = vpow.pop %v272
    %v274 = vmul.f32 %v267, 1.442695
    %v275 = vpow.pop %v274
    %v276 = vmul.f32 %v268, 1.442695
    %v277 = vpow.pop %v276
    %v278 = vmul.f32 %v269, 1.442695
    %v279 = vpow.pop %v278
    %v280 = vsel %vm248, %v271, 0.0
    %281 = vadd.xlane.f32.xlu0 %v280
    %v282 = vpop.xlane.xlu0 %281
    %v283 = vsel %vm248, %v273, 0.0
    %284 = vadd.xlane.f32.xlu0 %v283
    %v285 = vpop.xlane.xlu0 %284
    %v286 = vsel %vm248, %v275, 0.0
    %287 = vadd.xlane.f32.xlu0 %v286
    %v288 = vpop.xlane.xlu0 %287
    %v289 = vsel %vm248, %v277, 0.0
    %290 = vadd.xlane.f32.xlu0 %v289
    %v291 = vpop.xlane.xlu0 %290
    %v292 = vsel %vm261, %v279, 0.0
    %293 = vadd.xlane.f32.xlu0 %v292
    %v294 = vpop.xlane.xlu0 %293
    %v295 = vrcp.pop %v282
    %v296 = vmul.f32 %v282, %v295
    %v297 = vsub.f32 1.0, %v296
    %v298 = vmul.f32 %v295, %v297
    %v299 = vadd.f32 %v295, %v298
    %vm300 = vweird.f32 %v282
    %vm301 = vweird.f32 %v295
    %vm302 = vmor %vm300, %vm301
    %v303 = vsel %vm302, %v295, %v299
    %v304 = vand.u32 2147483647, %v282
    %vm305 = vcmp.eq.f32.partialorder %v304, 8.507059e+37
    %v306 = vand.u32 %v282, 2147483648
    %v307 = vor.u32 1.1754944e-38, %v306
    %v308 = vsel %vm305, %v307, %v303
    %v309 = vmul.f32 %v271, %v308
    %v310 = vrcp.pop %v285
    %v311 = vmul.f32 %v285, %v310
    %v312 = vsub.f32 1.0, %v311
    %v313 = vmul.f32 %v310, %v312
    %v314 = vadd.f32 %v310, %v313
    %vm315 = vweird.f32 %v285
    %vm316 = vweird.f32 %v310
    %vm317 = vmor %vm315, %vm316
    %v318 = vsel %vm317, %v310, %v314
    %v319 = vand.u32 2147483647, %v285
    %vm320 = vcmp.eq.f32.partialorder %v319, 8.507059e+37
    %v321 = vand.u32 %v285, 2147483648
    %v322 = vor.u32 1.1754944e-38, %v321
    %v323 = vsel %vm320, %v322, %v318
    %v324 = vmul.f32 %v273, %v323
    %v325 = vrcp.pop %v288
    %v326 = vmul.f32 %v288, %v325
    %v327 = vsub.f32 1.0, %v326
    %v328 = vmul.f32 %v325, %v327
    %v329 = vadd.f32 %v325, %v328
    %vm330 = vweird.f32 %v288
    %vm331 = vweird.f32 %v325
    %vm332 = vmor %vm330, %vm331
    %v333 = vsel %vm332, %v325, %v329
    %v334 = vand.u32 2147483647, %v288
    %vm335 = vcmp.eq.f32.partialorder %v334, 8.507059e+37
    %v336 = vand.u32 %v288, 2147483648
    %v337 = vor.u32 1.1754944e-38, %v336
    %v338 = vsel %vm335, %v337, %v333
    %v339 = vmul.f32 %v275, %v338
    %v340 = vrcp.pop %v291
    %v341 = vmul.f32 %v291, %v340
    %v342 = vsub.f32 1.0, %v341
    %v343 = vmul.f32 %v340, %v342
    %v344 = vadd.f32 %v340, %v343
    %vm345 = vweird.f32 %v291
    %vm346 = vweird.f32 %v340
    %vm347 = vmor %vm345, %vm346
    %v348 = vsel %vm347, %v340, %v344
    %v349 = vand.u32 2147483647, %v291
    %vm350 = vcmp.eq.f32.partialorder %v349, 8.507059e+37
    %v351 = vand.u32 %v291, 2147483648
    %v352 = vor.u32 1.1754944e-38, %v351
    %v353 = vsel %vm350, %v352, %v348
    %v354 = vmul.f32 %v277, %v353
    %v355 = vrcp.pop %v294
    %v356 = vmul.f32 %v294, %v355
    %v357 = vsub.f32 1.0, %v356
    %v358 = vmul.f32 %v355, %v357
    %v359 = vadd.f32 %v355, %v358
    %vm360 = vweird.f32 %v294
    %vm361 = vweird.f32 %v355
    %vm362 = vmor %vm360, %vm361
    %v363 = vsel %vm362, %v355, %v359
    %v364 = vand.u32 2147483647, %v294
    %vm365 = vcmp.eq.f32.partialorder %v364, 8.507059e+37
    %v366 = vand.u32 %v294, 2147483648
    %v367 = vor.u32 1.1754944e-38, %v366
    %v368 = vsel %vm365, %v367, %v363
    %v369 = vmul.f32 %v279, %v368
    %370 = vrot.lane.b32.xlu0 %v166, 64
    %v371 = vpop.permute.xlu0 %370
    %372 = vrot.lane.b32.xlu0 %v169, 64
    %v373 = vpop.permute.xlu0 %372
    %374 = vrot.lane.b32.xlu0 %v172, 64
    %v375 = vpop.permute.xlu0 %374
    %376 = vrot.lane.b32.xlu0 %v175, 64
    %v377 = vpop.permute.xlu0 %376
    %378 = vrot.lane.b32.xlu0 %v178, 64
    %v379 = vpop.permute.xlu0 %378
    %v385 = vsel %vm248, %v309, 0
    %v388 = vsel %vm248, %v324, 0
    %v391 = vsel %vm248, %v339, 0
    %v394 = vsel %vm248, %v354, 0
    %v397 = vsel %vm248, %v369, 0
    %vm399 = vcmask 1041408
    %v400 = vsel %vm399, %v379, 0
    %402 = vmatpush.msra.mxu0 0.0
    %403 = vmatpush.msra.mxu0 0.0
    %404 = vmatpush.msra.mxu0 0.0
    %405 = vmatpush.msra.mxu0 0.0
    %406 = vmatpush.msra.mxu0 0.0
    %407 = vmatpush.msra.mxu0 0.0
    %408 = vmatpush.msra.mxu0 0.0
    %409 = vmatpush.msra.mxu0 0.0
    %410 = vmatpush.msra.mxu0 0.0
    %411 = vmatpush.msra.mxu0 0.0
    %412 = vmatpush.msra.mxu0 0.0
    %413 = vmatpush.msra.mxu0 %v400
    %414 = vmatpush.msra.mxu0 %v377
    %415 = vmatpush.msra.mxu0 %v375
    %416 = vmatpush.msra.mxu0 %v373
    %417 = vmatpush.msra.mxu0 %v371
    %418 = vmatmul.f32.gmra.mxu0 %v385
    %v419 = vpop.f32.mrf.mxu0
    %v420 = vadd.f32 0.0, %v419
    %421 = vmatmul.f32.gmra.mxu0 %v388
    %v422 = vpop.f32.mrf.mxu0
    %v423 = vadd.f32 0.0, %v422
    %424 = vmatmul.f32.gmra.mxu0 %v391
    %v425 = vpop.f32.mrf.mxu0
    %v426 = vadd.f32 0.0, %v425
    %427 = vmatmul.f32.gmra.mxu0 %v394
    %v428 = vpop.f32.mrf.mxu0
    %v429 = vadd.f32 0.0, %v428
    %430 = vmatmul.f32.gmra.mxu0 %v397
    %v431 = vpop.f32.mrf.mxu0
    %v432 = vadd.f32 0.0, %v431
    %433 = vdwg.mxu0
    %434 = vrot.lane.b32.xlu0 %v166, 120
    %v435 = vpop.permute.xlu0 %434
    %436 = vrot.lane.b32.xlu0 %v169, 120
    %v437 = vpop.permute.xlu0 %436
    %438 = vrot.lane.b32.xlu0 %v172, 120
    %v439 = vpop.permute.xlu0 %438
    %440 = vrot.lane.b32.xlu0 %v175, 120
    %v441 = vpop.permute.xlu0 %440
    %442 = vrot.lane.b32.xlu0 %v178, 120
    %v443 = vpop.permute.xlu0 %442
    %444 = vrot.lane.b32.xlu0 %v166, 88
    %v445 = vpop.permute.xlu0 %444
    %446 = vrot.lane.b32.xlu0 %v169, 88
    %v447 = vpop.permute.xlu0 %446
    %448 = vrot.lane.b32.xlu0 %v172, 88
    %v449 = vpop.permute.xlu0 %448
    %450 = vrot.lane.b32.xlu0 %v175, 88
    %v451 = vpop.permute.xlu0 %450
    %452 = vrot.lane.b32.xlu0 %v178, 88
    %v453 = vpop.permute.xlu0 %452
    %v454 = vsel %vm195, %v435, 0
    %v456 = vsel %vm195, %v437, 0
    %v458 = vsel %vm195, %v439, 0
    %v460 = vsel %vm195, %v441, 0
    %v462 = vsel %vm195, %v443, 0
    %v464 = vsel %vm195, %v445, 0
    %v466 = vsel %vm195, %v447, 0
    %v468 = vsel %vm195, %v449, 0
    %v470 = vsel %vm195, %v451, 0
    %v472 = vsel %vm195, %v453, 0
    %474 = vmatpush.xpose.msra.mxu0 0.0
    %475 = vmatpush.xpose.msra.mxu0 0.0
    %476 = vmatpush.xpose.msra.mxu0 0.0
    %477 = vmatpush.xpose.msra.mxu0 0.0
    %478 = vmatpush.xpose.msra.mxu0 0.0
    %479 = vmatpush.xpose.msra.mxu0 0.0
    %480 = vmatpush.xpose.msra.mxu0 0.0
    %481 = vmatpush.xpose.msra.mxu0 0.0
    %482 = vmatpush.xpose.msra.mxu0 0.0
    %483 = vmatpush.xpose.msra.mxu0 0.0
    %484 = vmatpush.xpose.msra.mxu0 0.0
    %485 = vmatpush.xpose.msra.mxu0 %v472
    %486 = vmatpush.xpose.msra.mxu0 %v470
    %487 = vmatpush.xpose.msra.mxu0 %v468
    %488 = vmatpush.xpose.msra.mxu0 %v466
    %489 = vmatpush.xpose.msra.mxu0 %v464
    %490 = vmatmul.f32.gmra.mxu0 %v454
    %v491 = vpop.f32.mrf.mxu0
    %v492 = vadd.f32 %v123, %v491
    %493 = vmatmul.f32.gmra.mxu0 %v456
    %v494 = vpop.f32.mrf.mxu0
    %v495 = vadd.f32 %v124, %v494
    %496 = vmatmul.f32.gmra.mxu0 %v458
    %v497 = vpop.f32.mrf.mxu0
    %v498 = vadd.f32 %v125, %v497
    %499 = vmatmul.f32.gmra.mxu0 %v460
    %v500 = vpop.f32.mrf.mxu0
    %v501 = vadd.f32 %v126, %v500
    %502 = vmatmul.f32.gmra.mxu0 %v462
    %v503 = vpop.f32.mrf.mxu0
    %v504 = vadd.f32 %v127, %v503
    %505 = vdwg.mxu0
    %v506 = vsel %vm248, %v492, -inf
    %507 = vmax.xlane.f32.xlu0 %v506
    %v508 = vpop.xlane.xlu0 %507
    %v509 = vsel %vm248, %v495, -inf
    %510 = vmax.xlane.f32.xlu0 %v509
    %v511 = vpop.xlane.xlu0 %510
    %v512 = vsel %vm248, %v498, -inf
    %513 = vmax.xlane.f32.xlu0 %v512
    %v514 = vpop.xlane.xlu0 %513
    %v515 = vsel %vm248, %v501, -inf
    %516 = vmax.xlane.f32.xlu0 %v515
    %v517 = vpop.xlane.xlu0 %516
    %v518 = vsel %vm261, %v504, -inf
    %519 = vmax.xlane.f32.xlu0 %v518
    %v520 = vpop.xlane.xlu0 %519
    %v521 = vsub.f32 %v492, %v508
    %v522 = vsub.f32 %v495, %v511
    %v523 = vsub.f32 %v498, %v514
    %v524 = vsub.f32 %v501, %v517
    %v525 = vsub.f32 %v504, %v520
    %v526 = vmul.f32 %v521, 1.442695
    %v527 = vpow.pop %v526
    %v528 = vmul.f32 %v522, 1.442695
    %v529 = vpow.pop %v528
    %v530 = vmul.f32 %v523, 1.442695
    %v531 = vpow.pop %v530
    %v532 = vmul.f32 %v524, 1.442695
    %v533 = vpow.pop %v532
    %v534 = vmul.f32 %v525, 1.442695
    %v535 = vpow.pop %v534
    %v536 = vsel %vm248, %v527, 0.0
    %537 = vadd.xlane.f32.xlu0 %v536
    %v538 = vpop.xlane.xlu0 %537
    %v539 = vsel %vm248, %v529, 0.0
    %540 = vadd.xlane.f32.xlu0 %v539
    %v541 = vpop.xlane.xlu0 %540
    %v542 = vsel %vm248, %v531, 0.0
    %543 = vadd.xlane.f32.xlu0 %v542
    %v544 = vpop.xlane.xlu0 %543
    %v545 = vsel %vm248, %v533, 0.0
    %546 = vadd.xlane.f32.xlu0 %v545
    %v547 = vpop.xlane.xlu0 %546
    %v548 = vsel %vm261, %v535, 0.0
    %549 = vadd.xlane.f32.xlu0 %v548
    %v550 = vpop.xlane.xlu0 %549
    %v551 = vrcp.pop %v538
    %v552 = vmul.f32 %v538, %v551
    %v553 = vsub.f32 1.0, %v552
    %v554 = vmul.f32 %v551, %v553
    %v555 = vadd.f32 %v551, %v554
    %vm556 = vweird.f32 %v538
    %vm557 = vweird.f32 %v551
    %vm558 = vmor %vm556, %vm557
    %v559 = vsel %vm558, %v551, %v555
    %v560 = vand.u32 2147483647, %v538
    %vm561 = vcmp.eq.f32.partialorder %v560, 8.507059e+37
    %v562 = vand.u32 %v538, 2147483648
    %v563 = vor.u32 1.1754944e-38, %v562
    %v564 = vsel %vm561, %v563, %v559
    %v565 = vmul.f32 %v527, %v564
    %v566 = vrcp.pop %v541
    %v567 = vmul.f32 %v541, %v566
    %v568 = vsub.f32 1.0, %v567
    %v569 = vmul.f32 %v566, %v568
    %v570 = vadd.f32 %v566, %v569
    %vm571 = vweird.f32 %v541
    %vm572 = vweird.f32 %v566
    %vm573 = vmor %vm571, %vm572
    %v574 = vsel %vm573, %v566, %v570
    %v575 = vand.u32 2147483647, %v541
    %vm576 = vcmp.eq.f32.partialorder %v575, 8.507059e+37
    %v577 = vand.u32 %v541, 2147483648
    %v578 = vor.u32 1.1754944e-38, %v577
    %v579 = vsel %vm576, %v578, %v574
    %v580 = vmul.f32 %v529, %v579
    %v581 = vrcp.pop %v544
    %v582 = vmul.f32 %v544, %v581
    %v583 = vsub.f32 1.0, %v582
    %v584 = vmul.f32 %v581, %v583
    %v585 = vadd.f32 %v581, %v584
    %vm586 = vweird.f32 %v544
    %vm587 = vweird.f32 %v581
    %vm588 = vmor %vm586, %vm587
    %v589 = vsel %vm588, %v581, %v585
    %v590 = vand.u32 2147483647, %v544
    %vm591 = vcmp.eq.f32.partialorder %v590, 8.507059e+37
    %v592 = vand.u32 %v544, 2147483648
    %v593 = vor.u32 1.1754944e-38, %v592
    %v594 = vsel %vm591, %v593, %v589
    %v595 = vmul.f32 %v531, %v594
    %v596 = vrcp.pop %v547
    %v597 = vmul.f32 %v547, %v596
    %v598 = vsub.f32 1.0, %v597
    %v599 = vmul.f32 %v596, %v598
    %v600 = vadd.f32 %v596, %v599
    %vm601 = vweird.f32 %v547
    %vm602 = vweird.f32 %v596
    %vm603 = vmor %vm601, %vm602
    %v604 = vsel %vm603, %v596, %v600
    %v605 = vand.u32 2147483647, %v547
    %vm606 = vcmp.eq.f32.partialorder %v605, 8.507059e+37
    %v607 = vand.u32 %v547, 2147483648
    %v608 = vor.u32 1.1754944e-38, %v607
    %v609 = vsel %vm606, %v608, %v604
    %v610 = vmul.f32 %v533, %v609
    %v611 = vrcp.pop %v550
    %v612 = vmul.f32 %v550, %v611
    %v613 = vsub.f32 1.0, %v612
    %v614 = vmul.f32 %v611, %v613
    %v615 = vadd.f32 %v611, %v614
    %vm616 = vweird.f32 %v550
    %vm617 = vweird.f32 %v611
    %vm618 = vmor %vm616, %vm617
    %v619 = vsel %vm618, %v611, %v615
    %v620 = vand.u32 2147483647, %v550
    %vm621 = vcmp.eq.f32.partialorder %v620, 8.507059e+37
    %v622 = vand.u32 %v550, 2147483648
    %v623 = vor.u32 1.1754944e-38, %v622
    %v624 = vsel %vm621, %v623, %v619
    %v625 = vmul.f32 %v535, %v624
    %626 = vrot.lane.b32.xlu0 %v166, 56
    %v627 = vpop.permute.xlu0 %626
    %628 = vrot.lane.b32.xlu0 %v169, 56
    %v629 = vpop.permute.xlu0 %628
    %630 = vrot.lane.b32.xlu0 %v172, 56
    %v631 = vpop.permute.xlu0 %630
    %632 = vrot.lane.b32.xlu0 %v175, 56
    %v633 = vpop.permute.xlu0 %632
    %634 = vrot.lane.b32.xlu0 %v178, 56
    %v635 = vpop.permute.xlu0 %634
    %v641 = vsel %vm248, %v565, 0
    %v644 = vsel %vm248, %v580, 0
    %v647 = vsel %vm248, %v595, 0
    %v650 = vsel %vm248, %v610, 0
    %v653 = vsel %vm248, %v625, 0
    %v655 = vsel %vm399, %v635, 0
    %657 = vmatpush.msra.mxu0 0.0
    %658 = vmatpush.msra.mxu0 0.0
    %659 = vmatpush.msra.mxu0 0.0
    %660 = vmatpush.msra.mxu0 0.0
    %661 = vmatpush.msra.mxu0 0.0
    %662 = vmatpush.msra.mxu0 0.0
    %663 = vmatpush.msra.mxu0 0.0
    %664 = vmatpush.msra.mxu0 0.0
    %665 = vmatpush.msra.mxu0 0.0
    %666 = vmatpush.msra.mxu0 0.0
    %667 = vmatpush.msra.mxu0 0.0
    %668 = vmatpush.msra.mxu0 %v655
    %669 = vmatpush.msra.mxu0 %v633
    %670 = vmatpush.msra.mxu0 %v631
    %671 = vmatpush.msra.mxu0 %v629
    %672 = vmatpush.msra.mxu0 %v627
    %673 = vmatmul.f32.gmra.mxu0 %v641
    %v674 = vpop.f32.mrf.mxu0
    %v675 = vadd.f32 0.0, %v674
    %676 = vmatmul.f32.gmra.mxu0 %v644
    %v677 = vpop.f32.mrf.mxu0
    %v678 = vadd.f32 0.0, %v677
    %679 = vmatmul.f32.gmra.mxu0 %v647
    %v680 = vpop.f32.mrf.mxu0
    %v681 = vadd.f32 0.0, %v680
    %682 = vmatmul.f32.gmra.mxu0 %v650
    %v683 = vpop.f32.mrf.mxu0
    %v684 = vadd.f32 0.0, %v683
    %685 = vmatmul.f32.gmra.mxu0 %v653
    %v686 = vpop.f32.mrf.mxu0
    %v687 = vadd.f32 0.0, %v686
    %688 = vdwg.mxu0
    %689 = vrot.lane.b32.xlu0 %v166, 112
    %v690 = vpop.permute.xlu0 %689
    %691 = vrot.lane.b32.xlu0 %v169, 112
    %v692 = vpop.permute.xlu0 %691
    %693 = vrot.lane.b32.xlu0 %v172, 112
    %v694 = vpop.permute.xlu0 %693
    %695 = vrot.lane.b32.xlu0 %v175, 112
    %v696 = vpop.permute.xlu0 %695
    %697 = vrot.lane.b32.xlu0 %v178, 112
    %v698 = vpop.permute.xlu0 %697
    %699 = vrot.lane.b32.xlu0 %v166, 80
    %v700 = vpop.permute.xlu0 %699
    %701 = vrot.lane.b32.xlu0 %v169, 80
    %v702 = vpop.permute.xlu0 %701
    %703 = vrot.lane.b32.xlu0 %v172, 80
    %v704 = vpop.permute.xlu0 %703
    %705 = vrot.lane.b32.xlu0 %v175, 80
    %v706 = vpop.permute.xlu0 %705
    %707 = vrot.lane.b32.xlu0 %v178, 80
    %v708 = vpop.permute.xlu0 %707
    %v709 = vsel %vm195, %v690, 0
    %v711 = vsel %vm195, %v692, 0
    %v713 = vsel %vm195, %v694, 0
    %v715 = vsel %vm195, %v696, 0
    %v717 = vsel %vm195, %v698, 0
    %v719 = vsel %vm195, %v700, 0
    %v721 = vsel %vm195, %v702, 0
    %v723 = vsel %vm195, %v704, 0
    %v725 = vsel %vm195, %v706, 0
    %v727 = vsel %vm195, %v708, 0
    %729 = vmatpush.xpose.msra.mxu0 0.0
    %730 = vmatpush.xpose.msra.mxu0 0.0
    %731 = vmatpush.xpose.msra.mxu0 0.0
    %732 = vmatpush.xpose.msra.mxu0 0.0
    %733 = vmatpush.xpose.msra.mxu0 0.0
    %734 = vmatpush.xpose.msra.mxu0 0.0
    %735 = vmatpush.xpose.msra.mxu0 0.0
    %736 = vmatpush.xpose.msra.mxu0 0.0
    %737 = vmatpush.xpose.msra.mxu0 0.0
    %738 = vmatpush.xpose.msra.mxu0 0.0
    %739 = vmatpush.xpose.msra.mxu0 0.0
    %740 = vmatpush.xpose.msra.mxu0 %v727
    %741 = vmatpush.xpose.msra.mxu0 %v725
    %742 = vmatpush.xpose.msra.mxu0 %v723
    %743 = vmatpush.xpose.msra.mxu0 %v721
    %744 = vmatpush.xpose.msra.mxu0 %v719
    %745 = vmatmul.f32.gmra.mxu0 %v709
    %v746 = vpop.f32.mrf.mxu0
    %v747 = vadd.f32 %v123, %v746
    %748 = vmatmul.f32.gmra.mxu0 %v711
    %v749 = vpop.f32.mrf.mxu0
    %v750 = vadd.f32 %v124, %v749
    %751 = vmatmul.f32.gmra.mxu0 %v713
    %v752 = vpop.f32.mrf.mxu0
    %v753 = vadd.f32 %v125, %v752
    %754 = vmatmul.f32.gmra.mxu0 %v715
    %v755 = vpop.f32.mrf.mxu0
    %v756 = vadd.f32 %v126, %v755
    %757 = vmatmul.f32.gmra.mxu0 %v717
    %v758 = vpop.f32.mrf.mxu0
    %v759 = vadd.f32 %v127, %v758
    %760 = vdwg.mxu0
    %v761 = vsel %vm248, %v747, -inf
    %762 = vmax.xlane.f32.xlu0 %v761
    %v763 = vpop.xlane.xlu0 %762
    %v764 = vsel %vm248, %v750, -inf
    %765 = vmax.xlane.f32.xlu0 %v764
    %v766 = vpop.xlane.xlu0 %765
    %v767 = vsel %vm248, %v753, -inf
    %768 = vmax.xlane.f32.xlu0 %v767
    %v769 = vpop.xlane.xlu0 %768
    %v770 = vsel %vm248, %v756, -inf
    %771 = vmax.xlane.f32.xlu0 %v770
    %v772 = vpop.xlane.xlu0 %771
    %v773 = vsel %vm261, %v759, -inf
    %774 = vmax.xlane.f32.xlu0 %v773
    %v775 = vpop.xlane.xlu0 %774
    %v776 = vsub.f32 %v747, %v763
    %v777 = vsub.f32 %v750, %v766
    %v778 = vsub.f32 %v753, %v769
    %v779 = vsub.f32 %v756, %v772
    %v780 = vsub.f32 %v759, %v775
    %v781 = vmul.f32 %v776, 1.442695
    %v782 = vpow.pop %v781
    %v783 = vmul.f32 %v777, 1.442695
    %v784 = vpow.pop %v783
    %v785 = vmul.f32 %v778, 1.442695
    %v786 = vpow.pop %v785
    %v787 = vmul.f32 %v779, 1.442695
    %v788 = vpow.pop %v787
    %v789 = vmul.f32 %v780, 1.442695
    %v790 = vpow.pop %v789
    %v791 = vsel %vm248, %v782, 0.0
    %792 = vadd.xlane.f32.xlu0 %v791
    %v793 = vpop.xlane.xlu0 %792
    %v794 = vsel %vm248, %v784, 0.0
    %795 = vadd.xlane.f32.xlu0 %v794
    %v796 = vpop.xlane.xlu0 %795
    %v797 = vsel %vm248, %v786, 0.0
    %798 = vadd.xlane.f32.xlu0 %v797
    %v799 = vpop.xlane.xlu0 %798
    %v800 = vsel %vm248, %v788, 0.0
    %801 = vadd.xlane.f32.xlu0 %v800
    %v802 = vpop.xlane.xlu0 %801
    %v803 = vsel %vm261, %v790, 0.0
    %804 = vadd.xlane.f32.xlu0 %v803
    %v805 = vpop.xlane.xlu0 %804
    %v806 = vrcp.pop %v793
    %v807 = vmul.f32 %v793, %v806
    %v808 = vsub.f32 1.0, %v807
    %v809 = vmul.f32 %v806, %v808
    %v810 = vadd.f32 %v806, %v809
    %vm811 = vweird.f32 %v793
    %vm812 = vweird.f32 %v806
    %vm813 = vmor %vm811, %vm812
    %v814 = vsel %vm813, %v806, %v810
    %v815 = vand.u32 2147483647, %v793
    %vm816 = vcmp.eq.f32.partialorder %v815, 8.507059e+37
    %v817 = vand.u32 %v793, 2147483648
    %v818 = vor.u32 1.1754944e-38, %v817
    %v819 = vsel %vm816, %v818, %v814
    %v820 = vmul.f32 %v782, %v819
    %v821 = vrcp.pop %v796
    %v822 = vmul.f32 %v796, %v821
    %v823 = vsub.f32 1.0, %v822
    %v824 = vmul.f32 %v821, %v823
    %v825 = vadd.f32 %v821, %v824
    %vm826 = vweird.f32 %v796
    %vm827 = vweird.f32 %v821
    %vm828 = vmor %vm826, %vm827
    %v829 = vsel %vm828, %v821, %v825
    %v830 = vand.u32 2147483647, %v796
    %vm831 = vcmp.eq.f32.partialorder %v830, 8.507059e+37
    %v832 = vand.u32 %v796, 2147483648
    %v833 = vor.u32 1.1754944e-38, %v832
    %v834 = vsel %vm831, %v833, %v829
    %v835 = vmul.f32 %v784, %v834
    %v836 = vrcp.pop %v799
    %v837 = vmul.f32 %v799, %v836
    %v838 = vsub.f32 1.0, %v837
    %v839 = vmul.f32 %v836, %v838
    %v840 = vadd.f32 %v836, %v839
    %vm841 = vweird.f32 %v799
    %vm842 = vweird.f32 %v836
    %vm843 = vmor %vm841, %vm842
    %v844 = vsel %vm843, %v836, %v840
    %v845 = vand.u32 2147483647, %v799
    %vm846 = vcmp.eq.f32.partialorder %v845, 8.507059e+37
    %v847 = vand.u32 %v799, 2147483648
    %v848 = vor.u32 1.1754944e-38, %v847
    %v849 = vsel %vm846, %v848, %v844
    %v850 = vmul.f32 %v786, %v849
    %v851 = vrcp.pop %v802
    %v852 = vmul.f32 %v802, %v851
    %v853 = vsub.f32 1.0, %v852
    %v854 = vmul.f32 %v851, %v853
    %v855 = vadd.f32 %v851, %v854
    %vm856 = vweird.f32 %v802
    %vm857 = vweird.f32 %v851
    %vm858 = vmor %vm856, %vm857
    %v859 = vsel %vm858, %v851, %v855
    %v860 = vand.u32 2147483647, %v802
    %vm861 = vcmp.eq.f32.partialorder %v860, 8.507059e+37
    %v862 = vand.u32 %v802, 2147483648
    %v863 = vor.u32 1.1754944e-38, %v862
    %v864 = vsel %vm861, %v863, %v859
    %v865 = vmul.f32 %v788, %v864
    %v866 = vrcp.pop %v805
    %v867 = vmul.f32 %v805, %v866
    %v868 = vsub.f32 1.0, %v867
    %v869 = vmul.f32 %v866, %v868
    %v870 = vadd.f32 %v866, %v869
    %vm871 = vweird.f32 %v805
    %vm872 = vweird.f32 %v866
    %vm873 = vmor %vm871, %vm872
    %v874 = vsel %vm873, %v866, %v870
    %v875 = vand.u32 2147483647, %v805
    %vm876 = vcmp.eq.f32.partialorder %v875, 8.507059e+37
    %v877 = vand.u32 %v805, 2147483648
    %v878 = vor.u32 1.1754944e-38, %v877
    %v879 = vsel %vm876, %v878, %v874
    %v880 = vmul.f32 %v790, %v879
    %881 = vrot.lane.b32.xlu0 %v166, 48
    %v882 = vpop.permute.xlu0 %881
    %883 = vrot.lane.b32.xlu0 %v169, 48
    %v884 = vpop.permute.xlu0 %883
    %885 = vrot.lane.b32.xlu0 %v172, 48
    %v886 = vpop.permute.xlu0 %885
    %887 = vrot.lane.b32.xlu0 %v175, 48
    %v888 = vpop.permute.xlu0 %887
    %889 = vrot.lane.b32.xlu0 %v178, 48
    %v890 = vpop.permute.xlu0 %889
    %v896 = vsel %vm248, %v820, 0
    %v899 = vsel %vm248, %v835, 0
    %v902 = vsel %vm248, %v850, 0
    %v905 = vsel %vm248, %v865, 0
    %v908 = vsel %vm248, %v880, 0
    %v910 = vsel %vm399, %v890, 0
    %912 = vmatpush.msra.mxu0 0.0
    %913 = vmatpush.msra.mxu0 0.0
    %914 = vmatpush.msra.mxu0 0.0
    %915 = vmatpush.msra.mxu0 0.0
    %916 = vmatpush.msra.mxu0 0.0
    %917 = vmatpush.msra.mxu0 0.0
    %918 = vmatpush.msra.mxu0 0.0
    %919 = vmatpush.msra.mxu0 0.0
    %920 = vmatpush.msra.mxu0 0.0
    %921 = vmatpush.msra.mxu0 0.0
    %922 = vmatpush.msra.mxu0 0.0
    %923 = vmatpush.msra.mxu0 %v910
    %924 = vmatpush.msra.mxu0 %v888
    %925 = vmatpush.msra.mxu0 %v886
    %926 = vmatpush.msra.mxu0 %v884
    %927 = vmatpush.msra.mxu0 %v882
    %928 = vmatmul.f32.gmra.mxu0 %v896
    %v929 = vpop.f32.mrf.mxu0
    %v930 = vadd.f32 0.0, %v929
    %931 = vmatmul.f32.gmra.mxu0 %v899
    %v932 = vpop.f32.mrf.mxu0
    %v933 = vadd.f32 0.0, %v932
    %934 = vmatmul.f32.gmra.mxu0 %v902
    %v935 = vpop.f32.mrf.mxu0
    %v936 = vadd.f32 0.0, %v935
    %937 = vmatmul.f32.gmra.mxu0 %v905
    %v938 = vpop.f32.mrf.mxu0
    %v939 = vadd.f32 0.0, %v938
    %940 = vmatmul.f32.gmra.mxu0 %v908
    %v941 = vpop.f32.mrf.mxu0
    %v942 = vadd.f32 0.0, %v941
    %943 = vdwg.mxu0
    %944 = vrot.lane.b32.xlu0 %v166, 104
    %v945 = vpop.permute.xlu0 %944
    %946 = vrot.lane.b32.xlu0 %v169, 104
    %v947 = vpop.permute.xlu0 %946
    %948 = vrot.lane.b32.xlu0 %v172, 104
    %v949 = vpop.permute.xlu0 %948
    %950 = vrot.lane.b32.xlu0 %v175, 104
    %v951 = vpop.permute.xlu0 %950
    %952 = vrot.lane.b32.xlu0 %v178, 104
    %v953 = vpop.permute.xlu0 %952
    %954 = vrot.lane.b32.xlu0 %v166, 72
    %v955 = vpop.permute.xlu0 %954
    %956 = vrot.lane.b32.xlu0 %v169, 72
    %v957 = vpop.permute.xlu0 %956
    %958 = vrot.lane.b32.xlu0 %v172, 72
    %v959 = vpop.permute.xlu0 %958
    %960 = vrot.lane.b32.xlu0 %v175, 72
    %v961 = vpop.permute.xlu0 %960
    %962 = vrot.lane.b32.xlu0 %v178, 72
    %v963 = vpop.permute.xlu0 %962
    %v964 = vsel %vm195, %v945, 0
    %v966 = vsel %vm195, %v947, 0
    %v968 = vsel %vm195, %v949, 0
    %v970 = vsel %vm195, %v951, 0
    %v972 = vsel %vm195, %v953, 0
    %v974 = vsel %vm195, %v955, 0
    %v976 = vsel %vm195, %v957, 0
    %v978 = vsel %vm195, %v959, 0
    %v980 = vsel %vm195, %v961, 0
    %v982 = vsel %vm195, %v963, 0
    %984 = vmatpush.xpose.msra.mxu0 0.0
    %985 = vmatpush.xpose.msra.mxu0 0.0
    %986 = vmatpush.xpose.msra.mxu0 0.0
    %987 = vmatpush.xpose.msra.mxu0 0.0
    %988 = vmatpush.xpose.msra.mxu0 0.0
    %989 = vmatpush.xpose.msra.mxu0 0.0
    %990 = vmatpush.xpose.msra.mxu0 0.0
    %991 = vmatpush.xpose.msra.mxu0 0.0
    %992 = vmatpush.xpose.msra.mxu0 0.0
    %993 = vmatpush.xpose.msra.mxu0 0.0
    %994 = vmatpush.xpose.msra.mxu0 0.0
    %995 = vmatpush.xpose.msra.mxu0 %v982
    %996 = vmatpush.xpose.msra.mxu0 %v980
    %997 = vmatpush.xpose.msra.mxu0 %v978
    %998 = vmatpush.xpose.msra.mxu0 %v976
    %999 = vmatpush.xpose.msra.mxu0 %v974
    %1000 = vmatmul.f32.gmra.mxu0 %v964
    %v1001 = vpop.f32.mrf.mxu0
    %v1002 = vadd.f32 %v123, %v1001
    %1003 = vmatmul.f32.gmra.mxu0 %v966
    %v1004 = vpop.f32.mrf.mxu0
    %v1005 = vadd.f32 %v124, %v1004
    %1006 = vmatmul.f32.gmra.mxu0 %v968
    %v1007 = vpop.f32.mrf.mxu0
    %v1008 = vadd.f32 %v125, %v1007
    %1009 = vmatmul.f32.gmra.mxu0 %v970
    %v1010 = vpop.f32.mrf.mxu0
    %v1011 = vadd.f32 %v126, %v1010
    %1012 = vmatmul.f32.gmra.mxu0 %v972
    %v1013 = vpop.f32.mrf.mxu0
    %v1014 = vadd.f32 %v127, %v1013
    %1015 = vdwg.mxu0
    %v1016 = vsel %vm248, %v1002, -inf
    %1017 = vmax.xlane.f32.xlu0 %v1016
    %v1018 = vpop.xlane.xlu0 %1017
    %v1019 = vsel %vm248, %v1005, -inf
    %1020 = vmax.xlane.f32.xlu0 %v1019
    %v1021 = vpop.xlane.xlu0 %1020
    %v1022 = vsel %vm248, %v1008, -inf
    %1023 = vmax.xlane.f32.xlu0 %v1022
    %v1024 = vpop.xlane.xlu0 %1023
    %v1025 = vsel %vm248, %v1011, -inf
    %1026 = vmax.xlane.f32.xlu0 %v1025
    %v1027 = vpop.xlane.xlu0 %1026
    %v1028 = vsel %vm261, %v1014, -inf
    %1029 = vmax.xlane.f32.xlu0 %v1028
    %v1030 = vpop.xlane.xlu0 %1029
    %v1031 = vsub.f32 %v1002, %v1018
    %v1032 = vsub.f32 %v1005, %v1021
    %v1033 = vsub.f32 %v1008, %v1024
    %v1034 = vsub.f32 %v1011, %v1027
    %v1035 = vsub.f32 %v1014, %v1030
    %v1036 = vmul.f32 %v1031, 1.442695
    %v1037 = vpow.pop %v1036
    %v1038 = vmul.f32 %v1032, 1.442695
    %v1039 = vpow.pop %v1038
    %v1040 = vmul.f32 %v1033, 1.442695
    %v1041 = vpow.pop %v1040
    %v1042 = vmul.f32 %v1034, 1.442695
    %v1043 = vpow.pop %v1042
    %v1044 = vmul.f32 %v1035, 1.442695
    %v1045 = vpow.pop %v1044
    %v1046 = vsel %vm248, %v1037, 0.0
    %1047 = vadd.xlane.f32.xlu0 %v1046
    %v1048 = vpop.xlane.xlu0 %1047
    %v1049 = vsel %vm248, %v1039, 0.0
    %1050 = vadd.xlane.f32.xlu0 %v1049
    %v1051 = vpop.xlane.xlu0 %1050
    %v1052 = vsel %vm248, %v1041, 0.0
    %1053 = vadd.xlane.f32.xlu0 %v1052
    %v1054 = vpop.xlane.xlu0 %1053
    %v1055 = vsel %vm248, %v1043, 0.0
    %1056 = vadd.xlane.f32.xlu0 %v1055
    %v1057 = vpop.xlane.xlu0 %1056
    %v1058 = vsel %vm261, %v1045, 0.0
    %1059 = vadd.xlane.f32.xlu0 %v1058
    %v1060 = vpop.xlane.xlu0 %1059
    %v1061 = vrcp.pop %v1048
    %v1062 = vmul.f32 %v1048, %v1061
    %v1063 = vsub.f32 1.0, %v1062
    %v1064 = vmul.f32 %v1061, %v1063
    %v1065 = vadd.f32 %v1061, %v1064
    %vm1066 = vweird.f32 %v1048
    %vm1067 = vweird.f32 %v1061
    %vm1068 = vmor %vm1066, %vm1067
    %v1069 = vsel %vm1068, %v1061, %v1065
    %v1070 = vand.u32 2147483647, %v1048
    %vm1071 = vcmp.eq.f32.partialorder %v1070, 8.507059e+37
    %v1072 = vand.u32 %v1048, 2147483648
    %v1073 = vor.u32 1.1754944e-38, %v1072
    %v1074 = vsel %vm1071, %v1073, %v1069
    %v1075 = vmul.f32 %v1037, %v1074
    %v1076 = vrcp.pop %v1051
    %v1077 = vmul.f32 %v1051, %v1076
    %v1078 = vsub.f32 1.0, %v1077
    %v1079 = vmul.f32 %v1076, %v1078
    %v1080 = vadd.f32 %v1076, %v1079
    %vm1081 = vweird.f32 %v1051
    %vm1082 = vweird.f32 %v1076
    %vm1083 = vmor %vm1081, %vm1082
    %v1084 = vsel %vm1083, %v1076, %v1080
    %v1085 = vand.u32 2147483647, %v1051
    %vm1086 = vcmp.eq.f32.partialorder %v1085, 8.507059e+37
    %v1087 = vand.u32 %v1051, 2147483648
    %v1088 = vor.u32 1.1754944e-38, %v1087
    %v1089 = vsel %vm1086, %v1088, %v1084
    %v1090 = vmul.f32 %v1039, %v1089
    %v1091 = vrcp.pop %v1054
    %v1092 = vmul.f32 %v1054, %v1091
    %v1093 = vsub.f32 1.0, %v1092
    %v1094 = vmul.f32 %v1091, %v1093
    %v1095 = vadd.f32 %v1091, %v1094
    %vm1096 = vweird.f32 %v1054
    %vm1097 = vweird.f32 %v1091
    %vm1098 = vmor %vm1096, %vm1097
    %v1099 = vsel %vm1098, %v1091, %v1095
    %v1100 = vand.u32 2147483647, %v1054
    %vm1101 = vcmp.eq.f32.partialorder %v1100, 8.507059e+37
    %v1102 = vand.u32 %v1054, 2147483648
    %v1103 = vor.u32 1.1754944e-38, %v1102
    %v1104 = vsel %vm1101, %v1103, %v1099
    %v1105 = vmul.f32 %v1041, %v1104
    %v1106 = vrcp.pop %v1057
    %v1107 = vmul.f32 %v1057, %v1106
    %v1108 = vsub.f32 1.0, %v1107
    %v1109 = vmul.f32 %v1106, %v1108
    %v1110 = vadd.f32 %v1106, %v1109
    %vm1111 = vweird.f32 %v1057
    %vm1112 = vweird.f32 %v1106
    %vm1113 = vmor %vm1111, %vm1112
    %v1114 = vsel %vm1113, %v1106, %v1110
    %v1115 = vand.u32 2147483647, %v1057
    %vm1116 = vcmp.eq.f32.partialorder %v1115, 8.507059e+37
    %v1117 = vand.u32 %v1057, 2147483648
    %v1118 = vor.u32 1.1754944e-38, %v1117
    %v1119 = vsel %vm1116, %v1118, %v1114
    %v1120 = vmul.f32 %v1043, %v1119
    %v1121 = vrcp.pop %v1060
    %v1122 = vmul.f32 %v1060, %v1121
    %v1123 = vsub.f32 1.0, %v1122
    %v1124 = vmul.f32 %v1121, %v1123
    %v1125 = vadd.f32 %v1121, %v1124
    %vm1126 = vweird.f32 %v1060
    %vm1127 = vweird.f32 %v1121
    %vm1128 = vmor %vm1126, %vm1127
    %v1129 = vsel %vm1128, %v1121, %v1125
    %v1130 = vand.u32 2147483647, %v1060
    %vm1131 = vcmp.eq.f32.partialorder %v1130, 8.507059e+37
    %v1132 = vand.u32 %v1060, 2147483648
    %v1133 = vor.u32 1.1754944e-38, %v1132
    %v1134 = vsel %vm1131, %v1133, %v1129
    %v1135 = vmul.f32 %v1045, %v1134
    %1136 = vrot.lane.b32.xlu0 %v166, 40
    %v1137 = vpop.permute.xlu0 %1136
    %1138 = vrot.lane.b32.xlu0 %v169, 40
    %v1139 = vpop.permute.xlu0 %1138
    %1140 = vrot.lane.b32.xlu0 %v172, 40
    %v1141 = vpop.permute.xlu0 %1140
    %1142 = vrot.lane.b32.xlu0 %v175, 40
    %v1143 = vpop.permute.xlu0 %1142
    %1144 = vrot.lane.b32.xlu0 %v178, 40
    %v1145 = vpop.permute.xlu0 %1144
    %v1151 = vsel %vm248, %v1075, 0
    %v1154 = vsel %vm248, %v1090, 0
    %v1157 = vsel %vm248, %v1105, 0
    %v1160 = vsel %vm248, %v1120, 0
    %v1163 = vsel %vm248, %v1135, 0
    %v1165 = vsel %vm399, %v1145, 0
    %1167 = vmatpush.msra.mxu0 0.0
    %1168 = vmatpush.msra.mxu0 0.0
    %1169 = vmatpush.msra.mxu0 0.0
    %1170 = vmatpush.msra.mxu0 0.0
    %1171 = vmatpush.msra.mxu0 0.0
    %1172 = vmatpush.msra.mxu0 0.0
    %1173 = vmatpush.msra.mxu0 0.0
    %1174 = vmatpush.msra.mxu0 0.0
    %1175 = vmatpush.msra.mxu0 0.0
    %1176 = vmatpush.msra.mxu0 0.0
    %1177 = vmatpush.msra.mxu0 0.0
    %1178 = vmatpush.msra.mxu0 %v1165
    %1179 = vmatpush.msra.mxu0 %v1143
    %1180 = vmatpush.msra.mxu0 %v1141
    %1181 = vmatpush.msra.mxu0 %v1139
    %1182 = vmatpush.msra.mxu0 %v1137
    %1183 = vmatmul.f32.gmra.mxu0 %v1151
    %v1184 = vpop.f32.mrf.mxu0
    %v1185 = vadd.f32 0.0, %v1184
    %1186 = vmatmul.f32.gmra.mxu0 %v1154
    %v1187 = vpop.f32.mrf.mxu0
    %v1188 = vadd.f32 0.0, %v1187
    %1189 = vmatmul.f32.gmra.mxu0 %v1157
    %v1190 = vpop.f32.mrf.mxu0
    %v1191 = vadd.f32 0.0, %v1190
    %1192 = vmatmul.f32.gmra.mxu0 %v1160
    %v1193 = vpop.f32.mrf.mxu0
    %v1194 = vadd.f32 0.0, %v1193
    %1195 = vmatmul.f32.gmra.mxu0 %v1163
    %v1196 = vpop.f32.mrf.mxu0
    %v1197 = vadd.f32 0.0, %v1196
    %1198 = vdwg.mxu0
    %1204 = vrot.lane.b32.xlu0 %v675, 8
    %v1205 = vpop.permute.xlu0 %1204
    %1206 = vrot.lane.b32.xlu0 %v678, 8
    %v1207 = vpop.permute.xlu0 %1206
    %1208 = vrot.lane.b32.xlu0 %v681, 8
    %v1209 = vpop.permute.xlu0 %1208
    %1210 = vrot.lane.b32.xlu0 %v684, 8
    %v1211 = vpop.permute.xlu0 %1210
    %1212 = vrot.lane.b32.xlu0 %v687, 8
    %v1213 = vpop.permute.xlu0 %1212
    %1224 = vrot.lane.b32.xlu0 %v930, 16
    %v1225 = vpop.permute.xlu0 %1224
    %1226 = vrot.lane.b32.xlu0 %v933, 16
    %v1227 = vpop.permute.xlu0 %1226
    %1228 = vrot.lane.b32.xlu0 %v936, 16
    %v1229 = vpop.permute.xlu0 %1228
    %1230 = vrot.lane.b32.xlu0 %v939, 16
    %v1231 = vpop.permute.xlu0 %1230
    %1232 = vrot.lane.b32.xlu0 %v942, 16
    %v1233 = vpop.permute.xlu0 %1232
    %1244 = vrot.lane.b32.xlu0 %v1185, 24
    %v1245 = vpop.permute.xlu0 %1244
    %1246 = vrot.lane.b32.xlu0 %v1188, 24
    %v1247 = vpop.permute.xlu0 %1246
    %1248 = vrot.lane.b32.xlu0 %v1191, 24
    %v1249 = vpop.permute.xlu0 %1248
    %1250 = vrot.lane.b32.xlu0 %v1194, 24
    %v1251 = vpop.permute.xlu0 %1250
    %1252 = vrot.lane.b32.xlu0 %v1197, 24
    %v1253 = vpop.permute.xlu0 %1252
    %v1259 = vsel %vm195, %v420, %v1205
    %v1260 = vsel %vm195, %v423, %v1207
    %v1261 = vsel %vm195, %v426, %v1209
    %v1262 = vsel %vm195, %v429, %v1211
    %v1263 = vsel %vm195, %v432, %v1213
    %vm1264 = vcmask 130048
    %v1265 = vsel %vm1264, %v1259, %v1225
    %v1266 = vsel %vm1264, %v1260, %v1227
    %v1267 = vsel %vm1264, %v1261, %v1229
    %v1268 = vsel %vm1264, %v1262, %v1231
    %v1269 = vsel %vm1264, %v1263, %v1233
    %vm1270 = vcmask 195584
    %v1271 = vsel %vm1270, %v1265, %v1245
    %v1272 = vsel %vm1270, %v1266, %v1247
    %v1273 = vsel %vm1270, %v1267, %v1249
    %v1274 = vsel %vm1270, %v1268, %v1251
    %v1275 = vsel %vm1270, %v1269, %v1253
    %v1276 = vld [vmem:[%s6] sm:$0xff]
    %v1277 = vld [vmem:[%s6 + $0x8] sm:$0xff]
    %v1278 = vld [vmem:[%s6 + $0x10] sm:$0xff]
    %v1279 = vld [vmem:[%s6 + $0x18] sm:$0xff]
    %v1281 = vsel %vm132, %v1271, 0
    %v1284 = vsel %vm132, %v1272, 0
    %v1287 = vsel %vm132, %v1273, 0
    %v1290 = vsel %vm132, %v1274, 0
    %v1293 = vsel %vm132, %v1275, 0
    %1295 = vmatpush.msra.mxu0 0.0
    %1296 = vmatpush.msra.mxu0 0.0
    %1297 = vmatpush.msra.mxu0 0.0
    %1298 = vmatpush.msra.mxu0 0.0
    %1299 = vmatpush.msra.mxu0 0.0
    %1300 = vmatpush.msra.mxu0 0.0
    %1301 = vmatpush.msra.mxu0 0.0
    %1302 = vmatpush.msra.mxu0 0.0
    %1303 = vmatpush.msra.mxu0 0.0
    %1304 = vmatpush.msra.mxu0 0.0
    %1305 = vmatpush.msra.mxu0 0.0
    %1306 = vmatpush.msra.mxu0 0.0
    %1307 = vmatpush.msra.mxu0 %v1279
    %1308 = vmatpush.msra.mxu0 %v1278
    %1309 = vmatpush.msra.mxu0 %v1277
    %1310 = vmatpush.msra.mxu0 %v1276
    %1311 = vmatmul.f32.gmra.mxu0 %v1281
    %v1312 = vpop.f32.mrf.mxu0
    %v1313 = vadd.f32 0.0, %v1312
    %1314 = vmatmul.f32.gmra.mxu0 %v1284
    %v1315 = vpop.f32.mrf.mxu0
    %v1316 = vadd.f32 0.0, %v1315
    %1317 = vmatmul.f32.gmra.mxu0 %v1287
    %v1318 = vpop.f32.mrf.mxu0
    %v1319 = vadd.f32 0.0, %v1318
    %1320 = vmatmul.f32.gmra.mxu0 %v1290
    %v1321 = vpop.f32.mrf.mxu0
    %v1322 = vadd.f32 0.0, %v1321
    %1323 = vmatmul.f32.gmra.mxu0 %v1293
    %v1324 = vpop.f32.mrf.mxu0
    %v1325 = vadd.f32 0.0, %v1324
    %1326 = vdwg.mxu0
    %v1327 = vadd.f32 %v109, %v1313
    %v1328 = vadd.f32 %v112, %v1316
    %v1329 = vadd.f32 %v115, %v1319
    %v1330 = vadd.f32 %v118, %v1322
    %v1331 = vadd.f32 %v121, %v1325
    %v1332 = vld [vmem:[%s7] sm:$0x1]
    %v1333 = vld [vmem:[%s8] sm:$0x1]
    %v1334 = vsel %vm132, %v1327, 0.0
    %1335 = vadd.xlane.f32.xlu0 %v1334
    %v1336 = vpop.xlane.xlu0 %1335
    %v1337 = vsel %vm132, %v1328, 0.0
    %1338 = vadd.xlane.f32.xlu0 %v1337
    %v1339 = vpop.xlane.xlu0 %1338
    %v1340 = vsel %vm132, %v1329, 0.0
    %1341 = vadd.xlane.f32.xlu0 %v1340
    %v1342 = vpop.xlane.xlu0 %1341
    %v1343 = vsel %vm132, %v1330, 0.0
    %1344 = vadd.xlane.f32.xlu0 %v1343
    %v1345 = vpop.xlane.xlu0 %1344
    %vm1346 = vcmask 254976
    %v1347 = vsel %vm1346, %v1331, 0.0
    %1348 = vadd.xlane.f32.xlu0 %v1347
    %v1349 = vpop.xlane.xlu0 %1348
    %v1350 = vrcp.pop 32.0
    %v1351 = vmul.f32 32.0, %v1350
    %v1352 = vsub.f32 1.0, %v1351
    %v1353 = vmul.f32 %v1350, %v1352
    %v1354 = vadd.f32 %v1350, %v1353
    %vm1355 = vweird.f32 %v1350
    %v1356 = vsel %vm1355, %v1350, %v1354
    %v1357 = vmul.f32 %v1336, %v1356
    %v1358 = vmul.f32 %v1339, %v1356
    %v1359 = vmul.f32 %v1342, %v1356
    %v1360 = vmul.f32 %v1345, %v1356
    %v1361 = vmul.f32 %v1349, %v1356
    %v1362 = vsub.f32 %v1327, %v1357
    %v1363 = vsub.f32 %v1328, %v1358
    %v1364 = vsub.f32 %v1329, %v1359
    %v1365 = vsub.f32 %v1330, %v1360
    %v1366 = vsub.f32 %v1331, %v1361
    %v1367 = vmul.f32 %v1362, %v1362
    %v1368 = vmul.f32 %v1363, %v1363
    %v1369 = vmul.f32 %v1364, %v1364
    %v1370 = vmul.f32 %v1365, %v1365
    %v1371 = vmul.f32 %v1366, %v1366
    %v1372 = vsel %vm132, %v1367, 0.0
    %1373 = vadd.xlane.f32.xlu0 %v1372
    %v1374 = vpop.xlane.xlu0 %1373
    %v1375 = vsel %vm132, %v1368, 0.0
    %1376 = vadd.xlane.f32.xlu0 %v1375
    %v1377 = vpop.xlane.xlu0 %1376
    %v1378 = vsel %vm132, %v1369, 0.0
    %1379 = vadd.xlane.f32.xlu0 %v1378
    %v1380 = vpop.xlane.xlu0 %1379
    %v1381 = vsel %vm132, %v1370, 0.0
    %1382 = vadd.xlane.f32.xlu0 %v1381
    %v1383 = vpop.xlane.xlu0 %1382
    %v1384 = vsel %vm1346, %v1371, 0.0
    %1385 = vadd.xlane.f32.xlu0 %v1384
    %v1386 = vpop.xlane.xlu0 %1385
    %v1387 = vmul.f32 %v1374, %v1356
    %v1388 = vmul.f32 %v1377, %v1356
    %v1389 = vmul.f32 %v1380, %v1356
    %v1390 = vmul.f32 %v1383, %v1356
    %v1391 = vmul.f32 %v1386, %v1356
    %v1392 = vadd.f32 %v1387, 1e-05
    %v1393 = vadd.f32 %v1388, 1e-05
    %v1394 = vadd.f32 %v1389, 1e-05
    %v1395 = vadd.f32 %v1390, 1e-05
    %v1396 = vadd.f32 %v1391, 1e-05
    %v1397 = vrsqrt.pop %v1392
    %v1398 = vmul.f32 %v1397, %v1392
    %v1399 = vmul.f32 %v1398, %v1397
    %v1400 = vmul.f32 0.5, %v1399
    %v1401 = vsub.f32 1.5, %v1400
    %v1402 = vmul.f32 %v1397, %v1401
    %vm1403 = vweird.f32 %v1392
    %vm1404 = vweird.f32 %v1397
    %vm1405 = vmor %vm1403, %vm1404
    %v1406 = vsel %vm1405, %v1397, %v1402
    %v1407 = vrsqrt.pop %v1393
    %v1408 = vmul.f32 %v1407, %v1393
    %v1409 = vmul.f32 %v1408, %v1407
    %v1410 = vmul.f32 0.5, %v1409
    %v1411 = vsub.f32 1.5, %v1410
    %v1412 = vmul.f32 %v1407, %v1411
    %vm1413 = vweird.f32 %v1393
    %vm1414 = vweird.f32 %v1407
    %vm1415 = vmor %vm1413, %vm1414
    %v1416 = vsel %vm1415, %v1407, %v1412
    %v1417 = vrsqrt.pop %v1394
    %v1418 = vmul.f32 %v1417, %v1394
    %v1419 = vmul.f32 %v1418, %v1417
    %v1420 = vmul.f32 0.5, %v1419
    %v1421 = vsub.f32 1.5, %v1420
    %v1422 = vmul.f32 %v1417, %v1421
    %vm1423 = vweird.f32 %v1394
    %vm1424 = vweird.f32 %v1417
    %vm1425 = vmor %vm1423, %vm1424
    %v1426 = vsel %vm1425, %v1417, %v1422
    %v1427 = vrsqrt.pop %v1395
    %v1428 = vmul.f32 %v1427, %v1395
    %v1429 = vmul.f32 %v1428, %v1427
    %v1430 = vmul.f32 0.5, %v1429
    %v1431 = vsub.f32 1.5, %v1430
    %v1432 = vmul.f32 %v1427, %v1431
    %vm1433 = vweird.f32 %v1395
    %vm1434 = vweird.f32 %v1427
    %vm1435 = vmor %vm1433, %vm1434
    %v1436 = vsel %vm1435, %v1427, %v1432
    %v1437 = vrsqrt.pop %v1396
    %v1438 = vmul.f32 %v1437, %v1396
    %v1439 = vmul.f32 %v1438, %v1437
    %v1440 = vmul.f32 0.5, %v1439
    %v1441 = vsub.f32 1.5, %v1440
    %v1442 = vmul.f32 %v1437, %v1441
    %vm1443 = vweird.f32 %v1396
    %vm1444 = vweird.f32 %v1437
    %vm1445 = vmor %vm1443, %vm1444
    %v1446 = vsel %vm1445, %v1437, %v1442
    %v1447 = vmul.f32 %v1362, %v1406
    %v1448 = vmul.f32 %v1363, %v1416
    %v1449 = vmul.f32 %v1364, %v1426
    %v1450 = vmul.f32 %v1365, %v1436
    %v1451 = vmul.f32 %v1366, %v1446
    %v1453 = vperm.slane %v1332, 0
    %v1455 = vmul.f32 %v1447, %v1453
    %v1456 = vmul.f32 %v1448, %v1453
    %v1457 = vmul.f32 %v1449, %v1453
    %v1458 = vmul.f32 %v1450, %v1453
    %v1459 = vmul.f32 %v1451, %v1453
    %v1461 = vperm.slane %v1333, 0
    %v1463 = vadd.f32 %v1455, %v1461
    %v1464 = vadd.f32 %v1456, %v1461
    %v1465 = vadd.f32 %v1457, %v1461
    %v1466 = vadd.f32 %v1458, %v1461
    %v1467 = vadd.f32 %v1459, %v1461
    %v1468 = vld [vmem:[%s9] sm:$0xff]
    %v1469 = vld [vmem:[%s9 + $0x8] sm:$0xff]
    %v1470 = vld [vmem:[%s9 + $0x10] sm:$0xff]
    %v1471 = vld [vmem:[%s9 + $0x18] sm:$0xff]
    %v1472 = vld [vmem:[%s10] sm:$0x1]
    %v1474 = vperm.slane %v1472, 0
    %v1477 = vsel %vm132, %v1463, 0
    %v1480 = vsel %vm132, %v1464, 0
    %v1483 = vsel %vm132, %v1465, 0
    %v1486 = vsel %vm132, %v1466, 0
    %v1489 = vsel %vm132, %v1467, 0
    %1491 = vmatpush.msra.mxu0 0.0
    %1492 = vmatpush.msra.mxu0 0.0
    %1493 = vmatpush.msra.mxu0 0.0
    %1494 = vmatpush.msra.mxu0 0.0
    %1495 = vmatpush.msra.mxu0 0.0
    %1496 = vmatpush.msra.mxu0 0.0
    %1497 = vmatpush.msra.mxu0 0.0
    %1498 = vmatpush.msra.mxu0 0.0
    %1499 = vmatpush.msra.mxu0 0.0
    %1500 = vmatpush.msra.mxu0 0.0
    %1501 = vmatpush.msra.mxu0 0.0
    %1502 = vmatpush.msra.mxu0 0.0
    %1503 = vmatpush.msra.mxu0 %v1471
    %1504 = vmatpush.msra.mxu0 %v1470
    %1505 = vmatpush.msra.mxu0 %v1469
    %1506 = vmatpush.msra.mxu0 %v1468
    %1507 = vmatmul.f32.gmra.mxu0 %v1477
    %v1508 = vpop.f32.mrf.mxu0
    %v1509 = vadd.f32 %v1474, %v1508
    %1510 = vmatmul.f32.gmra.mxu0 %v1480
    %v1511 = vpop.f32.mrf.mxu0
    %v1512 = vadd.f32 %v1474, %v1511
    %1513 = vmatmul.f32.gmra.mxu0 %v1483
    %v1514 = vpop.f32.mrf.mxu0
    %v1515 = vadd.f32 %v1474, %v1514
    %1516 = vmatmul.f32.gmra.mxu0 %v1486
    %v1517 = vpop.f32.mrf.mxu0
    %v1518 = vadd.f32 %v1474, %v1517
    %1519 = vmatmul.f32.gmra.mxu0 %v1489
    %v1520 = vpop.f32.mrf.mxu0
    %v1521 = vadd.f32 %v1474, %v1520
    %1522 = vdwg.mxu0
    %v1523 = vmul.f32 %v1509, 0.5
    %v1524 = vmul.f32 %v1512, 0.5
    %v1525 = vmul.f32 %v1515, 0.5
    %v1526 = vmul.f32 %v1518, 0.5
    %v1527 = vmul.f32 %v1521, 0.5
    %v1528 = vmul.f32 %v1509, 0.70710677
    %v1529 = vmul.f32 %v1512, 0.70710677
    %v1530 = vmul.f32 %v1515, 0.70710677
    %v1531 = vmul.f32 %v1518, 0.70710677
    %v1532 = vmul.f32 %v1521, 0.70710677
    %v1533 = vmul.f32 %v1528, %v1528
    %v1534 = vmin.f32 16.0, %v1533
    %v1535 = vmul.f32 %v1534, 2.1237322e-06
    %v1536 = vadd.f32 %v1535, 0.00028619796
    %v1537 = vmul.f32 %v1534, %v1536
    %v1538 = vadd.f32 %v1537, 0.0036580483
    %v1539 = vmul.f32 %v1534, %v1538
    %v1540 = vadd.f32 %v1539, 0.05243302
    %v1541 = vmul.f32 %v1534, %v1540
    %v1542 = vadd.f32 %v1541, 0.18741608
    %v1543 = vmul.f32 %v1534, %v1542
    %v1544 = vadd.f32 %v1543, 1.1283791
    %v1545 = vmul.f32 %v1528, %v1544
    %v1546 = vmul.f32 %v1534, 3.8918573e-05
    %v1547 = vadd.f32 %v1546, 0.001143296
    %v1548 = vmul.f32 %v1534, %v1547
    %v1549 = vadd.f32 %v1548, 0.014752088
    %v1550 = vmul.f32 %v1534, %v1549
    %v1551 = vadd.f32 %v1550, 0.112945676
    %v1552 = vmul.f32 %v1534, %v1551
    %v1553 = vadd.f32 %v1552, 0.4994258
    %v1554 = vmul.f32 %v1534, %v1553
    %v1555 = vadd.f32 %v1554, 1.0
    %v1556 = vrcp.pop %v1555
    %v1557 = vmul.f32 %v1555, %v1556
    %v1558 = vsub.f32 1.0, %v1557
    %v1559 = vmul.f32 %v1556, %v1558
    %v1560 = vadd.f32 %v1556, %v1559
    %vm1561 = vweird.f32 %v1555
    %vm1562 = vweird.f32 %v1556
    %vm1563 = vmor %vm1561, %vm1562
    %v1564 = vsel %vm1563, %v1556, %v1560
    %v1565 = vand.u32 2147483647, %v1555
    %vm1566 = vcmp.eq.f32.partialorder %v1565, 8.507059e+37
    %v1567 = vand.u32 %v1555, 2147483648
    %v1568 = vor.u32 1.1754944e-38, %v1567
    %v1569 = vsel %vm1566, %v1568, %v1564
    %v1570 = vmul.f32 %v1545, %v1569
    %v1571 = vmin.f32 %v1570, 1.0
    %v1572 = vmax.f32 %v1571, -1.0
    %v1573 = vmul.f32 %v1529, %v1529
    %v1574 = vmin.f32 16.0, %v1573
    %v1575 = vmul.f32 %v1574, 2.1237322e-06
    %v1576 = vadd.f32 %v1575, 0.00028619796
    %v1577 = vmul.f32 %v1574, %v1576
    %v1578 = vadd.f32 %v1577, 0.0036580483
    %v1579 = vmul.f32 %v1574, %v1578
    %v1580 = vadd.f32 %v1579, 0.05243302
    %v1581 = vmul.f32 %v1574, %v1580
    %v1582 = vadd.f32 %v1581, 0.18741608
    %v1583 = vmul.f32 %v1574, %v1582
    %v1584 = vadd.f32 %v1583, 1.1283791
    %v1585 = vmul.f32 %v1529, %v1584
    %v1586 = vmul.f32 %v1574, 3.8918573e-05
    %v1587 = vadd.f32 %v1586, 0.001143296
    %v1588 = vmul.f32 %v1574, %v1587
    %v1589 = vadd.f32 %v1588, 0.014752088
    %v1590 = vmul.f32 %v1574, %v1589
    %v1591 = vadd.f32 %v1590, 0.112945676
    %v1592 = vmul.f32 %v1574, %v1591
    %v1593 = vadd.f32 %v1592, 0.4994258
    %v1594 = vmul.f32 %v1574, %v1593
    %v1595 = vadd.f32 %v1594, 1.0
    %v1596 = vrcp.pop %v1595
    %v1597 = vmul.f32 %v1595, %v1596
    %v1598 = vsub.f32 1.0, %v1597
    %v1599 = vmul.f32 %v1596, %v1598
    %v1600 = vadd.f32 %v1596, %v1599
    %vm1601 = vweird.f32 %v1595
    %vm1602 = vweird.f32 %v1596
    %vm1603 = vmor %vm1601, %vm1602
    %v1604 = vsel %vm1603, %v1596, %v1600
    %v1605 = vand.u32 2147483647, %v1595
    %vm1606 = vcmp.eq.f32.partialorder %v1605, 8.507059e+37
    %v1607 = vand.u32 %v1595, 2147483648
    %v1608 = vor.u32 1.1754944e-38, %v1607
    %v1609 = vsel %vm1606, %v1608, %v1604
    %v1610 = vmul.f32 %v1585, %v1609
    %v1611 = vmin.f32 %v1610, 1.0
    %v1612 = vmax.f32 %v1611, -1.0
    %v1613 = vmul.f32 %v1530, %v1530
    %v1614 = vmin.f32 16.0, %v1613
    %v1615 = vmul.f32 %v1614, 2.1237322e-06
    %v1616 = vadd.f32 %v1615, 0.00028619796
    %v1617 = vmul.f32 %v1614, %v1616
    %v1618 = vadd.f32 %v1617, 0.0036580483
    %v1619 = vmul.f32 %v1614, %v1618
    %v1620 = vadd.f32 %v1619, 0.05243302
    %v1621 = vmul.f32 %v1614, %v1620
    %v1622 = vadd.f32 %v1621, 0.18741608
    %v1623 = vmul.f32 %v1614, %v1622
    %v1624 = vadd.f32 %v1623, 1.1283791
    %v1625 = vmul.f32 %v1530, %v1624
    %v1626 = vmul.f32 %v1614, 3.8918573e-05
    %v1627 = vadd.f32 %v1626, 0.001143296
    %v1628 = vmul.f32 %v1614, %v1627
    %v1629 = vadd.f32 %v1628, 0.014752088
    %v1630 = vmul.f32 %v1614, %v1629
    %v1631 = vadd.f32 %v1630, 0.112945676
    %v1632 = vmul.f32 %v1614, %v1631
    %v1633 = vadd.f32 %v1632, 0.4994258
    %v1634 = vmul.f32 %v1614, %v1633
    %v1635 = vadd.f32 %v1634, 1.0
    %v1636 = vrcp.pop %v1635
    %v1637 = vmul.f32 %v1635, %v1636
    %v1638 = vsub.f32 1.0, %v1637
    %v1639 = vmul.f32 %v1636, %v1638
    %v1640 = vadd.f32 %v1636, %v1639
    %vm1641 = vweird.f32 %v1635
    %vm1642 = vweird.f32 %v1636
    %vm1643 = vmor %vm1641, %vm1642
    %v1644 = vsel %vm1643, %v1636, %v1640
    %v1645 = vand.u32 2147483647, %v1635
    %vm1646 = vcmp.eq.f32.partialorder %v1645, 8.507059e+37
    %v1647 = vand.u32 %v1635, 2147483648
    %v1648 = vor.u32 1.1754944e-38, %v1647
    %v1649 = vsel %vm1646, %v1648, %v1644
    %v1650 = vmul.f32 %v1625, %v1649
    %v1651 = vmin.f32 %v1650, 1.0
    %v1652 = vmax.f32 %v1651, -1.0
    %v1653 = vmul.f32 %v1531, %v1531
    %v1654 = vmin.f32 16.0, %v1653
    %v1655 = vmul.f32 %v1654, 2.1237322e-06
    %v1656 = vadd.f32 %v1655, 0.00028619796
    %v1657 = vmul.f32 %v1654, %v1656
    %v1658 = vadd.f32 %v1657, 0.0036580483
    %v1659 = vmul.f32 %v1654, %v1658
    %v1660 = vadd.f32 %v1659, 0.05243302
    %v1661 = vmul.f32 %v1654, %v1660
    %v1662 = vadd.f32 %v1661, 0.18741608
    %v1663 = vmul.f32 %v1654, %v1662
    %v1664 = vadd.f32 %v1663, 1.1283791
    %v1665 = vmul.f32 %v1531, %v1664
    %v1666 = vmul.f32 %v1654, 3.8918573e-05
    %v1667 = vadd.f32 %v1666, 0.001143296
    %v1668 = vmul.f32 %v1654, %v1667
    %v1669 = vadd.f32 %v1668, 0.014752088
    %v1670 = vmul.f32 %v1654, %v1669
    %v1671 = vadd.f32 %v1670, 0.112945676
    %v1672 = vmul.f32 %v1654, %v1671
    %v1673 = vadd.f32 %v1672, 0.4994258
    %v1674 = vmul.f32 %v1654, %v1673
    %v1675 = vadd.f32 %v1674, 1.0
    %v1676 = vrcp.pop %v1675
    %v1677 = vmul.f32 %v1675, %v1676
    %v1678 = vsub.f32 1.0, %v1677
    %v1679 = vmul.f32 %v1676, %v1678
    %v1680 = vadd.f32 %v1676, %v1679
    %vm1681 = vweird.f32 %v1675
    %vm1682 = vweird.f32 %v1676
    %vm1683 = vmor %vm1681, %vm1682
    %v1684 = vsel %vm1683, %v1676, %v1680
    %v1685 = vand.u32 2147483647, %v1675
    %vm1686 = vcmp.eq.f32.partialorder %v1685, 8.507059e+37
    %v1687 = vand.u32 %v1675, 2147483648
    %v1688 = vor.u32 1.1754944e-38, %v1687
    %v1689 = vsel %vm1686, %v1688, %v1684
    %v1690 = vmul.f32 %v1665, %v1689
    %v1691 = vmin.f32 %v1690, 1.0
    %v1692 = vmax.f32 %v1691, -1.0
    %v1693 = vmul.f32 %v1532, %v1532
    %v1694 = vmin.f32 16.0, %v1693
    %v1695 = vmul.f32 %v1694, 2.1237322e-06
    %v1696 = vadd.f32 %v1695, 0.00028619796
    %v1697 = vmul.f32 %v1694, %v1696
    %v1698 = vadd.f32 %v1697, 0.0036580483
    %v1699 = vmul.f32 %v1694, %v1698
    %v1700 = vadd.f32 %v1699, 0.05243302
    %v1701 = vmul.f32 %v1694, %v1700
    %v1702 = vadd.f32 %v1701, 0.18741608
    %v1703 = vmul.f32 %v1694, %v1702
    %v1704 = vadd.f32 %v1703, 1.1283791
    %v1705 = vmul.f32 %v1532, %v1704
    %v1706 = vmul.f32 %v1694, 3.8918573e-05
    %v1707 = vadd.f32 %v1706, 0.001143296
    %v1708 = vmul.f32 %v1694, %v1707
    %v1709 = vadd.f32 %v1708, 0.014752088
    %v1710 = vmul.f32 %v1694, %v1709
    %v1711 = vadd.f32 %v1710, 0.112945676
    %v1712 = vmul.f32 %v1694, %v1711
    %v1713 = vadd.f32 %v1712, 0.4994258
    %v1714 = vmul.f32 %v1694, %v1713
    %v1715 = vadd.f32 %v1714, 1.0
    %v1716 = vrcp.pop %v1715
    %v1717 = vmul.f32 %v1715, %v1716
    %v1718 = vsub.f32 1.0, %v1717
    %v1719 = vmul.f32 %v1716, %v1718
    %v1720 = vadd.f32 %v1716, %v1719
    %vm1721 = vweird.f32 %v1715
    %vm1722 = vweird.f32 %v1716
    %vm1723 = vmor %vm1721, %vm1722
    %v1724 = vsel %vm1723, %v1716, %v1720
    %v1725 = vand.u32 2147483647, %v1715
    %vm1726 = vcmp.eq.f32.partialorder %v1725, 8.507059e+37
    %v1727 = vand.u32 %v1715, 2147483648
    %v1728 = vor.u32 1.1754944e-38, %v1727
    %v1729 = vsel %vm1726, %v1728, %v1724
    %v1730 = vmul.f32 %v1705, %v1729
    %v1731 = vmin.f32 %v1730, 1.0
    %v1732 = vmax.f32 %v1731, -1.0
    %v1733 = vadd.f32 %v1572, 1.0
    %v1734 = vadd.f32 %v1612, 1.0
    %v1735 = vadd.f32 %v1652, 1.0
    %v1736 = vadd.f32 %v1692, 1.0
    %v1737 = vadd.f32 %v1732, 1.0
    %v1738 = vmul.f32 %v1523, %v1733
    %v1739 = vmul.f32 %v1524, %v1734
    %v1740 = vmul.f32 %v1525, %v1735
    %v1741 = vmul.f32 %v1526, %v1736
    %v1742 = vmul.f32 %v1527, %v1737
    %v1743 = vld [vmem:[%s11] sm:$0xff]
    %v1744 = vld [vmem:[%s11 + $0x8] sm:$0xff]
    %v1745 = vld [vmem:[%s11 + $0x10] sm:$0xff]
    %v1746 = vld [vmem:[%s11 + $0x18] sm:$0xff]
    %v1747 = vld [vmem:[%s11 + $0x20] sm:$0xff]
    %v1748 = vld [vmem:[%s11 + $0x28] sm:$0xff]
    %v1749 = vld [vmem:[%s11 + $0x30] sm:$0xff]
    %v1750 = vld [vmem:[%s11 + $0x38] sm:$0xff]
    %v1751 = vld [vmem:[%s12] sm:$0x1]
    %v1753 = vperm.slane %v1751, 0
    %v1756 = vsel %vm75, %v1738, 0
    %v1759 = vsel %vm75, %v1739, 0
    %v1762 = vsel %vm75, %v1740, 0
    %v1765 = vsel %vm75, %v1741, 0
    %v1768 = vsel %vm75, %v1742, 0
    %1770 = vmatpush.msra.mxu0 0.0
    %1771 = vmatpush.msra.mxu0 0.0
    %1772 = vmatpush.msra.mxu0 0.0
    %1773 = vmatpush.msra.mxu0 0.0
    %1774 = vmatpush.msra.mxu0 0.0
    %1775 = vmatpush.msra.mxu0 0.0
    %1776 = vmatpush.msra.mxu0 0.0
    %1777 = vmatpush.msra.mxu0 0.0
    %1778 = vmatpush.msra.mxu0 %v1750
    %1779 = vmatpush.msra.mxu0 %v1749
    %1780 = vmatpush.msra.mxu0 %v1748
    %1781 = vmatpush.msra.mxu0 %v1747
    %1782 = vmatpush.msra.mxu0 %v1746
    %1783 = vmatpush.msra.mxu0 %v1745
    %1784 = vmatpush.msra.mxu0 %v1744
    %1785 = vmatpush.msra.mxu0 %v1743
    %1786 = vmatmul.f32.gmra.mxu0 %v1756
    %v1787 = vpop.f32.mrf.mxu0
    %v1788 = vadd.f32 %v1753, %v1787
    %1789 = vmatmul.f32.gmra.mxu0 %v1759
    %v1790 = vpop.f32.mrf.mxu0
    %v1791 = vadd.f32 %v1753, %v1790
    %1792 = vmatmul.f32.gmra.mxu0 %v1762
    %v1793 = vpop.f32.mrf.mxu0
    %v1794 = vadd.f32 %v1753, %v1793
    %1795 = vmatmul.f32.gmra.mxu0 %v1765
    %v1796 = vpop.f32.mrf.mxu0
    %v1797 = vadd.f32 %v1753, %v1796
    %1798 = vmatmul.f32.gmra.mxu0 %v1768
    %v1799 = vpop.f32.mrf.mxu0
    %v1800 = vadd.f32 %v1753, %v1799
    %1801 = vdwg.mxu0
    %v1802 = vadd.f32 %v1463, %v1788
    %v1803 = vadd.f32 %v1464, %v1791
    %v1804 = vadd.f32 %v1465, %v1794
    %v1805 = vadd.f32 %v1466, %v1797
    %v1806 = vadd.f32 %v1467, %v1800
    %v1807 = vld [vmem:[%s13] sm:$0x1]
    %v1808 = vld [vmem:[%s14] sm:$0x1]
    %v1809 = vsel %vm132, %v1802, 0.0
    %1810 = vadd.xlane.f32.xlu0 %v1809
    %v1811 = vpop.xlane.xlu0 %1810
    %v1812 = vsel %vm132, %v1803, 0.0
    %1813 = vadd.xlane.f32.xlu0 %v1812
    %v1814 = vpop.xlane.xlu0 %1813
    %v1815 = vsel %vm132, %v1804, 0.0
    %1816 = vadd.xlane.f32.xlu0 %v1815
    %v1817 = vpop.xlane.xlu0 %1816
    %v1818 = vsel %vm132, %v1805, 0.0
    %1819 = vadd.xlane.f32.xlu0 %v1818
    %v1820 = vpop.xlane.xlu0 %1819
    %v1821 = vsel %vm1346, %v1806, 0.0
    %1822 = vadd.xlane.f32.xlu0 %v1821
    %v1823 = vpop.xlane.xlu0 %1822
    %v1824 = vmul.f32 %v1811, %v1356
    %v1825 = vmul.f32 %v1814, %v1356
    %v1826 = vmul.f32 %v1817, %v1356
    %v1827 = vmul.f32 %v1820, %v1356
    %v1828 = vmul.f32 %v1823, %v1356
    %v1829 = vsub.f32 %v1802, %v1824
    %v1830 = vsub.f32 %v1803, %v1825
    %v1831 = vsub.f32 %v1804, %v1826
    %v1832 = vsub.f32 %v1805, %v1827
    %v1833 = vsub.f32 %v1806, %v1828
    %v1834 = vmul.f32 %v1829, %v1829
    %v1835 = vmul.f32 %v1830, %v1830
    %v1836 = vmul.f32 %v1831, %v1831
    %v1837 = vmul.f32 %v1832, %v1832
    %v1838 = vmul.f32 %v1833, %v1833
    %v1839 = vsel %vm132, %v1834, 0.0
    %1840 = vadd.xlane.f32.xlu0 %v1839
    %v1841 = vpop.xlane.xlu0 %1840
    %v1842 = vsel %vm132, %v1835, 0.0
    %1843 = vadd.xlane.f32.xlu0 %v1842
    %v1844 = vpop.xlane.xlu0 %1843
    %v1845 = vsel %vm132, %v1836, 0.0
    %1846 = vadd.xlane.f32.xlu0 %v1845
    %v1847 = vpop.xlane.xlu0 %1846
    %v1848 = vsel %vm132, %v1837, 0.0
    %1849 = vadd.xlane.f32.xlu0 %v1848
    %v1850 = vpop.xlane.xlu0 %1849
    %v1851 = vsel %vm1346, %v1838, 0.0
    %1852 = vadd.xlane.f32.xlu0 %v1851
    %v1853 = vpop.xlane.xlu0 %1852
    %v1854 = vmul.f32 %v1841, %v1356
    %v1855 = vmul.f32 %v1844, %v1356
    %v1856 = vmul.f32 %v1847, %v1356
    %v1857 = vmul.f32 %v1850, %v1356
    %v1858 = vmul.f32 %v1853, %v1356
    %v1859 = vadd.f32 %v1854, 1e-05
    %v1860 = vadd.f32 %v1855, 1e-05
    %v1861 = vadd.f32 %v1856, 1e-05
    %v1862 = vadd.f32 %v1857, 1e-05
    %v1863 = vadd.f32 %v1858, 1e-05
    %v1864 = vrsqrt.pop %v1859
    %v1865 = vmul.f32 %v1864, %v1859
    %v1866 = vmul.f32 %v1865, %v1864
    %v1867 = vmul.f32 0.5, %v1866
    %v1868 = vsub.f32 1.5, %v1867
    %v1869 = vmul.f32 %v1864, %v1868
    %vm1870 = vweird.f32 %v1859
    %vm1871 = vweird.f32 %v1864
    %vm1872 = vmor %vm1870, %vm1871
    %v1873 = vsel %vm1872, %v1864, %v1869
    %v1874 = vrsqrt.pop %v1860
    %v1875 = vmul.f32 %v1874, %v1860
    %v1876 = vmul.f32 %v1875, %v1874
    %v1877 = vmul.f32 0.5, %v1876
    %v1878 = vsub.f32 1.5, %v1877
    %v1879 = vmul.f32 %v1874, %v1878
    %vm1880 = vweird.f32 %v1860
    %vm1881 = vweird.f32 %v1874
    %vm1882 = vmor %vm1880, %vm1881
    %v1883 = vsel %vm1882, %v1874, %v1879
    %v1884 = vrsqrt.pop %v1861
    %v1885 = vmul.f32 %v1884, %v1861
    %v1886 = vmul.f32 %v1885, %v1884
    %v1887 = vmul.f32 0.5, %v1886
    %v1888 = vsub.f32 1.5, %v1887
    %v1889 = vmul.f32 %v1884, %v1888
    %vm1890 = vweird.f32 %v1861
    %vm1891 = vweird.f32 %v1884
    %vm1892 = vmor %vm1890, %vm1891
    %v1893 = vsel %vm1892, %v1884, %v1889
    %v1894 = vrsqrt.pop %v1862
    %v1895 = vmul.f32 %v1894, %v1862
    %v1896 = vmul.f32 %v1895, %v1894
    %v1897 = vmul.f32 0.5, %v1896
    %v1898 = vsub.f32 1.5, %v1897
    %v1899 = vmul.f32 %v1894, %v1898
    %vm1900 = vweird.f32 %v1862
    %vm1901 = vweird.f32 %v1894
    %vm1902 = vmor %vm1900, %vm1901
    %v1903 = vsel %vm1902, %v1894, %v1899
    %v1904 = vrsqrt.pop %v1863
    %v1905 = vmul.f32 %v1904, %v1863
    %v1906 = vmul.f32 %v1905, %v1904
    %v1907 = vmul.f32 0.5, %v1906
    %v1908 = vsub.f32 1.5, %v1907
    %v1909 = vmul.f32 %v1904, %v1908
    %vm1910 = vweird.f32 %v1863
    %vm1911 = vweird.f32 %v1904
    %vm1912 = vmor %vm1910, %vm1911
    %v1913 = vsel %vm1912, %v1904, %v1909
    %v1914 = vmul.f32 %v1829, %v1873
    %v1915 = vmul.f32 %v1830, %v1883
    %v1916 = vmul.f32 %v1831, %v1893
    %v1917 = vmul.f32 %v1832, %v1903
    %v1918 = vmul.f32 %v1833, %v1913
    %v1920 = vperm.slane %v1807, 0
    %v1922 = vmul.f32 %v1914, %v1920
    %v1923 = vmul.f32 %v1915, %v1920
    %v1924 = vmul.f32 %v1916, %v1920
    %v1925 = vmul.f32 %v1917, %v1920
    %v1926 = vmul.f32 %v1918, %v1920
    %v1928 = vperm.slane %v1808, 0
    %v1930 = vadd.f32 %v1922, %v1928
    %v1931 = vadd.f32 %v1923, %v1928
    %v1932 = vadd.f32 %v1924, %v1928
    %v1933 = vadd.f32 %v1925, %v1928
    %v1934 = vadd.f32 %v1926, %v1928
    %s1935 = scalar_lea.vmem %s5, 32
    %v1936 = vld [vmem:[%s1935] sm:$0xff]
    %v1937 = vld [vmem:[%s1935 + $0x8] sm:$0xff]
    %v1938 = vld [vmem:[%s1935 + $0x10] sm:$0xff]
    %v1939 = vld [vmem:[%s1935 + $0x18] sm:$0xff]
    %v1941 = vsel %vm132, %v1930, 0
    %v1944 = vsel %vm132, %v1931, 0
    %v1947 = vsel %vm132, %v1932, 0
    %v1950 = vsel %vm132, %v1933, 0
    %v1953 = vsel %vm132, %v1934, 0
    %1955 = vmatpush.msra.mxu0 0.0
    %1956 = vmatpush.msra.mxu0 0.0
    %1957 = vmatpush.msra.mxu0 0.0
    %1958 = vmatpush.msra.mxu0 0.0
    %1959 = vmatpush.msra.mxu0 0.0
    %1960 = vmatpush.msra.mxu0 0.0
    %1961 = vmatpush.msra.mxu0 0.0
    %1962 = vmatpush.msra.mxu0 0.0
    %1963 = vmatpush.msra.mxu0 0.0
    %1964 = vmatpush.msra.mxu0 0.0
    %1965 = vmatpush.msra.mxu0 0.0
    %1966 = vmatpush.msra.mxu0 0.0
    %1967 = vmatpush.msra.mxu0 %v1939
    %1968 = vmatpush.msra.mxu0 %v1938
    %1969 = vmatpush.msra.mxu0 %v1937
    %1970 = vmatpush.msra.mxu0 %v1936
    %1971 = vmatmul.f32.gmra.mxu0 %v1941
    %v1972 = vpop.f32.mrf.mxu0
    %v1973 = vadd.f32 0.0, %v1972
    %1974 = vmatmul.f32.gmra.mxu0 %v1944
    %v1975 = vpop.f32.mrf.mxu0
    %v1976 = vadd.f32 0.0, %v1975
    %1977 = vmatmul.f32.gmra.mxu0 %v1947
    %v1978 = vpop.f32.mrf.mxu0
    %v1979 = vadd.f32 0.0, %v1978
    %1980 = vmatmul.f32.gmra.mxu0 %v1950
    %v1981 = vpop.f32.mrf.mxu0
    %v1982 = vadd.f32 0.0, %v1981
    %1983 = vmatmul.f32.gmra.mxu0 %v1953
    %v1984 = vpop.f32.mrf.mxu0
    %v1985 = vadd.f32 0.0, %v1984
    %1986 = vdwg.mxu0
    %1992 = vrot.lane.b32.xlu0 %v1973, 96
    %v1993 = vpop.permute.xlu0 %1992
    %1994 = vrot.lane.b32.xlu0 %v1976, 96
    %v1995 = vpop.permute.xlu0 %1994
    %1996 = vrot.lane.b32.xlu0 %v1979, 96
    %v1997 = vpop.permute.xlu0 %1996
    %1998 = vrot.lane.b32.xlu0 %v1982, 96
    %v1999 = vpop.permute.xlu0 %1998
    %2000 = vrot.lane.b32.xlu0 %v1985, 96
    %v2001 = vpop.permute.xlu0 %2000
    %v2002 = vsel %vm195, %v1973, 0
    %v2004 = vsel %vm195, %v1976, 0
    %v2006 = vsel %vm195, %v1979, 0
    %v2008 = vsel %vm195, %v1982, 0
    %v2010 = vsel %vm195, %v1985, 0
    %v2012 = vsel %vm195, %v1993, 0
    %v2014 = vsel %vm195, %v1995, 0
    %v2016 = vsel %vm195, %v1997, 0
    %v2018 = vsel %vm195, %v1999, 0
    %v2020 = vsel %vm195, %v2001, 0
    %2022 = vmatpush.xpose.msra.mxu0 0.0
    %2023 = vmatpush.xpose.msra.mxu0 0.0
    %2024 = vmatpush.xpose.msra.mxu0 0.0
    %2025 = vmatpush.xpose.msra.mxu0 0.0
    %2026 = vmatpush.xpose.msra.mxu0 0.0
    %2027 = vmatpush.xpose.msra.mxu0 0.0
    %2028 = vmatpush.xpose.msra.mxu0 0.0
    %2029 = vmatpush.xpose.msra.mxu0 0.0
    %2030 = vmatpush.xpose.msra.mxu0 0.0
    %2031 = vmatpush.xpose.msra.mxu0 0.0
    %2032 = vmatpush.xpose.msra.mxu0 0.0
    %2033 = vmatpush.xpose.msra.mxu0 %v2020
    %2034 = vmatpush.xpose.msra.mxu0 %v2018
    %2035 = vmatpush.xpose.msra.mxu0 %v2016
    %2036 = vmatpush.xpose.msra.mxu0 %v2014
    %2037 = vmatpush.xpose.msra.mxu0 %v2012
    %2038 = vmatmul.f32.gmra.mxu0 %v2002
    %v2039 = vpop.f32.mrf.mxu0
    %v2040 = vadd.f32 %v123, %v2039
    %2041 = vmatmul.f32.gmra.mxu0 %v2004
    %v2042 = vpop.f32.mrf.mxu0
    %v2043 = vadd.f32 %v124, %v2042
    %2044 = vmatmul.f32.gmra.mxu0 %v2006
    %v2045 = vpop.f32.mrf.mxu0
    %v2046 = vadd.f32 %v125, %v2045
    %2047 = vmatmul.f32.gmra.mxu0 %v2008
    %v2048 = vpop.f32.mrf.mxu0
    %v2049 = vadd.f32 %v126, %v2048
    %2050 = vmatmul.f32.gmra.mxu0 %v2010
    %v2051 = vpop.f32.mrf.mxu0
    %v2052 = vadd.f32 %v127, %v2051
    %2053 = vdwg.mxu0
    %v2054 = vsel %vm248, %v2040, -inf
    %2055 = vmax.xlane.f32.xlu0 %v2054
    %v2056 = vpop.xlane.xlu0 %2055
    %v2057 = vsel %vm248, %v2043, -inf
    %2058 = vmax.xlane.f32.xlu0 %v2057
    %v2059 = vpop.xlane.xlu0 %2058
    %v2060 = vsel %vm248, %v2046, -inf
    %2061 = vmax.xlane.f32.xlu0 %v2060
    %v2062 = vpop.xlane.xlu0 %2061
    %v2063 = vsel %vm248, %v2049, -inf
    %2064 = vmax.xlane.f32.xlu0 %v2063
    %v2065 = vpop.xlane.xlu0 %2064
    %v2066 = vsel %vm261, %v2052, -inf
    %2067 = vmax.xlane.f32.xlu0 %v2066
    %v2068 = vpop.xlane.xlu0 %2067
    %v2069 = vsub.f32 %v2040, %v2056
    %v2070 = vsub.f32 %v2043, %v2059
    %v2071 = vsub.f32 %v2046, %v2062
    %v2072 = vsub.f32 %v2049, %v2065
    %v2073 = vsub.f32 %v2052, %v2068
    %v2074 = vmul.f32 %v2069, 1.442695
    %v2075 = vpow.pop %v2074
    %v2076 = vmul.f32 %v2070, 1.442695
    %v2077 = vpow.pop %v2076
    %v2078 = vmul.f32 %v2071, 1.442695
    %v2079 = vpow.pop %v2078
    %v2080 = vmul.f32 %v2072, 1.442695
    %v2081 = vpow.pop %v2080
    %v2082 = vmul.f32 %v2073, 1.442695
    %v2083 = vpow.pop %v2082
    %v2084 = vsel %vm248, %v2075, 0.0
    %2085 = vadd.xlane.f32.xlu0 %v2084
    %v2086 = vpop.xlane.xlu0 %2085
    %v2087 = vsel %vm248, %v2077, 0.0
    %2088 = vadd.xlane.f32.xlu0 %v2087
    %v2089 = vpop.xlane.xlu0 %2088
    %v2090 = vsel %vm248, %v2079, 0.0
    %2091 = vadd.xlane.f32.xlu0 %v2090
    %v2092 = vpop.xlane.xlu0 %2091
    %v2093 = vsel %vm248, %v2081, 0.0
    %2094 = vadd.xlane.f32.xlu0 %v2093
    %v2095 = vpop.xlane.xlu0 %2094
    %v2096 = vsel %vm261, %v2083, 0.0
    %2097 = vadd.xlane.f32.xlu0 %v2096
    %v2098 = vpop.xlane.xlu0 %2097
    %v2099 = vrcp.pop %v2086
    %v2100 = vmul.f32 %v2086, %v2099
    %v2101 = vsub.f32 1.0, %v2100
    %v2102 = vmul.f32 %v2099, %v2101
    %v2103 = vadd.f32 %v2099, %v2102
    %vm2104 = vweird.f32 %v2086
    %vm2105 = vweird.f32 %v2099
    %vm2106 = vmor %vm2104, %vm2105
    %v2107 = vsel %vm2106, %v2099, %v2103
    %v2108 = vand.u32 2147483647, %v2086
    %vm2109 = vcmp.eq.f32.partialorder %v2108, 8.507059e+37
    %v2110 = vand.u32 %v2086, 2147483648
    %v2111 = vor.u32 1.1754944e-38, %v2110
    %v2112 = vsel %vm2109, %v2111, %v2107
    %v2113 = vmul.f32 %v2075, %v2112
    %v2114 = vrcp.pop %v2089
    %v2115 = vmul.f32 %v2089, %v2114
    %v2116 = vsub.f32 1.0, %v2115
    %v2117 = vmul.f32 %v2114, %v2116
    %v2118 = vadd.f32 %v2114, %v2117
    %vm2119 = vweird.f32 %v2089
    %vm2120 = vweird.f32 %v2114
    %vm2121 = vmor %vm2119, %vm2120
    %v2122 = vsel %vm2121, %v2114, %v2118
    %v2123 = vand.u32 2147483647, %v2089
    %vm2124 = vcmp.eq.f32.partialorder %v2123, 8.507059e+37
    %v2125 = vand.u32 %v2089, 2147483648
    %v2126 = vor.u32 1.1754944e-38, %v2125
    %v2127 = vsel %vm2124, %v2126, %v2122
    %v2128 = vmul.f32 %v2077, %v2127
    %v2129 = vrcp.pop %v2092
    %v2130 = vmul.f32 %v2092, %v2129
    %v2131 = vsub.f32 1.0, %v2130
    %v2132 = vmul.f32 %v2129, %v2131
    %v2133 = vadd.f32 %v2129, %v2132
    %vm2134 = vweird.f32 %v2092
    %vm2135 = vweird.f32 %v2129
    %vm2136 = vmor %vm2134, %vm2135
    %v2137 = vsel %vm2136, %v2129, %v2133
    %v2138 = vand.u32 2147483647, %v2092
    %vm2139 = vcmp.eq.f32.partialorder %v2138, 8.507059e+37
    %v2140 = vand.u32 %v2092, 2147483648
    %v2141 = vor.u32 1.1754944e-38, %v2140
    %v2142 = vsel %vm2139, %v2141, %v2137
    %v2143 = vmul.f32 %v2079, %v2142
    %v2144 = vrcp.pop %v2095
    %v2145 = vmul.f32 %v2095, %v2144
    %v2146 = vsub.f32 1.0, %v2145
    %v2147 = vmul.f32 %v2144, %v2146
    %v2148 = vadd.f32 %v2144, %v2147
    %vm2149 = vweird.f32 %v2095
    %vm2150 = vweird.f32 %v2144
    %vm2151 = vmor %vm2149, %vm2150
    %v2152 = vsel %vm2151, %v2144, %v2148
    %v2153 = vand.u32 2147483647, %v2095
    %vm2154 = vcmp.eq.f32.partialorder %v2153, 8.507059e+37
    %v2155 = vand.u32 %v2095, 2147483648
    %v2156 = vor.u32 1.1754944e-38, %v2155
    %v2157 = vsel %vm2154, %v2156, %v2152
    %v2158 = vmul.f32 %v2081, %v2157
    %v2159 = vrcp.pop %v2098
    %v2160 = vmul.f32 %v2098, %v2159
    %v2161 = vsub.f32 1.0, %v2160
    %v2162 = vmul.f32 %v2159, %v2161
    %v2163 = vadd.f32 %v2159, %v2162
    %vm2164 = vweird.f32 %v2098
    %vm2165 = vweird.f32 %v2159
    %vm2166 = vmor %vm2164, %vm2165
    %v2167 = vsel %vm2166, %v2159, %v2163
    %v2168 = vand.u32 2147483647, %v2098
    %vm2169 = vcmp.eq.f32.partialorder %v2168, 8.507059e+37
    %v2170 = vand.u32 %v2098, 2147483648
    %v2171 = vor.u32 1.1754944e-38, %v2170
    %v2172 = vsel %vm2169, %v2171, %v2167
    %v2173 = vmul.f32 %v2083, %v2172
    %2174 = vrot.lane.b32.xlu0 %v1973, 64
    %v2175 = vpop.permute.xlu0 %2174
    %2176 = vrot.lane.b32.xlu0 %v1976, 64
    %v2177 = vpop.permute.xlu0 %2176
    %2178 = vrot.lane.b32.xlu0 %v1979, 64
    %v2179 = vpop.permute.xlu0 %2178
    %2180 = vrot.lane.b32.xlu0 %v1982, 64
    %v2181 = vpop.permute.xlu0 %2180
    %2182 = vrot.lane.b32.xlu0 %v1985, 64
    %v2183 = vpop.permute.xlu0 %2182
    %v2189 = vsel %vm248, %v2113, 0
    %v2192 = vsel %vm248, %v2128, 0
    %v2195 = vsel %vm248, %v2143, 0
    %v2198 = vsel %vm248, %v2158, 0
    %v2201 = vsel %vm248, %v2173, 0
    %v2203 = vsel %vm399, %v2183, 0
    %2205 = vmatpush.msra.mxu0 0.0
    %2206 = vmatpush.msra.mxu0 0.0
    %2207 = vmatpush.msra.mxu0 0.0
    %2208 = vmatpush.msra.mxu0 0.0
    %2209 = vmatpush.msra.mxu0 0.0
    %2210 = vmatpush.msra.mxu0 0.0
    %2211 = vmatpush.msra.mxu0 0.0
    %2212 = vmatpush.msra.mxu0 0.0
    %2213 = vmatpush.msra.mxu0 0.0
    %2214 = vmatpush.msra.mxu0 0.0
    %2215 = vmatpush.msra.mxu0 0.0
    %2216 = vmatpush.msra.mxu0 %v2203
    %2217 = vmatpush.msra.mxu0 %v2181
    %2218 = vmatpush.msra.mxu0 %v2179
    %2219 = vmatpush.msra.mxu0 %v2177
    %2220 = vmatpush.msra.mxu0 %v2175
    %2221 = vmatmul.f32.gmra.mxu0 %v2189
    %v2222 = vpop.f32.mrf.mxu0
    %v2223 = vadd.f32 0.0, %v2222
    %2224 = vmatmul.f32.gmra.mxu0 %v2192
    %v2225 = vpop.f32.mrf.mxu0
    %v2226 = vadd.f32 0.0, %v2225
    %2227 = vmatmul.f32.gmra.mxu0 %v2195
    %v2228 = vpop.f32.mrf.mxu0
    %v2229 = vadd.f32 0.0, %v2228
    %2230 = vmatmul.f32.gmra.mxu0 %v2198
    %v2231 = vpop.f32.mrf.mxu0
    %v2232 = vadd.f32 0.0, %v2231
    %2233 = vmatmul.f32.gmra.mxu0 %v2201
    %v2234 = vpop.f32.mrf.mxu0
    %v2235 = vadd.f32 0.0, %v2234
    %2236 = vdwg.mxu0
    %2237 = vrot.lane.b32.xlu0 %v1973, 120
    %v2238 = vpop.permute.xlu0 %2237
    %2239 = vrot.lane.b32.xlu0 %v1976, 120
    %v2240 = vpop.permute.xlu0 %2239
    %2241 = vrot.lane.b32.xlu0 %v1979, 120
    %v2242 = vpop.permute.xlu0 %2241
    %2243 = vrot.lane.b32.xlu0 %v1982, 120
    %v2244 = vpop.permute.xlu0 %2243
    %2245 = vrot.lane.b32.xlu0 %v1985, 120
    %v2246 = vpop.permute.xlu0 %2245
    %2247 = vrot.lane.b32.xlu0 %v1973, 88
    %v2248 = vpop.permute.xlu0 %2247
    %2249 = vrot.lane.b32.xlu0 %v1976, 88
    %v2250 = vpop.permute.xlu0 %2249
    %2251 = vrot.lane.b32.xlu0 %v1979, 88
    %v2252 = vpop.permute.xlu0 %2251
    %2253 = vrot.lane.b32.xlu0 %v1982, 88
    %v2254 = vpop.permute.xlu0 %2253
    %2255 = vrot.lane.b32.xlu0 %v1985, 88
    %v2256 = vpop.permute.xlu0 %2255
    %v2257 = vsel %vm195, %v2238, 0
    %v2259 = vsel %vm195, %v2240, 0
    %v2261 = vsel %vm195, %v2242, 0
    %v2263 = vsel %vm195, %v2244, 0
    %v2265 = vsel %vm195, %v2246, 0
    %v2267 = vsel %vm195, %v2248, 0
    %v2269 = vsel %vm195, %v2250, 0
    %v2271 = vsel %vm195, %v2252, 0
    %v2273 = vsel %vm195, %v2254, 0
    %v2275 = vsel %vm195, %v2256, 0
    %2277 = vmatpush.xpose.msra.mxu0 0.0
    %2278 = vmatpush.xpose.msra.mxu0 0.0
    %2279 = vmatpush.xpose.msra.mxu0 0.0
    %2280 = vmatpush.xpose.msra.mxu0 0.0
    %2281 = vmatpush.xpose.msra.mxu0 0.0
    %2282 = vmatpush.xpose.msra.mxu0 0.0
    %2283 = vmatpush.xpose.msra.mxu0 0.0
    %2284 = vmatpush.xpose.msra.mxu0 0.0
    %2285 = vmatpush.xpose.msra.mxu0 0.0
    %2286 = vmatpush.xpose.msra.mxu0 0.0
    %2287 = vmatpush.xpose.msra.mxu0 0.0
    %2288 = vmatpush.xpose.msra.mxu0 %v2275
    %2289 = vmatpush.xpose.msra.mxu0 %v2273
    %2290 = vmatpush.xpose.msra.mxu0 %v2271
    %2291 = vmatpush.xpose.msra.mxu0 %v2269
    %2292 = vmatpush.xpose.msra.mxu0 %v2267
    %2293 = vmatmul.f32.gmra.mxu0 %v2257
    %v2294 = vpop.f32.mrf.mxu0
    %v2295 = vadd.f32 %v123, %v2294
    %2296 = vmatmul.f32.gmra.mxu0 %v2259
    %v2297 = vpop.f32.mrf.mxu0
    %v2298 = vadd.f32 %v124, %v2297
    %2299 = vmatmul.f32.gmra.mxu0 %v2261
    %v2300 = vpop.f32.mrf.mxu0
    %v2301 = vadd.f32 %v125, %v2300
    %2302 = vmatmul.f32.gmra.mxu0 %v2263
    %v2303 = vpop.f32.mrf.mxu0
    %v2304 = vadd.f32 %v126, %v2303
    %2305 = vmatmul.f32.gmra.mxu0 %v2265
    %v2306 = vpop.f32.mrf.mxu0
    %v2307 = vadd.f32 %v127, %v2306
    %2308 = vdwg.mxu0
    %v2309 = vsel %vm248, %v2295, -inf
    %2310 = vmax.xlane.f32.xlu0 %v2309
    %v2311 = vpop.xlane.xlu0 %2310
    %v2312 = vsel %vm248, %v2298, -inf
    %2313 = vmax.xlane.f32.xlu0 %v2312
    %v2314 = vpop.xlane.xlu0 %2313
    %v2315 = vsel %vm248, %v2301, -inf
    %2316 = vmax.xlane.f32.xlu0 %v2315
    %v2317 = vpop.xlane.xlu0 %2316
    %v2318 = vsel %vm248, %v2304, -inf
    %2319 = vmax.xlane.f32.xlu0 %v2318
    %v2320 = vpop.xlane.xlu0 %2319
    %v2321 = vsel %vm261, %v2307, -inf
    %2322 = vmax.xlane.f32.xlu0 %v2321
    %v2323 = vpop.xlane.xlu0 %2322
    %v2324 = vsub.f32 %v2295, %v2311
    %v2325 = vsub.f32 %v2298, %v2314
    %v2326 = vsub.f32 %v2301, %v2317
    %v2327 = vsub.f32 %v2304, %v2320
    %v2328 = vsub.f32 %v2307, %v2323
    %v2329 = vmul.f32 %v2324, 1.442695
    %v2330 = vpow.pop %v2329
    %v2331 = vmul.f32 %v2325, 1.442695
    %v2332 = vpow.pop %v2331
    %v2333 = vmul.f32 %v2326, 1.442695
    %v2334 = vpow.pop %v2333
    %v2335 = vmul.f32 %v2327, 1.442695
    %v2336 = vpow.pop %v2335
    %v2337 = vmul.f32 %v2328, 1.442695
    %v2338 = vpow.pop %v2337
    %v2339 = vsel %vm248, %v2330, 0.0
    %2340 = vadd.xlane.f32.xlu0 %v2339
    %v2341 = vpop.xlane.xlu0 %2340
    %v2342 = vsel %vm248, %v2332, 0.0
    %2343 = vadd.xlane.f32.xlu0 %v2342
    %v2344 = vpop.xlane.xlu0 %2343
    %v2345 = vsel %vm248, %v2334, 0.0
    %2346 = vadd.xlane.f32.xlu0 %v2345
    %v2347 = vpop.xlane.xlu0 %2346
    %v2348 = vsel %vm248, %v2336, 0.0
    %2349 = vadd.xlane.f32.xlu0 %v2348
    %v2350 = vpop.xlane.xlu0 %2349
    %v2351 = vsel %vm261, %v2338, 0.0
    %2352 = vadd.xlane.f32.xlu0 %v2351
    %v2353 = vpop.xlane.xlu0 %2352
    %v2354 = vrcp.pop %v2341
    %v2355 = vmul.f32 %v2341, %v2354
    %v2356 = vsub.f32 1.0, %v2355
    %v2357 = vmul.f32 %v2354, %v2356
    %v2358 = vadd.f32 %v2354, %v2357
    %vm2359 = vweird.f32 %v2341
    %vm2360 = vweird.f32 %v2354
    %vm2361 = vmor %vm2359, %vm2360
    %v2362 = vsel %vm2361, %v2354, %v2358
    %v2363 = vand.u32 2147483647, %v2341
    %vm2364 = vcmp.eq.f32.partialorder %v2363, 8.507059e+37
    %v2365 = vand.u32 %v2341, 2147483648
    %v2366 = vor.u32 1.1754944e-38, %v2365
    %v2367 = vsel %vm2364, %v2366, %v2362
    %v2368 = vmul.f32 %v2330, %v2367
    %v2369 = vrcp.pop %v2344
    %v2370 = vmul.f32 %v2344, %v2369
    %v2371 = vsub.f32 1.0, %v2370
    %v2372 = vmul.f32 %v2369, %v2371
    %v2373 = vadd.f32 %v2369, %v2372
    %vm2374 = vweird.f32 %v2344
    %vm2375 = vweird.f32 %v2369
    %vm2376 = vmor %vm2374, %vm2375
    %v2377 = vsel %vm2376, %v2369, %v2373
    %v2378 = vand.u32 2147483647, %v2344
    %vm2379 = vcmp.eq.f32.partialorder %v2378, 8.507059e+37
    %v2380 = vand.u32 %v2344, 2147483648
    %v2381 = vor.u32 1.1754944e-38, %v2380
    %v2382 = vsel %vm2379, %v2381, %v2377
    %v2383 = vmul.f32 %v2332, %v2382
    %v2384 = vrcp.pop %v2347
    %v2385 = vmul.f32 %v2347, %v2384
    %v2386 = vsub.f32 1.0, %v2385
    %v2387 = vmul.f32 %v2384, %v2386
    %v2388 = vadd.f32 %v2384, %v2387
    %vm2389 = vweird.f32 %v2347
    %vm2390 = vweird.f32 %v2384
    %vm2391 = vmor %vm2389, %vm2390
    %v2392 = vsel %vm2391, %v2384, %v2388
    %v2393 = vand.u32 2147483647, %v2347
    %vm2394 = vcmp.eq.f32.partialorder %v2393, 8.507059e+37
    %v2395 = vand.u32 %v2347, 2147483648
    %v2396 = vor.u32 1.1754944e-38, %v2395
    %v2397 = vsel %vm2394, %v2396, %v2392
    %v2398 = vmul.f32 %v2334, %v2397
    %v2399 = vrcp.pop %v2350
    %v2400 = vmul.f32 %v2350, %v2399
    %v2401 = vsub.f32 1.0, %v2400
    %v2402 = vmul.f32 %v2399, %v2401
    %v2403 = vadd.f32 %v2399, %v2402
    %vm2404 = vweird.f32 %v2350
    %vm2405 = vweird.f32 %v2399
    %vm2406 = vmor %vm2404, %vm2405
    %v2407 = vsel %vm2406, %v2399, %v2403
    %v2408 = vand.u32 2147483647, %v2350
    %vm2409 = vcmp.eq.f32.partialorder %v2408, 8.507059e+37
    %v2410 = vand.u32 %v2350, 2147483648
    %v2411 = vor.u32 1.1754944e-38, %v2410
    %v2412 = vsel %vm2409, %v2411, %v2407
    %v2413 = vmul.f32 %v2336, %v2412
    %v2414 = vrcp.pop %v2353
    %v2415 = vmul.f32 %v2353, %v2414
    %v2416 = vsub.f32 1.0, %v2415
    %v2417 = vmul.f32 %v2414, %v2416
    %v2418 = vadd.f32 %v2414, %v2417
    %vm2419 = vweird.f32 %v2353
    %vm2420 = vweird.f32 %v2414
    %vm2421 = vmor %vm2419, %vm2420
    %v2422 = vsel %vm2421, %v2414, %v2418
    %v2423 = vand.u32 2147483647, %v2353
    %vm2424 = vcmp.eq.f32.partialorder %v2423, 8.507059e+37
    %v2425 = vand.u32 %v2353, 2147483648
    %v2426 = vor.u32 1.1754944e-38, %v2425
    %v2427 = vsel %vm2424, %v2426, %v2422
    %v2428 = vmul.f32 %v2338, %v2427
    %2429 = vrot.lane.b32.xlu0 %v1973, 56
    %v2430 = vpop.permute.xlu0 %2429
    %2431 = vrot.lane.b32.xlu0 %v1976, 56
    %v2432 = vpop.permute.xlu0 %2431
    %2433 = vrot.lane.b32.xlu0 %v1979, 56
    %v2434 = vpop.permute.xlu0 %2433
    %2435 = vrot.lane.b32.xlu0 %v1982, 56
    %v2436 = vpop.permute.xlu0 %2435
    %2437 = vrot.lane.b32.xlu0 %v1985, 56
    %v2438 = vpop.permute.xlu0 %2437
    %v2444 = vsel %vm248, %v2368, 0
    %v2447 = vsel %vm248, %v2383, 0
    %v2450 = vsel %vm248, %v2398, 0
    %v2453 = vsel %vm248, %v2413, 0
    %v2456 = vsel %vm248, %v2428, 0
    %v2458 = vsel %vm399, %v2438, 0
    %2460 = vmatpush.msra.mxu0 0.0
    %2461 = vmatpush.msra.mxu0 0.0
    %2462 = vmatpush.msra.mxu0 0.0
    %2463 = vmatpush.msra.mxu0 0.0
    %2464 = vmatpush.msra.mxu0 0.0
    %2465 = vmatpush.msra.mxu0 0.0
    %2466 = vmatpush.msra.mxu0 0.0
    %2467 = vmatpush.msra.mxu0 0.0
    %2468 = vmatpush.msra.mxu0 0.0
    %2469 = vmatpush.msra.mxu0 0.0
    %2470 = vmatpush.msra.mxu0 0.0
    %2471 = vmatpush.msra.mxu0 %v2458
    %2472 = vmatpush.msra.mxu0 %v2436
    %2473 = vmatpush.msra.mxu0 %v2434
    %2474 = vmatpush.msra.mxu0 %v2432
    %2475 = vmatpush.msra.mxu0 %v2430
    %2476 = vmatmul.f32.gmra.mxu0 %v2444
    %v2477 = vpop.f32.mrf.mxu0
    %v2478 = vadd.f32 0.0, %v2477
    %2479 = vmatmul.f32.gmra.mxu0 %v2447
    %v2480 = vpop.f32.mrf.mxu0
    %v2481 = vadd.f32 0.0, %v2480
    %2482 = vmatmul.f32.gmra.mxu0 %v2450
    %v2483 = vpop.f32.mrf.mxu0
    %v2484 = vadd.f32 0.0, %v2483
    %2485 = vmatmul.f32.gmra.mxu0 %v2453
    %v2486 = vpop.f32.mrf.mxu0
    %v2487 = vadd.f32 0.0, %v2486
    %2488 = vmatmul.f32.gmra.mxu0 %v2456
    %v2489 = vpop.f32.mrf.mxu0
    %v2490 = vadd.f32 0.0, %v2489
    %2491 = vdwg.mxu0
    %2492 = vrot.lane.b32.xlu0 %v1973, 112
    %v2493 = vpop.permute.xlu0 %2492
    %2494 = vrot.lane.b32.xlu0 %v1976, 112
    %v2495 = vpop.permute.xlu0 %2494
    %2496 = vrot.lane.b32.xlu0 %v1979, 112
    %v2497 = vpop.permute.xlu0 %2496
    %2498 = vrot.lane.b32.xlu0 %v1982, 112
    %v2499 = vpop.permute.xlu0 %2498
    %2500 = vrot.lane.b32.xlu0 %v1985, 112
    %v2501 = vpop.permute.xlu0 %2500
    %2502 = vrot.lane.b32.xlu0 %v1973, 80
    %v2503 = vpop.permute.xlu0 %2502
    %2504 = vrot.lane.b32.xlu0 %v1976, 80
    %v2505 = vpop.permute.xlu0 %2504
    %2506 = vrot.lane.b32.xlu0 %v1979, 80
    %v2507 = vpop.permute.xlu0 %2506
    %2508 = vrot.lane.b32.xlu0 %v1982, 80
    %v2509 = vpop.permute.xlu0 %2508
    %2510 = vrot.lane.b32.xlu0 %v1985, 80
    %v2511 = vpop.permute.xlu0 %2510
    %v2512 = vsel %vm195, %v2493, 0
    %v2514 = vsel %vm195, %v2495, 0
    %v2516 = vsel %vm195, %v2497, 0
    %v2518 = vsel %vm195, %v2499, 0
    %v2520 = vsel %vm195, %v2501, 0
    %v2522 = vsel %vm195, %v2503, 0
    %v2524 = vsel %vm195, %v2505, 0
    %v2526 = vsel %vm195, %v2507, 0
    %v2528 = vsel %vm195, %v2509, 0
    %v2530 = vsel %vm195, %v2511, 0
    %2532 = vmatpush.xpose.msra.mxu0 0.0
    %2533 = vmatpush.xpose.msra.mxu0 0.0
    %2534 = vmatpush.xpose.msra.mxu0 0.0
    %2535 = vmatpush.xpose.msra.mxu0 0.0
    %2536 = vmatpush.xpose.msra.mxu0 0.0
    %2537 = vmatpush.xpose.msra.mxu0 0.0
    %2538 = vmatpush.xpose.msra.mxu0 0.0
    %2539 = vmatpush.xpose.msra.mxu0 0.0
    %2540 = vmatpush.xpose.msra.mxu0 0.0
    %2541 = vmatpush.xpose.msra.mxu0 0.0
    %2542 = vmatpush.xpose.msra.mxu0 0.0
    %2543 = vmatpush.xpose.msra.mxu0 %v2530
    %2544 = vmatpush.xpose.msra.mxu0 %v2528
    %2545 = vmatpush.xpose.msra.mxu0 %v2526
    %2546 = vmatpush.xpose.msra.mxu0 %v2524
    %2547 = vmatpush.xpose.msra.mxu0 %v2522
    %2548 = vmatmul.f32.gmra.mxu0 %v2512
    %v2549 = vpop.f32.mrf.mxu0
    %v2550 = vadd.f32 %v123, %v2549
    %2551 = vmatmul.f32.gmra.mxu0 %v2514
    %v2552 = vpop.f32.mrf.mxu0
    %v2553 = vadd.f32 %v124, %v2552
    %2554 = vmatmul.f32.gmra.mxu0 %v2516
    %v2555 = vpop.f32.mrf.mxu0
    %v2556 = vadd.f32 %v125, %v2555
    %2557 = vmatmul.f32.gmra.mxu0 %v2518
    %v2558 = vpop.f32.mrf.mxu0
    %v2559 = vadd.f32 %v126, %v2558
    %2560 = vmatmul.f32.gmra.mxu0 %v2520
    %v2561 = vpop.f32.mrf.mxu0
    %v2562 = vadd.f32 %v127, %v2561
    %2563 = vdwg.mxu0
    %v2564 = vsel %vm248, %v2550, -inf
    %2565 = vmax.xlane.f32.xlu0 %v2564
    %v2566 = vpop.xlane.xlu0 %2565
    %v2567 = vsel %vm248, %v2553, -inf
    %2568 = vmax.xlane.f32.xlu0 %v2567
    %v2569 = vpop.xlane.xlu0 %2568
    %v2570 = vsel %vm248, %v2556, -inf
    %2571 = vmax.xlane.f32.xlu0 %v2570
    %v2572 = vpop.xlane.xlu0 %2571
    %v2573 = vsel %vm248, %v2559, -inf
    %2574 = vmax.xlane.f32.xlu0 %v2573
    %v2575 = vpop.xlane.xlu0 %2574
    %v2576 = vsel %vm261, %v2562, -inf
    %2577 = vmax.xlane.f32.xlu0 %v2576
    %v2578 = vpop.xlane.xlu0 %2577
    %v2579 = vsub.f32 %v2550, %v2566
    %v2580 = vsub.f32 %v2553, %v2569
    %v2581 = vsub.f32 %v2556, %v2572
    %v2582 = vsub.f32 %v2559, %v2575
    %v2583 = vsub.f32 %v2562, %v2578
    %v2584 = vmul.f32 %v2579, 1.442695
    %v2585 = vpow.pop %v2584
    %v2586 = vmul.f32 %v2580, 1.442695
    %v2587 = vpow.pop %v2586
    %v2588 = vmul.f32 %v2581, 1.442695
    %v2589 = vpow.pop %v2588
    %v2590 = vmul.f32 %v2582, 1.442695
    %v2591 = vpow.pop %v2590
    %v2592 = vmul.f32 %v2583, 1.442695
    %v2593 = vpow.pop %v2592
    %v2594 = vsel %vm248, %v2585, 0.0
    %2595 = vadd.xlane.f32.xlu0 %v2594
    %v2596 = vpop.xlane.xlu0 %2595
    %v2597 = vsel %vm248, %v2587, 0.0
    %2598 = vadd.xlane.f32.xlu0 %v2597
    %v2599 = vpop.xlane.xlu0 %2598
    %v2600 = vsel %vm248, %v2589, 0.0
    %2601 = vadd.xlane.f32.xlu0 %v2600
    %v2602 = vpop.xlane.xlu0 %2601
    %v2603 = vsel %vm248, %v2591, 0.0
    %2604 = vadd.xlane.f32.xlu0 %v2603
    %v2605 = vpop.xlane.xlu0 %2604
    %v2606 = vsel %vm261, %v2593, 0.0
    %2607 = vadd.xlane.f32.xlu0 %v2606
    %v2608 = vpop.xlane.xlu0 %2607
    %v2609 = vrcp.pop %v2596
    %v2610 = vmul.f32 %v2596, %v2609
    %v2611 = vsub.f32 1.0, %v2610
    %v2612 = vmul.f32 %v2609, %v2611
    %v2613 = vadd.f32 %v2609, %v2612
    %vm2614 = vweird.f32 %v2596
    %vm2615 = vweird.f32 %v2609
    %vm2616 = vmor %vm2614, %vm2615
    %v2617 = vsel %vm2616, %v2609, %v2613
    %v2618 = vand.u32 2147483647, %v2596
    %vm2619 = vcmp.eq.f32.partialorder %v2618, 8.507059e+37
    %v2620 = vand.u32 %v2596, 2147483648
    %v2621 = vor.u32 1.1754944e-38, %v2620
    %v2622 = vsel %vm2619, %v2621, %v2617
    %v2623 = vmul.f32 %v2585, %v2622
    %v2624 = vrcp.pop %v2599
    %v2625 = vmul.f32 %v2599, %v2624
    %v2626 = vsub.f32 1.0, %v2625
    %v2627 = vmul.f32 %v2624, %v2626
    %v2628 = vadd.f32 %v2624, %v2627
    %vm2629 = vweird.f32 %v2599
    %vm2630 = vweird.f32 %v2624
    %vm2631 = vmor %vm2629, %vm2630
    %v2632 = vsel %vm2631, %v2624, %v2628
    %v2633 = vand.u32 2147483647, %v2599
    %vm2634 = vcmp.eq.f32.partialorder %v2633, 8.507059e+37
    %v2635 = vand.u32 %v2599, 2147483648
    %v2636 = vor.u32 1.1754944e-38, %v2635
    %v2637 = vsel %vm2634, %v2636, %v2632
    %v2638 = vmul.f32 %v2587, %v2637
    %v2639 = vrcp.pop %v2602
    %v2640 = vmul.f32 %v2602, %v2639
    %v2641 = vsub.f32 1.0, %v2640
    %v2642 = vmul.f32 %v2639, %v2641
    %v2643 = vadd.f32 %v2639, %v2642
    %vm2644 = vweird.f32 %v2602
    %vm2645 = vweird.f32 %v2639
    %vm2646 = vmor %vm2644, %vm2645
    %v2647 = vsel %vm2646, %v2639, %v2643
    %v2648 = vand.u32 2147483647, %v2602
    %vm2649 = vcmp.eq.f32.partialorder %v2648, 8.507059e+37
    %v2650 = vand.u32 %v2602, 2147483648
    %v2651 = vor.u32 1.1754944e-38, %v2650
    %v2652 = vsel %vm2649, %v2651, %v2647
    %v2653 = vmul.f32 %v2589, %v2652
    %v2654 = vrcp.pop %v2605
    %v2655 = vmul.f32 %v2605, %v2654
    %v2656 = vsub.f32 1.0, %v2655
    %v2657 = vmul.f32 %v2654, %v2656
    %v2658 = vadd.f32 %v2654, %v2657
    %vm2659 = vweird.f32 %v2605
    %vm2660 = vweird.f32 %v2654
    %vm2661 = vmor %vm2659, %vm2660
    %v2662 = vsel %vm2661, %v2654, %v2658
    %v2663 = vand.u32 2147483647, %v2605
    %vm2664 = vcmp.eq.f32.partialorder %v2663, 8.507059e+37
    %v2665 = vand.u32 %v2605, 2147483648
    %v2666 = vor.u32 1.1754944e-38, %v2665
    %v2667 = vsel %vm2664, %v2666, %v2662
    %v2668 = vmul.f32 %v2591, %v2667
    %v2669 = vrcp.pop %v2608
    %v2670 = vmul.f32 %v2608, %v2669
    %v2671 = vsub.f32 1.0, %v2670
    %v2672 = vmul.f32 %v2669, %v2671
    %v2673 = vadd.f32 %v2669, %v2672
    %vm2674 = vweird.f32 %v2608
    %vm2675 = vweird.f32 %v2669
    %vm2676 = vmor %vm2674, %vm2675
    %v2677 = vsel %vm2676, %v2669, %v2673
    %v2678 = vand.u32 2147483647, %v2608
    %vm2679 = vcmp.eq.f32.partialorder %v2678, 8.507059e+37
    %v2680 = vand.u32 %v2608, 2147483648
    %v2681 = vor.u32 1.1754944e-38, %v2680
    %v2682 = vsel %vm2679, %v2681, %v2677
    %v2683 = vmul.f32 %v2593, %v2682
    %2684 = vrot.lane.b32.xlu0 %v1973, 48
    %v2685 = vpop.permute.xlu0 %2684
    %2686 = vrot.lane.b32.xlu0 %v1976, 48
    %v2687 = vpop.permute.xlu0 %2686
    %2688 = vrot.lane.b32.xlu0 %v1979, 48
    %v2689 = vpop.permute.xlu0 %2688
    %2690 = vrot.lane.b32.xlu0 %v1982, 48
    %v2691 = vpop.permute.xlu0 %2690
    %2692 = vrot.lane.b32.xlu0 %v1985, 48
    %v2693 = vpop.permute.xlu0 %2692
    %v2699 = vsel %vm248, %v2623, 0
    %v2702 = vsel %vm248, %v2638, 0
    %v2705 = vsel %vm248, %v2653, 0
    %v2708 = vsel %vm248, %v2668, 0
    %v2711 = vsel %vm248, %v2683, 0
    %v2713 = vsel %vm399, %v2693, 0
    %2715 = vmatpush.msra.mxu0 0.0
    %2716 = vmatpush.msra.mxu0 0.0
    %2717 = vmatpush.msra.mxu0 0.0
    %2718 = vmatpush.msra.mxu0 0.0
    %2719 = vmatpush.msra.mxu0 0.0
    %2720 = vmatpush.msra.mxu0 0.0
    %2721 = vmatpush.msra.mxu0 0.0
    %2722 = vmatpush.msra.mxu0 0.0
    %2723 = vmatpush.msra.mxu0 0.0
    %2724 = vmatpush.msra.mxu0 0.0
    %2725 = vmatpush.msra.mxu0 0.0
    %2726 = vmatpush.msra.mxu0 %v2713
    %2727 = vmatpush.msra.mxu0 %v2691
    %2728 = vmatpush.msra.mxu0 %v2689
    %2729 = vmatpush.msra.mxu0 %v2687
    %2730 = vmatpush.msra.mxu0 %v2685
    %2731 = vmatmul.f32.gmra.mxu0 %v2699
    %v2732 = vpop.f32.mrf.mxu0
    %v2733 = vadd.f32 0.0, %v2732
    %2734 = vmatmul.f32.gmra.mxu0 %v2702
    %v2735 = vpop.f32.mrf.mxu0
    %v2736 = vadd.f32 0.0, %v2735
    %2737 = vmatmul.f32.gmra.mxu0 %v2705
    %v2738 = vpop.f32.mrf.mxu0
    %v2739 = vadd.f32 0.0, %v2738
    %2740 = vmatmul.f32.gmra.mxu0 %v2708
    %v2741 = vpop.f32.mrf.mxu0
    %v2742 = vadd.f32 0.0, %v2741
    %2743 = vmatmul.f32.gmra.mxu0 %v2711
    %v2744 = vpop.f32.mrf.mxu0
    %v2745 = vadd.f32 0.0, %v2744
    %2746 = vdwg.mxu0
    %2747 = vrot.lane.b32.xlu0 %v1973, 104
    %v2748 = vpop.permute.xlu0 %2747
    %2749 = vrot.lane.b32.xlu0 %v1976, 104
    %v2750 = vpop.permute.xlu0 %2749
    %2751 = vrot.lane.b32.xlu0 %v1979, 104
    %v2752 = vpop.permute.xlu0 %2751
    %2753 = vrot.lane.b32.xlu0 %v1982, 104
    %v2754 = vpop.permute.xlu0 %2753
    %2755 = vrot.lane.b32.xlu0 %v1985, 104
    %v2756 = vpop.permute.xlu0 %2755
    %2757 = vrot.lane.b32.xlu0 %v1973, 72
    %v2758 = vpop.permute.xlu0 %2757
    %2759 = vrot.lane.b32.xlu0 %v1976, 72
    %v2760 = vpop.permute.xlu0 %2759
    %2761 = vrot.lane.b32.xlu0 %v1979, 72
    %v2762 = vpop.permute.xlu0 %2761
    %2763 = vrot.lane.b32.xlu0 %v1982, 72
    %v2764 = vpop.permute.xlu0 %2763
    %2765 = vrot.lane.b32.xlu0 %v1985, 72
    %v2766 = vpop.permute.xlu0 %2765
    %v2767 = vsel %vm195, %v2748, 0
    %v2769 = vsel %vm195, %v2750, 0
    %v2771 = vsel %vm195, %v2752, 0
    %v2773 = vsel %vm195, %v2754, 0
    %v2775 = vsel %vm195, %v2756, 0
    %v2777 = vsel %vm195, %v2758, 0
    %v2779 = vsel %vm195, %v2760, 0
    %v2781 = vsel %vm195, %v2762, 0
    %v2783 = vsel %vm195, %v2764, 0
    %v2785 = vsel %vm195, %v2766, 0
    %2787 = vmatpush.xpose.msra.mxu0 0.0
    %2788 = vmatpush.xpose.msra.mxu0 0.0
    %2789 = vmatpush.xpose.msra.mxu0 0.0
    %2790 = vmatpush.xpose.msra.mxu0 0.0
    %2791 = vmatpush.xpose.msra.mxu0 0.0
    %2792 = vmatpush.xpose.msra.mxu0 0.0
    %2793 = vmatpush.xpose.msra.mxu0 0.0
    %2794 = vmatpush.xpose.msra.mxu0 0.0
    %2795 = vmatpush.xpose.msra.mxu0 0.0
    %2796 = vmatpush.xpose.msra.mxu0 0.0
    %2797 = vmatpush.xpose.msra.mxu0 0.0
    %2798 = vmatpush.xpose.msra.mxu0 %v2785
    %2799 = vmatpush.xpose.msra.mxu0 %v2783
    %2800 = vmatpush.xpose.msra.mxu0 %v2781
    %2801 = vmatpush.xpose.msra.mxu0 %v2779
    %2802 = vmatpush.xpose.msra.mxu0 %v2777
    %2803 = vmatmul.f32.gmra.mxu0 %v2767
    %v2804 = vpop.f32.mrf.mxu0
    %v2805 = vadd.f32 %v123, %v2804
    %2806 = vmatmul.f32.gmra.mxu0 %v2769
    %v2807 = vpop.f32.mrf.mxu0
    %v2808 = vadd.f32 %v124, %v2807
    %2809 = vmatmul.f32.gmra.mxu0 %v2771
    %v2810 = vpop.f32.mrf.mxu0
    %v2811 = vadd.f32 %v125, %v2810
    %2812 = vmatmul.f32.gmra.mxu0 %v2773
    %v2813 = vpop.f32.mrf.mxu0
    %v2814 = vadd.f32 %v126, %v2813
    %2815 = vmatmul.f32.gmra.mxu0 %v2775
    %v2816 = vpop.f32.mrf.mxu0
    %v2817 = vadd.f32 %v127, %v2816
    %2818 = vdwg.mxu0
    %v2819 = vsel %vm248, %v2805, -inf
    %2820 = vmax.xlane.f32.xlu0 %v2819
    %v2821 = vpop.xlane.xlu0 %2820
    %v2822 = vsel %vm248, %v2808, -inf
    %2823 = vmax.xlane.f32.xlu0 %v2822
    %v2824 = vpop.xlane.xlu0 %2823
    %v2825 = vsel %vm248, %v2811, -inf
    %2826 = vmax.xlane.f32.xlu0 %v2825
    %v2827 = vpop.xlane.xlu0 %2826
    %v2828 = vsel %vm248, %v2814, -inf
    %2829 = vmax.xlane.f32.xlu0 %v2828
    %v2830 = vpop.xlane.xlu0 %2829
    %v2831 = vsel %vm261, %v2817, -inf
    %2832 = vmax.xlane.f32.xlu0 %v2831
    %v2833 = vpop.xlane.xlu0 %2832
    %v2834 = vsub.f32 %v2805, %v2821
    %v2835 = vsub.f32 %v2808, %v2824
    %v2836 = vsub.f32 %v2811, %v2827
    %v2837 = vsub.f32 %v2814, %v2830
    %v2838 = vsub.f32 %v2817, %v2833
    %v2839 = vmul.f32 %v2834, 1.442695
    %v2840 = vpow.pop %v2839
    %v2841 = vmul.f32 %v2835, 1.442695
    %v2842 = vpow.pop %v2841
    %v2843 = vmul.f32 %v2836, 1.442695
    %v2844 = vpow.pop %v2843
    %v2845 = vmul.f32 %v2837, 1.442695
    %v2846 = vpow.pop %v2845
    %v2847 = vmul.f32 %v2838, 1.442695
    %v2848 = vpow.pop %v2847
    %v2849 = vsel %vm248, %v2840, 0.0
    %2850 = vadd.xlane.f32.xlu0 %v2849
    %v2851 = vpop.xlane.xlu0 %2850
    %v2852 = vsel %vm248, %v2842, 0.0
    %2853 = vadd.xlane.f32.xlu0 %v2852
    %v2854 = vpop.xlane.xlu0 %2853
    %v2855 = vsel %vm248, %v2844, 0.0
    %2856 = vadd.xlane.f32.xlu0 %v2855
    %v2857 = vpop.xlane.xlu0 %2856
    %v2858 = vsel %vm248, %v2846, 0.0
    %2859 = vadd.xlane.f32.xlu0 %v2858
    %v2860 = vpop.xlane.xlu0 %2859
    %v2861 = vsel %vm261, %v2848, 0.0
    %2862 = vadd.xlane.f32.xlu0 %v2861
    %v2863 = vpop.xlane.xlu0 %2862
    %v2864 = vrcp.pop %v2851
    %v2865 = vmul.f32 %v2851, %v2864
    %v2866 = vsub.f32 1.0, %v2865
    %v2867 = vmul.f32 %v2864, %v2866
    %v2868 = vadd.f32 %v2864, %v2867
    %vm2869 = vweird.f32 %v2851
    %vm2870 = vweird.f32 %v2864
    %vm2871 = vmor %vm2869, %vm2870
    %v2872 = vsel %vm2871, %v2864, %v2868
    %v2873 = vand.u32 2147483647, %v2851
    %vm2874 = vcmp.eq.f32.partialorder %v2873, 8.507059e+37
    %v2875 = vand.u32 %v2851, 2147483648
    %v2876 = vor.u32 1.1754944e-38, %v2875
    %v2877 = vsel %vm2874, %v2876, %v2872
    %v2878 = vmul.f32 %v2840, %v2877
    %v2879 = vrcp.pop %v2854
    %v2880 = vmul.f32 %v2854, %v2879
    %v2881 = vsub.f32 1.0, %v2880
    %v2882 = vmul.f32 %v2879, %v2881
    %v2883 = vadd.f32 %v2879, %v2882
    %vm2884 = vweird.f32 %v2854
    %vm2885 = vweird.f32 %v2879
    %vm2886 = vmor %vm2884, %vm2885
    %v2887 = vsel %vm2886, %v2879, %v2883
    %v2888 = vand.u32 2147483647, %v2854
    %vm2889 = vcmp.eq.f32.partialorder %v2888, 8.507059e+37
    %v2890 = vand.u32 %v2854, 2147483648
    %v2891 = vor.u32 1.1754944e-38, %v2890
    %v2892 = vsel %vm2889, %v2891, %v2887
    %v2893 = vmul.f32 %v2842, %v2892
    %v2894 = vrcp.pop %v2857
    %v2895 = vmul.f32 %v2857, %v2894
    %v2896 = vsub.f32 1.0, %v2895
    %v2897 = vmul.f32 %v2894, %v2896
    %v2898 = vadd.f32 %v2894, %v2897
    %vm2899 = vweird.f32 %v2857
    %vm2900 = vweird.f32 %v2894
    %vm2901 = vmor %vm2899, %vm2900
    %v2902 = vsel %vm2901, %v2894, %v2898
    %v2903 = vand.u32 2147483647, %v2857
    %vm2904 = vcmp.eq.f32.partialorder %v2903, 8.507059e+37
    %v2905 = vand.u32 %v2857, 2147483648
    %v2906 = vor.u32 1.1754944e-38, %v2905
    %v2907 = vsel %vm2904, %v2906, %v2902
    %v2908 = vmul.f32 %v2844, %v2907
    %v2909 = vrcp.pop %v2860
    %v2910 = vmul.f32 %v2860, %v2909
    %v2911 = vsub.f32 1.0, %v2910
    %v2912 = vmul.f32 %v2909, %v2911
    %v2913 = vadd.f32 %v2909, %v2912
    %vm2914 = vweird.f32 %v2860
    %vm2915 = vweird.f32 %v2909
    %vm2916 = vmor %vm2914, %vm2915
    %v2917 = vsel %vm2916, %v2909, %v2913
    %v2918 = vand.u32 2147483647, %v2860
    %vm2919 = vcmp.eq.f32.partialorder %v2918, 8.507059e+37
    %v2920 = vand.u32 %v2860, 2147483648
    %v2921 = vor.u32 1.1754944e-38, %v2920
    %v2922 = vsel %vm2919, %v2921, %v2917
    %v2923 = vmul.f32 %v2846, %v2922
    %v2924 = vrcp.pop %v2863
    %v2925 = vmul.f32 %v2863, %v2924
    %v2926 = vsub.f32 1.0, %v2925
    %v2927 = vmul.f32 %v2924, %v2926
    %v2928 = vadd.f32 %v2924, %v2927
    %vm2929 = vweird.f32 %v2863
    %vm2930 = vweird.f32 %v2924
    %vm2931 = vmor %vm2929, %vm2930
    %v2932 = vsel %vm2931, %v2924, %v2928
    %v2933 = vand.u32 2147483647, %v2863
    %vm2934 = vcmp.eq.f32.partialorder %v2933, 8.507059e+37
    %v2935 = vand.u32 %v2863, 2147483648
    %v2936 = vor.u32 1.1754944e-38, %v2935
    %v2937 = vsel %vm2934, %v2936, %v2932
    %v2938 = vmul.f32 %v2848, %v2937
    %2939 = vrot.lane.b32.xlu0 %v1973, 40
    %v2940 = vpop.permute.xlu0 %2939
    %2941 = vrot.lane.b32.xlu0 %v1976, 40
    %v2942 = vpop.permute.xlu0 %2941
    %2943 = vrot.lane.b32.xlu0 %v1979, 40
    %v2944 = vpop.permute.xlu0 %2943
    %2945 = vrot.lane.b32.xlu0 %v1982, 40
    %v2946 = vpop.permute.xlu0 %2945
    %2947 = vrot.lane.b32.xlu0 %v1985, 40
    %v2948 = vpop.permute.xlu0 %2947
    %v2954 = vsel %vm248, %v2878, 0
    %v2957 = vsel %vm248, %v2893, 0
    %v2960 = vsel %vm248, %v2908, 0
    %v2963 = vsel %vm248, %v2923, 0
    %v2966 = vsel %vm248, %v2938, 0
    %v2968 = vsel %vm399, %v2948, 0
    %2970 = vmatpush.msra.mxu0 0.0
    %2971 = vmatpush.msra.mxu0 0.0
    %2972 = vmatpush.msra.mxu0 0.0
    %2973 = vmatpush.msra.mxu0 0.0
    %2974 = vmatpush.msra.mxu0 0.0
    %2975 = vmatpush.msra.mxu0 0.0
    %2976 = vmatpush.msra.mxu0 0.0
    %2977 = vmatpush.msra.mxu0 0.0
    %2978 = vmatpush.msra.mxu0 0.0
    %2979 = vmatpush.msra.mxu0 0.0
    %2980 = vmatpush.msra.mxu0 0.0
    %2981 = vmatpush.msra.mxu0 %v2968
    %2982 = vmatpush.msra.mxu0 %v2946
    %2983 = vmatpush.msra.mxu0 %v2944
    %2984 = vmatpush.msra.mxu0 %v2942
    %2985 = vmatpush.msra.mxu0 %v2940
    %2986 = vmatmul.f32.gmra.mxu0 %v2954
    %v2987 = vpop.f32.mrf.mxu0
    %v2988 = vadd.f32 0.0, %v2987
    %2989 = vmatmul.f32.gmra.mxu0 %v2957
    %v2990 = vpop.f32.mrf.mxu0
    %v2991 = vadd.f32 0.0, %v2990
    %2992 = vmatmul.f32.gmra.mxu0 %v2960
    %v2993 = vpop.f32.mrf.mxu0
    %v2994 = vadd.f32 0.0, %v2993
    %2995 = vmatmul.f32.gmra.mxu0 %v2963
    %v2996 = vpop.f32.mrf.mxu0
    %v2997 = vadd.f32 0.0, %v2996
    %2998 = vmatmul.f32.gmra.mxu0 %v2966
    %v2999 = vpop.f32.mrf.mxu0
    %v3000 = vadd.f32 0.0, %v2999
    %3001 = vdwg.mxu0
    %3007 = vrot.lane.b32.xlu0 %v2478, 8
    %v3008 = vpop.permute.xlu0 %3007
    %3009 = vrot.lane.b32.xlu0 %v2481, 8
    %v3010 = vpop.permute.xlu0 %3009
    %3011 = vrot.lane.b32.xlu0 %v2484, 8
    %v3012 = vpop.permute.xlu0 %3011
    %3013 = vrot.lane.b32.xlu0 %v2487, 8
    %v3014 = vpop.permute.xlu0 %3013
    %3015 = vrot.lane.b32.xlu0 %v2490, 8
    %v3016 = vpop.permute.xlu0 %3015
    %3027 = vrot.lane.b32.xlu0 %v2733, 16
    %v3028 = vpop.permute.xlu0 %3027
    %3029 = vrot.lane.b32.xlu0 %v2736, 16
    %v3030 = vpop.permute.xlu0 %3029
    %3031 = vrot.lane.b32.xlu0 %v2739, 16
    %v3032 = vpop.permute.xlu0 %3031
    %3033 = vrot.lane.b32.xlu0 %v2742, 16
    %v3034 = vpop.permute.xlu0 %3033
    %3035 = vrot.lane.b32.xlu0 %v2745, 16
    %v3036 = vpop.permute.xlu0 %3035
    %3047 = vrot.lane.b32.xlu0 %v2988, 24
    %v3048 = vpop.permute.xlu0 %3047
    %3049 = vrot.lane.b32.xlu0 %v2991, 24
    %v3050 = vpop.permute.xlu0 %3049
    %3051 = vrot.lane.b32.xlu0 %v2994, 24
    %v3052 = vpop.permute.xlu0 %3051
    %3053 = vrot.lane.b32.xlu0 %v2997, 24
    %v3054 = vpop.permute.xlu0 %3053
    %3055 = vrot.lane.b32.xlu0 %v3000, 24
    %v3056 = vpop.permute.xlu0 %3055
    %v3062 = vsel %vm195, %v2223, %v3008
    %v3063 = vsel %vm195, %v2226, %v3010
    %v3064 = vsel %vm195, %v2229, %v3012
    %v3065 = vsel %vm195, %v2232, %v3014
    %v3066 = vsel %vm195, %v2235, %v3016
    %v3067 = vsel %vm1264, %v3062, %v3028
    %v3068 = vsel %vm1264, %v3063, %v3030
    %v3069 = vsel %vm1264, %v3064, %v3032
    %v3070 = vsel %vm1264, %v3065, %v3034
    %v3071 = vsel %vm1264, %v3066, %v3036
    %v3072 = vsel %vm1270, %v3067, %v3048
    %v3073 = vsel %vm1270, %v3068, %v3050
    %v3074 = vsel %vm1270, %v3069, %v3052
    %v3075 = vsel %vm1270, %v3070, %v3054
    %v3076 = vsel %vm1270, %v3071, %v3056
    %s3077 = scalar_lea.vmem %s6, 32
    %v3078 = vld [vmem:[%s3077] sm:$0xff]
    %v3079 = vld [vmem:[%s3077 + $0x8] sm:$0xff]
    %v3080 = vld [vmem:[%s3077 + $0x10] sm:$0xff]
    %v3081 = vld [vmem:[%s3077 + $0x18] sm:$0xff]
    %v3083 = vsel %vm132, %v3072, 0
    %v3086 = vsel %vm132, %v3073, 0
    %v3089 = vsel %vm132, %v3074, 0
    %v3092 = vsel %vm132, %v3075, 0
    %v3095 = vsel %vm132, %v3076, 0
    %3097 = vmatpush.msra.mxu0 0.0
    %3098 = vmatpush.msra.mxu0 0.0
    %3099 = vmatpush.msra.mxu0 0.0
    %3100 = vmatpush.msra.mxu0 0.0
    %3101 = vmatpush.msra.mxu0 0.0
    %3102 = vmatpush.msra.mxu0 0.0
    %3103 = vmatpush.msra.mxu0 0.0
    %3104 = vmatpush.msra.mxu0 0.0
    %3105 = vmatpush.msra.mxu0 0.0
    %3106 = vmatpush.msra.mxu0 0.0
    %3107 = vmatpush.msra.mxu0 0.0
    %3108 = vmatpush.msra.mxu0 0.0
    %3109 = vmatpush.msra.mxu0 %v3081
    %3110 = vmatpush.msra.mxu0 %v3080
    %3111 = vmatpush.msra.mxu0 %v3079
    %3112 = vmatpush.msra.mxu0 %v3078
    %3113 = vmatmul.f32.gmra.mxu0 %v3083
    %v3114 = vpop.f32.mrf.mxu0
    %v3115 = vadd.f32 0.0, %v3114
    %3116 = vmatmul.f32.gmra.mxu0 %v3086
    %v3117 = vpop.f32.mrf.mxu0
    %v3118 = vadd.f32 0.0, %v3117
    %3119 = vmatmul.f32.gmra.mxu0 %v3089
    %v3120 = vpop.f32.mrf.mxu0
    %v3121 = vadd.f32 0.0, %v3120
    %3122 = vmatmul.f32.gmra.mxu0 %v3092
    %v3123 = vpop.f32.mrf.mxu0
    %v3124 = vadd.f32 0.0, %v3123
    %3125 = vmatmul.f32.gmra.mxu0 %v3095
    %v3126 = vpop.f32.mrf.mxu0
    %v3127 = vadd.f32 0.0, %v3126
    %3128 = vdwg.mxu0
    %v3129 = vadd.f32 %v1930, %v3115
    %v3130 = vadd.f32 %v1931, %v3118
    %v3131 = vadd.f32 %v1932, %v3121
    %v3132 = vadd.f32 %v1933, %v3124
    %v3133 = vadd.f32 %v1934, %v3127
    %s3134 = scalar_lea.vmem %s7, 1
    %v3135 = vld [vmem:[%s3134] sm:$0x1]
    %s3136 = scalar_lea.vmem %s8, 1
    %v3137 = vld [vmem:[%s3136] sm:$0x1]
    %v3138 = vsel %vm132, %v3129, 0.0
    %3139 = vadd.xlane.f32.xlu0 %v3138
    %v3140 = vpop.xlane.xlu0 %3139
    %v3141 = vsel %vm132, %v3130, 0.0
    %3142 = vadd.xlane.f32.xlu0 %v3141
    %v3143 = vpop.xlane.xlu0 %3142
    %v3144 = vsel %vm132, %v3131, 0.0
    %3145 = vadd.xlane.f32.xlu0 %v3144
    %v3146 = vpop.xlane.xlu0 %3145
    %v3147 = vsel %vm132, %v3132, 0.0
    %3148 = vadd.xlane.f32.xlu0 %v3147
    %v3149 = vpop.xlane.xlu0 %3148
    %v3150 = vsel %vm1346, %v3133, 0.0
    %3151 = vadd.xlane.f32.xlu0 %v3150
    %v3152 = vpop.xlane.xlu0 %3151
    %v3153 = vmul.f32 %v3140, %v1356
    %v3154 = vmul.f32 %v3143, %v1356
    %v3155 = vmul.f32 %v3146, %v1356
    %v3156 = vmul.f32 %v3149, %v1356
    %v3157 = vmul.f32 %v3152, %v1356
    %v3158 = vsub.f32 %v3129, %v3153
    %v3159 = vsub.f32 %v3130, %v3154
    %v3160 = vsub.f32 %v3131, %v3155
    %v3161 = vsub.f32 %v3132, %v3156
    %v3162 = vsub.f32 %v3133, %v3157
    %v3163 = vmul.f32 %v3158, %v3158
    %v3164 = vmul.f32 %v3159, %v3159
    %v3165 = vmul.f32 %v3160, %v3160
    %v3166 = vmul.f32 %v3161, %v3161
    %v3167 = vmul.f32 %v3162, %v3162
    %v3168 = vsel %vm132, %v3163, 0.0
    %3169 = vadd.xlane.f32.xlu0 %v3168
    %v3170 = vpop.xlane.xlu0 %3169
    %v3171 = vsel %vm132, %v3164, 0.0
    %3172 = vadd.xlane.f32.xlu0 %v3171
    %v3173 = vpop.xlane.xlu0 %3172
    %v3174 = vsel %vm132, %v3165, 0.0
    %3175 = vadd.xlane.f32.xlu0 %v3174
    %v3176 = vpop.xlane.xlu0 %3175
    %v3177 = vsel %vm132, %v3166, 0.0
    %3178 = vadd.xlane.f32.xlu0 %v3177
    %v3179 = vpop.xlane.xlu0 %3178
    %v3180 = vsel %vm1346, %v3167, 0.0
    %3181 = vadd.xlane.f32.xlu0 %v3180
    %v3182 = vpop.xlane.xlu0 %3181
    %v3183 = vmul.f32 %v3170, %v1356
    %v3184 = vmul.f32 %v3173, %v1356
    %v3185 = vmul.f32 %v3176, %v1356
    %v3186 = vmul.f32 %v3179, %v1356
    %v3187 = vmul.f32 %v3182, %v1356
    %v3188 = vadd.f32 %v3183, 1e-05
    %v3189 = vadd.f32 %v3184, 1e-05
    %v3190 = vadd.f32 %v3185, 1e-05
    %v3191 = vadd.f32 %v3186, 1e-05
    %v3192 = vadd.f32 %v3187, 1e-05
    %v3193 = vrsqrt.pop %v3188
    %v3194 = vmul.f32 %v3193, %v3188
    %v3195 = vmul.f32 %v3194, %v3193
    %v3196 = vmul.f32 0.5, %v3195
    %v3197 = vsub.f32 1.5, %v3196
    %v3198 = vmul.f32 %v3193, %v3197
    %vm3199 = vweird.f32 %v3188
    %vm3200 = vweird.f32 %v3193
    %vm3201 = vmor %vm3199, %vm3200
    %v3202 = vsel %vm3201, %v3193, %v3198
    %v3203 = vrsqrt.pop %v3189
    %v3204 = vmul.f32 %v3203, %v3189
    %v3205 = vmul.f32 %v3204, %v3203
    %v3206 = vmul.f32 0.5, %v3205
    %v3207 = vsub.f32 1.5, %v3206
    %v3208 = vmul.f32 %v3203, %v3207
    %vm3209 = vweird.f32 %v3189
    %vm3210 = vweird.f32 %v3203
    %vm3211 = vmor %vm3209, %vm3210
    %v3212 = vsel %vm3211, %v3203, %v3208
    %v3213 = vrsqrt.pop %v3190
    %v3214 = vmul.f32 %v3213, %v3190
    %v3215 = vmul.f32 %v3214, %v3213
    %v3216 = vmul.f32 0.5, %v3215
    %v3217 = vsub.f32 1.5, %v3216
    %v3218 = vmul.f32 %v3213, %v3217
    %vm3219 = vweird.f32 %v3190
    %vm3220 = vweird.f32 %v3213
    %vm3221 = vmor %vm3219, %vm3220
    %v3222 = vsel %vm3221, %v3213, %v3218
    %v3223 = vrsqrt.pop %v3191
    %v3224 = vmul.f32 %v3223, %v3191
    %v3225 = vmul.f32 %v3224, %v3223
    %v3226 = vmul.f32 0.5, %v3225
    %v3227 = vsub.f32 1.5, %v3226
    %v3228 = vmul.f32 %v3223, %v3227
    %vm3229 = vweird.f32 %v3191
    %vm3230 = vweird.f32 %v3223
    %vm3231 = vmor %vm3229, %vm3230
    %v3232 = vsel %vm3231, %v3223, %v3228
    %v3233 = vrsqrt.pop %v3192
    %v3234 = vmul.f32 %v3233, %v3192
    %v3235 = vmul.f32 %v3234, %v3233
    %v3236 = vmul.f32 0.5, %v3235
    %v3237 = vsub.f32 1.5, %v3236
    %v3238 = vmul.f32 %v3233, %v3237
    %vm3239 = vweird.f32 %v3192
    %vm3240 = vweird.f32 %v3233
    %vm3241 = vmor %vm3239, %vm3240
    %v3242 = vsel %vm3241, %v3233, %v3238
    %v3243 = vmul.f32 %v3158, %v3202
    %v3244 = vmul.f32 %v3159, %v3212
    %v3245 = vmul.f32 %v3160, %v3222
    %v3246 = vmul.f32 %v3161, %v3232
    %v3247 = vmul.f32 %v3162, %v3242
    %v3249 = vperm.slane %v3135, 0
    %v3251 = vmul.f32 %v3243, %v3249
    %v3252 = vmul.f32 %v3244, %v3249
    %v3253 = vmul.f32 %v3245, %v3249
    %v3254 = vmul.f32 %v3246, %v3249
    %v3255 = vmul.f32 %v3247, %v3249
    %v3257 = vperm.slane %v3137, 0
    %v3259 = vadd.f32 %v3251, %v3257
    %v3260 = vadd.f32 %v3252, %v3257
    %v3261 = vadd.f32 %v3253, %v3257
    %v3262 = vadd.f32 %v3254, %v3257
    %v3263 = vadd.f32 %v3255, %v3257
    %s3264 = scalar_lea.vmem %s9, 32
    %v3265 = vld [vmem:[%s3264] sm:$0xff]
    %v3266 = vld [vmem:[%s3264 + $0x8] sm:$0xff]
    %v3267 = vld [vmem:[%s3264 + $0x10] sm:$0xff]
    %v3268 = vld [vmem:[%s3264 + $0x18] sm:$0xff]
    %s3269 = scalar_lea.vmem %s10, 1
    %v3270 = vld [vmem:[%s3269] sm:$0x1]
    %v3272 = vperm.slane %v3270, 0
    %v3275 = vsel %vm132, %v3259, 0
    %v3278 = vsel %vm132, %v3260, 0
    %v3281 = vsel %vm132, %v3261, 0
    %v3284 = vsel %vm132, %v3262, 0
    %v3287 = vsel %vm132, %v3263, 0
    %3289 = vmatpush.msra.mxu0 0.0
    %3290 = vmatpush.msra.mxu0 0.0
    %3291 = vmatpush.msra.mxu0 0.0
    %3292 = vmatpush.msra.mxu0 0.0
    %3293 = vmatpush.msra.mxu0 0.0
    %3294 = vmatpush.msra.mxu0 0.0
    %3295 = vmatpush.msra.mxu0 0.0
    %3296 = vmatpush.msra.mxu0 0.0
    %3297 = vmatpush.msra.mxu0 0.0
    %3298 = vmatpush.msra.mxu0 0.0
    %3299 = vmatpush.msra.mxu0 0.0
    %3300 = vmatpush.msra.mxu0 0.0
    %3301 = vmatpush.msra.mxu0 %v3268
    %3302 = vmatpush.msra.mxu0 %v3267
    %3303 = vmatpush.msra.mxu0 %v3266
    %3304 = vmatpush.msra.mxu0 %v3265
    %3305 = vmatmul.f32.gmra.mxu0 %v3275
    %v3306 = vpop.f32.mrf.mxu0
    %v3307 = vadd.f32 %v3272, %v3306
    %3308 = vmatmul.f32.gmra.mxu0 %v3278
    %v3309 = vpop.f32.mrf.mxu0
    %v3310 = vadd.f32 %v3272, %v3309
    %3311 = vmatmul.f32.gmra.mxu0 %v3281
    %v3312 = vpop.f32.mrf.mxu0
    %v3313 = vadd.f32 %v3272, %v3312
    %3314 = vmatmul.f32.gmra.mxu0 %v3284
    %v3315 = vpop.f32.mrf.mxu0
    %v3316 = vadd.f32 %v3272, %v3315
    %3317 = vmatmul.f32.gmra.mxu0 %v3287
    %v3318 = vpop.f32.mrf.mxu0
    %v3319 = vadd.f32 %v3272, %v3318
    %3320 = vdwg.mxu0
    %v3321 = vmul.f32 %v3307, 0.5
    %v3322 = vmul.f32 %v3310, 0.5
    %v3323 = vmul.f32 %v3313, 0.5
    %v3324 = vmul.f32 %v3316, 0.5
    %v3325 = vmul.f32 %v3319, 0.5
    %v3326 = vmul.f32 %v3307, 0.70710677
    %v3327 = vmul.f32 %v3310, 0.70710677
    %v3328 = vmul.f32 %v3313, 0.70710677
    %v3329 = vmul.f32 %v3316, 0.70710677
    %v3330 = vmul.f32 %v3319, 0.70710677
    %v3331 = vmul.f32 %v3326, %v3326
    %v3332 = vmin.f32 16.0, %v3331
    %v3333 = vmul.f32 %v3332, 2.1237322e-06
    %v3334 = vadd.f32 %v3333, 0.00028619796
    %v3335 = vmul.f32 %v3332, %v3334
    %v3336 = vadd.f32 %v3335, 0.0036580483
    %v3337 = vmul.f32 %v3332, %v3336
    %v3338 = vadd.f32 %v3337, 0.05243302
    %v3339 = vmul.f32 %v3332, %v3338
    %v3340 = vadd.f32 %v3339, 0.18741608
    %v3341 = vmul.f32 %v3332, %v3340
    %v3342 = vadd.f32 %v3341, 1.1283791
    %v3343 = vmul.f32 %v3326, %v3342
    %v3344 = vmul.f32 %v3332, 3.8918573e-05
    %v3345 = vadd.f32 %v3344, 0.001143296
    %v3346 = vmul.f32 %v3332, %v3345
    %v3347 = vadd.f32 %v3346, 0.014752088
    %v3348 = vmul.f32 %v3332, %v3347
    %v3349 = vadd.f32 %v3348, 0.112945676
    %v3350 = vmul.f32 %v3332, %v3349
    %v3351 = vadd.f32 %v3350, 0.4994258
    %v3352 = vmul.f32 %v3332, %v3351
    %v3353 = vadd.f32 %v3352, 1.0
    %v3354 = vrcp.pop %v3353
    %v3355 = vmul.f32 %v3353, %v3354
    %v3356 = vsub.f32 1.0, %v3355
    %v3357 = vmul.f32 %v3354, %v3356
    %v3358 = vadd.f32 %v3354, %v3357
    %vm3359 = vweird.f32 %v3353
    %vm3360 = vweird.f32 %v3354
    %vm3361 = vmor %vm3359, %vm3360
    %v3362 = vsel %vm3361, %v3354, %v3358
    %v3363 = vand.u32 2147483647, %v3353
    %vm3364 = vcmp.eq.f32.partialorder %v3363, 8.507059e+37
    %v3365 = vand.u32 %v3353, 2147483648
    %v3366 = vor.u32 1.1754944e-38, %v3365
    %v3367 = vsel %vm3364, %v3366, %v3362
    %v3368 = vmul.f32 %v3343, %v3367
    %v3369 = vmin.f32 %v3368, 1.0
    %v3370 = vmax.f32 %v3369, -1.0
    %v3371 = vmul.f32 %v3327, %v3327
    %v3372 = vmin.f32 16.0, %v3371
    %v3373 = vmul.f32 %v3372, 2.1237322e-06
    %v3374 = vadd.f32 %v3373, 0.00028619796
    %v3375 = vmul.f32 %v3372, %v3374
    %v3376 = vadd.f32 %v3375, 0.0036580483
    %v3377 = vmul.f32 %v3372, %v3376
    %v3378 = vadd.f32 %v3377, 0.05243302
    %v3379 = vmul.f32 %v3372, %v3378
    %v3380 = vadd.f32 %v3379, 0.18741608
    %v3381 = vmul.f32 %v3372, %v3380
    %v3382 = vadd.f32 %v3381, 1.1283791
    %v3383 = vmul.f32 %v3327, %v3382
    %v3384 = vmul.f32 %v3372, 3.8918573e-05
    %v3385 = vadd.f32 %v3384, 0.001143296
    %v3386 = vmul.f32 %v3372, %v3385
    %v3387 = vadd.f32 %v3386, 0.014752088
    %v3388 = vmul.f32 %v3372, %v3387
    %v3389 = vadd.f32 %v3388, 0.112945676
    %v3390 = vmul.f32 %v3372, %v3389
    %v3391 = vadd.f32 %v3390, 0.4994258
    %v3392 = vmul.f32 %v3372, %v3391
    %v3393 = vadd.f32 %v3392, 1.0
    %v3394 = vrcp.pop %v3393
    %v3395 = vmul.f32 %v3393, %v3394
    %v3396 = vsub.f32 1.0, %v3395
    %v3397 = vmul.f32 %v3394, %v3396
    %v3398 = vadd.f32 %v3394, %v3397
    %vm3399 = vweird.f32 %v3393
    %vm3400 = vweird.f32 %v3394
    %vm3401 = vmor %vm3399, %vm3400
    %v3402 = vsel %vm3401, %v3394, %v3398
    %v3403 = vand.u32 2147483647, %v3393
    %vm3404 = vcmp.eq.f32.partialorder %v3403, 8.507059e+37
    %v3405 = vand.u32 %v3393, 2147483648
    %v3406 = vor.u32 1.1754944e-38, %v3405
    %v3407 = vsel %vm3404, %v3406, %v3402
    %v3408 = vmul.f32 %v3383, %v3407
    %v3409 = vmin.f32 %v3408, 1.0
    %v3410 = vmax.f32 %v3409, -1.0
    %v3411 = vmul.f32 %v3328, %v3328
    %v3412 = vmin.f32 16.0, %v3411
    %v3413 = vmul.f32 %v3412, 2.1237322e-06
    %v3414 = vadd.f32 %v3413, 0.00028619796
    %v3415 = vmul.f32 %v3412, %v3414
    %v3416 = vadd.f32 %v3415, 0.0036580483
    %v3417 = vmul.f32 %v3412, %v3416
    %v3418 = vadd.f32 %v3417, 0.05243302
    %v3419 = vmul.f32 %v3412, %v3418
    %v3420 = vadd.f32 %v3419, 0.18741608
    %v3421 = vmul.f32 %v3412, %v3420
    %v3422 = vadd.f32 %v3421, 1.1283791
    %v3423 = vmul.f32 %v3328, %v3422
    %v3424 = vmul.f32 %v3412, 3.8918573e-05
    %v3425 = vadd.f32 %v3424, 0.001143296
    %v3426 = vmul.f32 %v3412, %v3425
    %v3427 = vadd.f32 %v3426, 0.014752088
    %v3428 = vmul.f32 %v3412, %v3427
    %v3429 = vadd.f32 %v3428, 0.112945676
    %v3430 = vmul.f32 %v3412, %v3429
    %v3431 = vadd.f32 %v3430, 0.4994258
    %v3432 = vmul.f32 %v3412, %v3431
    %v3433 = vadd.f32 %v3432, 1.0
    %v3434 = vrcp.pop %v3433
    %v3435 = vmul.f32 %v3433, %v3434
    %v3436 = vsub.f32 1.0, %v3435
    %v3437 = vmul.f32 %v3434, %v3436
    %v3438 = vadd.f32 %v3434, %v3437
    %vm3439 = vweird.f32 %v3433
    %vm3440 = vweird.f32 %v3434
    %vm3441 = vmor %vm3439, %vm3440
    %v3442 = vsel %vm3441, %v3434, %v3438
    %v3443 = vand.u32 2147483647, %v3433
    %vm3444 = vcmp.eq.f32.partialorder %v3443, 8.507059e+37
    %v3445 = vand.u32 %v3433, 2147483648
    %v3446 = vor.u32 1.1754944e-38, %v3445
    %v3447 = vsel %vm3444, %v3446, %v3442
    %v3448 = vmul.f32 %v3423, %v3447
    %v3449 = vmin.f32 %v3448, 1.0
    %v3450 = vmax.f32 %v3449, -1.0
    %v3451 = vmul.f32 %v3329, %v3329
    %v3452 = vmin.f32 16.0, %v3451
    %v3453 = vmul.f32 %v3452, 2.1237322e-06
    %v3454 = vadd.f32 %v3453, 0.00028619796
    %v3455 = vmul.f32 %v3452, %v3454
    %v3456 = vadd.f32 %v3455, 0.0036580483
    %v3457 = vmul.f32 %v3452, %v3456
    %v3458 = vadd.f32 %v3457, 0.05243302
    %v3459 = vmul.f32 %v3452, %v3458
    %v3460 = vadd.f32 %v3459, 0.18741608
    %v3461 = vmul.f32 %v3452, %v3460
    %v3462 = vadd.f32 %v3461, 1.1283791
    %v3463 = vmul.f32 %v3329, %v3462
    %v3464 = vmul.f32 %v3452, 3.8918573e-05
    %v3465 = vadd.f32 %v3464, 0.001143296
    %v3466 = vmul.f32 %v3452, %v3465
    %v3467 = vadd.f32 %v3466, 0.014752088
    %v3468 = vmul.f32 %v3452, %v3467
    %v3469 = vadd.f32 %v3468, 0.112945676
    %v3470 = vmul.f32 %v3452, %v3469
    %v3471 = vadd.f32 %v3470, 0.4994258
    %v3472 = vmul.f32 %v3452, %v3471
    %v3473 = vadd.f32 %v3472, 1.0
    %v3474 = vrcp.pop %v3473
    %v3475 = vmul.f32 %v3473, %v3474
    %v3476 = vsub.f32 1.0, %v3475
    %v3477 = vmul.f32 %v3474, %v3476
    %v3478 = vadd.f32 %v3474, %v3477
    %vm3479 = vweird.f32 %v3473
    %vm3480 = vweird.f32 %v3474
    %vm3481 = vmor %vm3479, %vm3480
    %v3482 = vsel %vm3481, %v3474, %v3478
    %v3483 = vand.u32 2147483647, %v3473
    %vm3484 = vcmp.eq.f32.partialorder %v3483, 8.507059e+37
    %v3485 = vand.u32 %v3473, 2147483648
    %v3486 = vor.u32 1.1754944e-38, %v3485
    %v3487 = vsel %vm3484, %v3486, %v3482
    %v3488 = vmul.f32 %v3463, %v3487
    %v3489 = vmin.f32 %v3488, 1.0
    %v3490 = vmax.f32 %v3489, -1.0
    %v3491 = vmul.f32 %v3330, %v3330
    %v3492 = vmin.f32 16.0, %v3491
    %v3493 = vmul.f32 %v3492, 2.1237322e-06
    %v3494 = vadd.f32 %v3493, 0.00028619796
    %v3495 = vmul.f32 %v3492, %v3494
    %v3496 = vadd.f32 %v3495, 0.0036580483
    %v3497 = vmul.f32 %v3492, %v3496
    %v3498 = vadd.f32 %v3497, 0.05243302
    %v3499 = vmul.f32 %v3492, %v3498
    %v3500 = vadd.f32 %v3499, 0.18741608
    %v3501 = vmul.f32 %v3492, %v3500
    %v3502 = vadd.f32 %v3501, 1.1283791
    %v3503 = vmul.f32 %v3330, %v3502
    %v3504 = vmul.f32 %v3492, 3.8918573e-05
    %v3505 = vadd.f32 %v3504, 0.001143296
    %v3506 = vmul.f32 %v3492, %v3505
    %v3507 = vadd.f32 %v3506, 0.014752088
    %v3508 = vmul.f32 %v3492, %v3507
    %v3509 = vadd.f32 %v3508, 0.112945676
    %v3510 = vmul.f32 %v3492, %v3509
    %v3511 = vadd.f32 %v3510, 0.4994258
    %v3512 = vmul.f32 %v3492, %v3511
    %v3513 = vadd.f32 %v3512, 1.0
    %v3514 = vrcp.pop %v3513
    %v3515 = vmul.f32 %v3513, %v3514
    %v3516 = vsub.f32 1.0, %v3515
    %v3517 = vmul.f32 %v3514, %v3516
    %v3518 = vadd.f32 %v3514, %v3517
    %vm3519 = vweird.f32 %v3513
    %vm3520 = vweird.f32 %v3514
    %vm3521 = vmor %vm3519, %vm3520
    %v3522 = vsel %vm3521, %v3514, %v3518
    %v3523 = vand.u32 2147483647, %v3513
    %vm3524 = vcmp.eq.f32.partialorder %v3523, 8.507059e+37
    %v3525 = vand.u32 %v3513, 2147483648
    %v3526 = vor.u32 1.1754944e-38, %v3525
    %v3527 = vsel %vm3524, %v3526, %v3522
    %v3528 = vmul.f32 %v3503, %v3527
    %v3529 = vmin.f32 %v3528, 1.0
    %v3530 = vmax.f32 %v3529, -1.0
    %v3531 = vadd.f32 %v3370, 1.0
    %v3532 = vadd.f32 %v3410, 1.0
    %v3533 = vadd.f32 %v3450, 1.0
    %v3534 = vadd.f32 %v3490, 1.0
    %v3535 = vadd.f32 %v3530, 1.0
    %v3536 = vmul.f32 %v3321, %v3531
    %v3537 = vmul.f32 %v3322, %v3532
    %v3538 = vmul.f32 %v3323, %v3533
    %v3539 = vmul.f32 %v3324, %v3534
    %v3540 = vmul.f32 %v3325, %v3535
    %s3541 = scalar_lea.vmem %s11, 64
    %v3542 = vld [vmem:[%s3541] sm:$0xff]
    %v3543 = vld [vmem:[%s3541 + $0x8] sm:$0xff]
    %v3544 = vld [vmem:[%s3541 + $0x10] sm:$0xff]
    %v3545 = vld [vmem:[%s3541 + $0x18] sm:$0xff]
    %v3546 = vld [vmem:[%s3541 + $0x20] sm:$0xff]
    %v3547 = vld [vmem:[%s3541 + $0x28] sm:$0xff]
    %v3548 = vld [vmem:[%s3541 + $0x30] sm:$0xff]
    %v3549 = vld [vmem:[%s3541 + $0x38] sm:$0xff]
    %s3550 = scalar_lea.vmem %s12, 1
    %v3551 = vld [vmem:[%s3550] sm:$0x1]
    %v3553 = vperm.slane %v3551, 0
    %v3556 = vsel %vm75, %v3536, 0
    %v3559 = vsel %vm75, %v3537, 0
    %v3562 = vsel %vm75, %v3538, 0
    %v3565 = vsel %vm75, %v3539, 0
    %v3568 = vsel %vm75, %v3540, 0
    %3570 = vmatpush.msra.mxu0 0.0
    %3571 = vmatpush.msra.mxu0 0.0
    %3572 = vmatpush.msra.mxu0 0.0
    %3573 = vmatpush.msra.mxu0 0.0
    %3574 = vmatpush.msra.mxu0 0.0
    %3575 = vmatpush.msra.mxu0 0.0
    %3576 = vmatpush.msra.mxu0 0.0
    %3577 = vmatpush.msra.mxu0 0.0
    %3578 = vmatpush.msra.mxu0 %v3549
    %3579 = vmatpush.msra.mxu0 %v3548
    %3580 = vmatpush.msra.mxu0 %v3547
    %3581 = vmatpush.msra.mxu0 %v3546
    %3582 = vmatpush.msra.mxu0 %v3545
    %3583 = vmatpush.msra.mxu0 %v3544
    %3584 = vmatpush.msra.mxu0 %v3543
    %3585 = vmatpush.msra.mxu0 %v3542
    %3586 = vmatmul.f32.gmra.mxu0 %v3556
    %v3587 = vpop.f32.mrf.mxu0
    %v3588 = vadd.f32 %v3553, %v3587
    %3589 = vmatmul.f32.gmra.mxu0 %v3559
    %v3590 = vpop.f32.mrf.mxu0
    %v3591 = vadd.f32 %v3553, %v3590
    %3592 = vmatmul.f32.gmra.mxu0 %v3562
    %v3593 = vpop.f32.mrf.mxu0
    %v3594 = vadd.f32 %v3553, %v3593
    %3595 = vmatmul.f32.gmra.mxu0 %v3565
    %v3596 = vpop.f32.mrf.mxu0
    %v3597 = vadd.f32 %v3553, %v3596
    %3598 = vmatmul.f32.gmra.mxu0 %v3568
    %v3599 = vpop.f32.mrf.mxu0
    %v3600 = vadd.f32 %v3553, %v3599
    %3601 = vdwg.mxu0
    %v3602 = vadd.f32 %v3259, %v3588
    %v3603 = vadd.f32 %v3260, %v3591
    %v3604 = vadd.f32 %v3261, %v3594
    %v3605 = vadd.f32 %v3262, %v3597
    %v3606 = vadd.f32 %v3263, %v3600
    %s3607 = scalar_lea.vmem %s13, 1
    %v3608 = vld [vmem:[%s3607] sm:$0x1]
    %s3609 = scalar_lea.vmem %s14, 1
    %v3610 = vld [vmem:[%s3609] sm:$0x1]
    %v3611 = vsel %vm132, %v3602, 0.0
    %3612 = vadd.xlane.f32.xlu0 %v3611
    %v3613 = vpop.xlane.xlu0 %3612
    %v3614 = vsel %vm132, %v3603, 0.0
    %3615 = vadd.xlane.f32.xlu0 %v3614
    %v3616 = vpop.xlane.xlu0 %3615
    %v3617 = vsel %vm132, %v3604, 0.0
    %3618 = vadd.xlane.f32.xlu0 %v3617
    %v3619 = vpop.xlane.xlu0 %3618
    %v3620 = vsel %vm132, %v3605, 0.0
    %3621 = vadd.xlane.f32.xlu0 %v3620
    %v3622 = vpop.xlane.xlu0 %3621
    %v3623 = vsel %vm1346, %v3606, 0.0
    %3624 = vadd.xlane.f32.xlu0 %v3623
    %v3625 = vpop.xlane.xlu0 %3624
    %v3626 = vmul.f32 %v3613, %v1356
    %v3627 = vmul.f32 %v3616, %v1356
    %v3628 = vmul.f32 %v3619, %v1356
    %v3629 = vmul.f32 %v3622, %v1356
    %v3630 = vmul.f32 %v3625, %v1356
    %v3631 = vsub.f32 %v3602, %v3626
    %v3632 = vsub.f32 %v3603, %v3627
    %v3633 = vsub.f32 %v3604, %v3628
    %v3634 = vsub.f32 %v3605, %v3629
    %v3635 = vsub.f32 %v3606, %v3630
    %v3636 = vmul.f32 %v3631, %v3631
    %v3637 = vmul.f32 %v3632, %v3632
    %v3638 = vmul.f32 %v3633, %v3633
    %v3639 = vmul.f32 %v3634, %v3634
    %v3640 = vmul.f32 %v3635, %v3635
    %v3641 = vsel %vm132, %v3636, 0.0
    %3642 = vadd.xlane.f32.xlu0 %v3641
    %v3643 = vpop.xlane.xlu0 %3642
    %v3644 = vsel %vm132, %v3637, 0.0
    %3645 = vadd.xlane.f32.xlu0 %v3644
    %v3646 = vpop.xlane.xlu0 %3645
    %v3647 = vsel %vm132, %v3638, 0.0
    %3648 = vadd.xlane.f32.xlu0 %v3647
    %v3649 = vpop.xlane.xlu0 %3648
    %v3650 = vsel %vm132, %v3639, 0.0
    %3651 = vadd.xlane.f32.xlu0 %v3650
    %v3652 = vpop.xlane.xlu0 %3651
    %v3653 = vsel %vm1346, %v3640, 0.0
    %3654 = vadd.xlane.f32.xlu0 %v3653
    %v3655 = vpop.xlane.xlu0 %3654
    %v3656 = vmul.f32 %v3643, %v1356
    %v3657 = vmul.f32 %v3646, %v1356
    %v3658 = vmul.f32 %v3649, %v1356
    %v3659 = vmul.f32 %v3652, %v1356
    %v3660 = vmul.f32 %v3655, %v1356
    %v3661 = vadd.f32 %v3656, 1e-05
    %v3662 = vadd.f32 %v3657, 1e-05
    %v3663 = vadd.f32 %v3658, 1e-05
    %v3664 = vadd.f32 %v3659, 1e-05
    %v3665 = vadd.f32 %v3660, 1e-05
    %v3666 = vrsqrt.pop %v3661
    %v3667 = vmul.f32 %v3666, %v3661
    %v3668 = vmul.f32 %v3667, %v3666
    %v3669 = vmul.f32 0.5, %v3668
    %v3670 = vsub.f32 1.5, %v3669
    %v3671 = vmul.f32 %v3666, %v3670
    %vm3672 = vweird.f32 %v3661
    %vm3673 = vweird.f32 %v3666
    %vm3674 = vmor %vm3672, %vm3673
    %v3675 = vsel %vm3674, %v3666, %v3671
    %v3676 = vrsqrt.pop %v3662
    %v3677 = vmul.f32 %v3676, %v3662
    %v3678 = vmul.f32 %v3677, %v3676
    %v3679 = vmul.f32 0.5, %v3678
    %v3680 = vsub.f32 1.5, %v3679
    %v3681 = vmul.f32 %v3676, %v3680
    %vm3682 = vweird.f32 %v3662
    %vm3683 = vweird.f32 %v3676
    %vm3684 = vmor %vm3682, %vm3683
    %v3685 = vsel %vm3684, %v3676, %v3681
    %v3686 = vrsqrt.pop %v3663
    %v3687 = vmul.f32 %v3686, %v3663
    %v3688 = vmul.f32 %v3687, %v3686
    %v3689 = vmul.f32 0.5, %v3688
    %v3690 = vsub.f32 1.5, %v3689
    %v3691 = vmul.f32 %v3686, %v3690
    %vm3692 = vweird.f32 %v3663
    %vm3693 = vweird.f32 %v3686
    %vm3694 = vmor %vm3692, %vm3693
    %v3695 = vsel %vm3694, %v3686, %v3691
    %v3696 = vrsqrt.pop %v3664
    %v3697 = vmul.f32 %v3696, %v3664
    %v3698 = vmul.f32 %v3697, %v3696
    %v3699 = vmul.f32 0.5, %v3698
    %v3700 = vsub.f32 1.5, %v3699
    %v3701 = vmul.f32 %v3696, %v3700
    %vm3702 = vweird.f32 %v3664
    %vm3703 = vweird.f32 %v3696
    %vm3704 = vmor %vm3702, %vm3703
    %v3705 = vsel %vm3704, %v3696, %v3701
    %v3706 = vrsqrt.pop %v3665
    %v3707 = vmul.f32 %v3706, %v3665
    %v3708 = vmul.f32 %v3707, %v3706
    %v3709 = vmul.f32 0.5, %v3708
    %v3710 = vsub.f32 1.5, %v3709
    %v3711 = vmul.f32 %v3706, %v3710
    %vm3712 = vweird.f32 %v3665
    %vm3713 = vweird.f32 %v3706
    %vm3714 = vmor %vm3712, %vm3713
    %v3715 = vsel %vm3714, %v3706, %v3711
    %v3716 = vmul.f32 %v3631, %v3675
    %v3717 = vmul.f32 %v3632, %v3685
    %v3718 = vmul.f32 %v3633, %v3695
    %v3719 = vmul.f32 %v3634, %v3705
    %v3720 = vmul.f32 %v3635, %v3715
    %v3722 = vperm.slane %v3608, 0
    %v3724 = vmul.f32 %v3716, %v3722
    %v3725 = vmul.f32 %v3717, %v3722
    %v3726 = vmul.f32 %v3718, %v3722
    %v3727 = vmul.f32 %v3719, %v3722
    %v3728 = vmul.f32 %v3720, %v3722
    %v3730 = vperm.slane %v3610, 0
    %v3732 = vadd.f32 %v3724, %v3730
    %v3733 = vadd.f32 %v3725, %v3730
    %v3734 = vadd.f32 %v3726, %v3730
    %v3735 = vadd.f32 %v3727, %v3730
    %v3736 = vadd.f32 %v3728, %v3730
    %v3737 = vld [vmem:[%s2] sm:$0x3]
    %v3739 = vsel %vm248, %v3737, 0
    %v3742 = vsel %vm399, %v3736, 0
    %3744 = vmatpush.msra.mxu0 0.0
    %3745 = vmatpush.msra.mxu0 0.0
    %3746 = vmatpush.msra.mxu0 0.0
    %3747 = vmatpush.msra.mxu0 0.0
    %3748 = vmatpush.msra.mxu0 0.0
    %3749 = vmatpush.msra.mxu0 0.0
    %3750 = vmatpush.msra.mxu0 0.0
    %3751 = vmatpush.msra.mxu0 0.0
    %3752 = vmatpush.msra.mxu0 0.0
    %3753 = vmatpush.msra.mxu0 0.0
    %3754 = vmatpush.msra.mxu0 0.0
    %3755 = vmatpush.msra.mxu0 %v3742
    %3756 = vmatpush.msra.mxu0 %v3735
    %3757 = vmatpush.msra.mxu0 %v3734
    %3758 = vmatpush.msra.mxu0 %v3733
    %3759 = vmatpush.msra.mxu0 %v3732
    %3760 = vmatmul.f32.gmra.mxu0 %v3739
    %v3761 = vpop.f32.mrf.mxu0
    %v3762 = vadd.f32 0.0, %v3761
    %3763 = vdwg.mxu0
    %v3764 = vld [vmem:[%s15] sm:$0xff]
    %v3765 = vld [vmem:[%s15 + $0x8] sm:$0xff]
    %v3766 = vld [vmem:[%s15 + $0x10] sm:$0xff]
    %v3767 = vld [vmem:[%s15 + $0x18] sm:$0xff]
    %v3768 = vld [vmem:[%s16] sm:$0x1]
    %v3770 = vperm.slane %v3768, 0
    %v3773 = vsel %vm132, %v3762, 0
    %3775 = vmatpush.msra.mxu0 0.0
    %3776 = vmatpush.msra.mxu0 0.0
    %3777 = vmatpush.msra.mxu0 0.0
    %3778 = vmatpush.msra.mxu0 0.0
    %3779 = vmatpush.msra.mxu0 0.0
    %3780 = vmatpush.msra.mxu0 0.0
    %3781 = vmatpush.msra.mxu0 0.0
    %3782 = vmatpush.msra.mxu0 0.0
    %3783 = vmatpush.msra.mxu0 0.0
    %3784 = vmatpush.msra.mxu0 0.0
    %3785 = vmatpush.msra.mxu0 0.0
    %3786 = vmatpush.msra.mxu0 0.0
    %3787 = vmatpush.msra.mxu0 %v3767
    %3788 = vmatpush.msra.mxu0 %v3766
    %3789 = vmatpush.msra.mxu0 %v3765
    %3790 = vmatpush.msra.mxu0 %v3764
    %3791 = vmatmul.f32.gmra.mxu0 %v3773
    %v3792 = vpop.f32.mrf.mxu0
    %v3793 = vadd.f32 %v3770, %v3792
    %3794 = vdwg.mxu0
    %vm3795 = vcmask 74752
    %3796 = vst.msk [vmem:[#allocation2] sm:$0x3] %vm3795, %v3793
    // Predicated region
    $region70: #{_lambda_.1} parent=1 // pred_check
      _
    $region71: #{_lambda_.1} parent=1 // pred_check_branch
      %3798 = sbr.rel (0) target = $region73
    $region72: #{_lambda_.1} parent=1 // pred_region
      %3800 = vsyncadd [#allocation3], 0
      %s3802 = sshll.u32 [#allocation2], 4
      %s3803 = int_to_ptr.vmem [resolvable:$true] %s3802
      %s3804 = sshll.u32 %s17, 4
      %s3805 = int_to_ptr.hbm [resolvable:$true] %s3804
      %3807 = dma.vmem_to_hbm [thread:$0]  %s3803, 32, %s3805, [#allocation3]
    $region73: #{_lambda_.1} parent=1 // pred_fallthru
      _
    // Predicated region
    $region74: #{_lambda_.1} parent=1 // pred_check
      _
    $region75: #{_lambda_.1} parent=1 // pred_check_branch
      %3809 = sbr.rel (0) target = $region77
    $region76: #{_lambda_.1} parent=1 // pred_region
      %3811 = dma.done [#allocation3], 32
    $region77: #{_lambda_.1} parent=1 // pred_fallthru
      _
    %3812 = vsyncpa [#allocation3], 1

</llo_original>
